<compile_context>
chip_gen: v7x
topology: tpu7x:2x2x1
jax: 0.10.0
libtpu: 0.0.40
codegen_flags: <defaults>
</compile_context>

<pallas_src>
import jax
import jax.numpy as jnp
from jax import lax
from jax.experimental import pallas as pl
from jax.experimental.pallas import tpu as pltpu


def lstm_sentiment_kernel(ids_ref, emb_ref, wih_ref, whh_ref, b_ref,
                          wfc_ref, bfc_ref, out_ref, xg_ref):
    """Fused embedding lookup + LSTM over time + final Linear for one batch block.

    ids_ref : (S, Bb, 1) int32   time-major token ids
    emb_ref : (V_pad, E)         embedding table (zero-padded rows), compute dtype
    wih_ref : (E, 4H)            input->gates weight (i,f,g,o), compute dtype
    whh_ref : (H, 4H)            hidden->gates weight, compute dtype
    b_ref   : (1, 4H)  f32       combined bias (b_ih + b_hh)
    wfc_ref : (O, H)             final linear weight (PyTorch layout), compute dtype
    bfc_ref : (1, O)   f32       final linear bias
    out_ref : (Bb, O)  f32       fc(hidden[-1])
    xg_ref  : (S, Bb, 4H) f32    scratch: hoisted input projection
    """
    S, Bb, _ = ids_ref.shape
    V, E = emb_ref.shape
    H = whh_ref.shape[0]
    G = 4 * H
    cdt = emb_ref.dtype            # MXU operand dtype (f32 or bf16)

    # ---- Phase 1 (hoisted, one pass over all timesteps) -------------------
    # ids -> one-hot (S,Bb,V) -> MXU row pick of the embedding -> x @ W_ih + b.
    # Bias is folded in here so it is never re-broadcast inside the loop.
    ids = ids_ref[...]                                               # (S, Bb, 1)
    iota_v = lax.broadcasted_iota(jnp.int32, (S, Bb, V), 2)
    onehot = (iota_v == ids).astype(cdt)                             # (S, Bb, V)
    # Bb % 8 == 0 and V % 128 == 0  ->  this reshape is a free sublane merge.
    x_all = jnp.dot(onehot.reshape(S * Bb, V), emb_ref[...],
                    preferred_element_type=cdt)                      # (S*Bb, E), exact pick
    xg = jnp.dot(x_all, wih_ref[...],
                 preferred_element_type=jnp.float32) + b_ref[...]    # (S*Bb, 4H) f32
    xg_ref[...] = xg.reshape(S, Bb, G)

    # ---- Phase 2: serial recurrence; h/c live in vregs, loop unrolled -----
    w_hh = whh_ref[...]                                              # hoisted load
    h0 = jnp.zeros((Bb, H), jnp.float32)
    c0 = jnp.zeros((Bb, H), jnp.float32)

    def sigmoid_via_tanh(x):
        # sigmoid(x) == 0.5*tanh(0.5*x) + 0.5 : one EUP op instead of exp+recip.
        return 0.5 * jnp.tanh(0.5 * x) + 0.5

    def step(t, carry):
        h, c = carry
        gates = xg_ref[t] + jnp.dot(h.astype(cdt), w_hh,
                                    preferred_element_type=jnp.float32)  # (Bb, 4H)
        # H % 128 == 0 -> lane-tile aligned slices (no masked selects).
        i_g = sigmoid_via_tanh(gates[:, 0 * H:1 * H])
        f_g = sigmoid_via_tanh(gates[:, 1 * H:2 * H])
        g_g = jnp.tanh(gates[:, 2 * H:3 * H])
        o_g = sigmoid_via_tanh(gates[:, 3 * H:4 * H])
        c_new = f_g * c + i_g * g_g
        h_new = o_g * jnp.tanh(c_new)
        return h_new, c_new

    h_final, _ = lax.fori_loop(0, S, step, (h0, c0), unroll=True)

    # ---- Final Linear on the last hidden state -----------------------------
    n_out = wfc_ref.shape[0]
    if n_out == 1:
        # VPU broadcast-multiply + lane reduction; avoids a 1-column MXU matmul.
        out_ref[...] = (jnp.sum(h_final * wfc_ref[...].astype(jnp.float32),
                                axis=-1, keepdims=True) + bfc_ref[...])
    else:
        out_ref[...] = (lax.dot_general(
            h_final.astype(cdt), wfc_ref[...],
            dimension_numbers=(((1,), (1,)), ((), ())),
            preferred_element_type=jnp.float32) + bfc_ref[...])


def sentiment_forward(text, params, *, batch_block=None,
                      compute_dtype=jnp.float32):
    """text: (B, S) int32 token ids -> (B, output_dim) f32 logits."""
    emb_table = params["embedding"]           # (V, E)
    w_ih = params["w_ih"]                     # (E, 4H)
    w_hh = params["w_hh"]                     # (H, 4H)
    b = params["b"]                           # (1, 4H), b_ih + b_hh
    w_fc = params["w_fc"]                     # (O, H)  PyTorch Linear layout
    b_fc = params["b_fc"]                     # (1, O)

    B, S = text.shape
    V, E = emb_table.shape
    H = w_hh.shape[0]
    G = 4 * H
    n_out = w_fc.shape[0]

    if batch_block is None:
        # One grid point on v5e/v6e (single TC); cap ~32 so the f32 unrolled
        # recurrence (gates (Bb,4H) f32) does not spill vregs.
        # On v7x pass batch_block=B//2 to occupy both TensorCores.
        batch_block = min(B, 32)

    # Layout preconditions (free reshapes, lane-aligned gate slices).
    assert B % batch_block == 0, "batch must be a multiple of batch_block"
    assert batch_block % 8 == 0, "batch_block must be a multiple of 8 sublanes"
    assert H % 128 == 0, "hidden_dim must be a multiple of 128 lanes"
    assert E % 128 == 0, "embed_dim must be a multiple of 128 lanes (pad if not)"

    # Pad vocab to a lane multiple so the one-hot / table are tile aligned.
    V_pad = ((V + 127) // 128) * 128
    assert V_pad * E * 4 <= 16 * 1024 * 1024, "embedding table too large for VMEM"
    # TODO(synk): for a realistic IMDB-size vocab the table no longer fits VMEM;
    # switch to scalar-prefetched ids + manual DMA gather of embedding rows.

    emb_p = jnp.pad(emb_table, ((0, V_pad - V), (0, 0))).astype(compute_dtype)
    w_ih_c = w_ih.astype(compute_dtype)
    w_hh_c = w_hh.astype(compute_dtype)
    w_fc_c = w_fc.astype(compute_dtype)
    b_f32 = b.astype(jnp.float32)
    b_fc_f32 = b_fc.astype(jnp.float32)

    # Only the tiny int32 ids cross HBM in time-major form (no (S,B,E) round trip).
    ids_tm = jnp.transpose(text.astype(jnp.int32))[:, :, None]       # (S, B, 1)

    grid = (B // batch_block,)
    out = pl.pallas_call(
        lstm_sentiment_kernel,
        out_shape=jax.ShapeDtypeStruct((B, n_out), jnp.float32),
        grid=grid,
        in_specs=[
            pl.BlockSpec((S, batch_block, 1), lambda i: (0, i, 0)),   # ids
            pl.BlockSpec((V_pad, E), lambda i: (0, 0)),               # embedding
            pl.BlockSpec((E, G), lambda i: (0, 0)),                   # w_ih
            pl.BlockSpec((H, G), lambda i: (0, 0)),                   # w_hh
            pl.BlockSpec((1, G), lambda i: (0, 0)),                   # b
            pl.BlockSpec((n_out, H), lambda i: (0, 0)),               # w_fc
            pl.BlockSpec((1, n_out), lambda i: (0, 0)),               # b_fc
        ],
        out_specs=pl.BlockSpec((batch_block, n_out), lambda i: (i, 0)),
        scratch_shapes=[pltpu.VMEM((S, batch_block, G), jnp.float32)],
        compiler_params=pltpu.CompilerParams(
            dimension_semantics=("parallel",),   # batch blocks are independent
            vmem_limit_bytes=32 * 1024 * 1024,   # safe on v5e/v6e/v7x
        ),
    )(ids_tm, emb_p, w_ih_c, w_hh_c, b_f32, w_fc_c, b_fc_f32)
    return out


def reference_forward(text, params):
    """Pure-JAX reference matching torch.nn.LSTM semantics (gate order i,f,g,o)."""
    emb = jnp.take(params["embedding"], text, axis=0)          # (B, S, E)
    B, S, _ = emb.shape
    H = params["w_hh"].shape[0]
    h = jnp.zeros((B, H), jnp.float32)
    c = jnp.zeros((B, H), jnp.float32)
    for t in range(S):
        gates = emb[:, t, :] @ params["w_ih"] + h @ params["w_hh"] + params["b"]
        i_g = jax.nn.sigmoid(gates[:, 0:H])
        f_g = jax.nn.sigmoid(gates[:, H:2 * H])
        g_g = jnp.tanh(gates[:, 2 * H:3 * H])
        o_g = jax.nn.sigmoid(gates[:, 3 * H:4 * H])
        c = f_g * c + i_g * g_g
        h = o_g * jnp.tanh(c)
    return h @ params["w_fc"].T + params["b_fc"]


def init_params(key, vocab_size, embed_dim, hidden_dim, output_dim):
    ks = jax.random.split(key, 7)
    scale = 0.1
    return {
        "embedding": scale * jax.random.normal(ks[0], (vocab_size, embed_dim),
                                               jnp.float32),
        # PyTorch stores (4H, E)/(4H, H); pre-transposed to (E, 4H)/(H, 4H).
        "w_ih": scale * jax.random.normal(ks[1], (embed_dim, 4 * hidden_dim),
                                          jnp.float32),
        "w_hh": scale * jax.random.normal(ks[2], (hidden_dim, 4 * hidden_dim),
                                          jnp.float32),
        # combined b_ih + b_hh
        "b": (scale * jax.random.normal(ks[3], (1, 4 * hidden_dim), jnp.float32)
              + scale * jax.random.normal(ks[4], (1, 4 * hidden_dim),
                                          jnp.float32)),
        # PyTorch Linear weight layout (out_features, in_features).
        "w_fc": scale * jax.random.normal(ks[5], (output_dim, hidden_dim),
                                          jnp.float32),
        "b_fc": scale * jax.random.normal(ks[6], (1, output_dim), jnp.float32),
    }


if __name__ == "__main__":
    # Small shapes consistent with the module (embedding -> LSTM -> fc to 1).
    # embed/hidden chosen as lane-width multiples; batch a multiple of 8 sublanes.
    vocab_size = 50
    embed_dim = 128
    hidden_dim = 128
    output_dim = 1
    batch = 16
    seq = 16

    key = jax.random.PRNGKey(0)
    k_param, k_text = jax.random.split(key)
    params = init_params(k_param, vocab_size, embed_dim, hidden_dim, output_dim)
    text = jax.random.randint(k_text, (batch, seq), 0, vocab_size, jnp.int32)

    ref = reference_forward(text, params)

    # f32 verification config: matches the f32 reference at 1e-4.
    out = jax.block_until_ready(sentiment_forward(text, params))
    assert out.shape == (batch, output_dim)
    assert jnp.allclose(out, ref, atol=1e-4, rtol=1e-4), (out, ref)

    # bf16-operand throughput config (c-state / gates / accumulation kept f32);
    # tolerance deliberately loosened for bf16 MXU operands.
    out_bf16 = jax.block_until_ready(
        sentiment_forward(text, params, compute_dtype=jnp.bfloat16))
    assert out_bf16.shape == (batch, output_dim)
    assert jnp.allclose(out_bf16, ref, atol=5e-2, rtol=5e-2), (out_bf16, ref)

    print("KERNEL_OK")
</pallas_src>

<mosaic_0001>
module attributes {stable_mosaic.version = 11 : i64} {
  func.func @lstm_sentiment_kernel(%arg0: i32, %arg1: memref<16x16x1xi32, #tpu.memory_space<vmem>>, %arg2: memref<128x128xf32, #tpu.memory_space<vmem>>, %arg3: memref<128x512xf32, #tpu.memory_space<vmem>>, %arg4: memref<128x512xf32, #tpu.memory_space<vmem>>, %arg5: memref<1x512xf32, #tpu.memory_space<vmem>>, %arg6: memref<1x128xf32, #tpu.memory_space<vmem>>, %arg7: memref<1x1xf32, #tpu.memory_space<vmem>>, %arg8: memref<16x1xf32, #tpu.memory_space<vmem>>, %arg9: memref<16x16x512xf32, #tpu.memory_space<vmem>>) attributes {dimension_semantics = [#tpu.dimension_semantics<parallel>], iteration_bounds = array<i64: 1>, scalar_prefetch = 0 : i64, scratch_operands = 1 : i64, tpu.core_type = #tpu.core_type<tc>, window_params = [{transform_indices = @transform_0, window_bounds = array<i64: 16, 16, 1>}, {pipeline_mode = #tpu.pipeline_mode<synchronous>, transform_indices = @transform_1, window_bounds = array<i64: 128, 128>}, {pipeline_mode = #tpu.pipeline_mode<synchronous>, transform_indices = @transform_2, window_bounds = array<i64: 128, 512>}, {pipeline_mode = #tpu.pipeline_mode<synchronous>, transform_indices = @transform_3, window_bounds = array<i64: 128, 512>}, {pipeline_mode = #tpu.pipeline_mode<synchronous>, transform_indices = @transform_4, window_bounds = array<i64: 1, 512>}, {pipeline_mode = #tpu.pipeline_mode<synchronous>, transform_indices = @transform_5, window_bounds = array<i64: 1, 128>}, {pipeline_mode = #tpu.pipeline_mode<synchronous>, transform_indices = @transform_6, window_bounds = array<i64: 1, 1>}, {transform_indices = @transform_7, window_bounds = array<i64: 16, 1>}]} {
    %c0 = arith.constant 0 : index
    %c0_0 = arith.constant 0 : index
    %c0_1 = arith.constant 0 : index
    %0 = vector.load %arg1[%c0, %c0_0, %c0_1] : memref<16x16x1xi32, #tpu.memory_space<vmem>>, vector<16x16x1xi32>
    %1 = tpu.iota {dimensions = array<i32: 2>} : vector<16x16x128xi32>
    %2 = vector.broadcast %0 : vector<16x16x1xi32> to vector<16x16x128xi32>
    %3 = arith.cmpi eq, %1, %2 : vector<16x16x128xi32>
    %4 = arith.extui %3 : vector<16x16x128xi1> to vector<16x16x128xi32>
    %5 = arith.sitofp %4 : vector<16x16x128xi32> to vector<16x16x128xf32>
    %6 = vector.shape_cast %5 : vector<16x16x128xf32> to vector<256x128xf32>
    %c0_2 = arith.constant 0 : index
    %c0_3 = arith.constant 0 : index
    %7 = vector.load %arg2[%c0_2, %c0_3] : memref<128x128xf32, #tpu.memory_space<vmem>>, vector<128x128xf32>
    %cst = arith.constant dense<0.000000e+00> : vector<256x128xf32>
    %8 = tpu.matmul %6, %7, %cst {dimension_numbers = #tpu.dot_dimension_numbers<[1], [0], [0], [1], [0, 0, 1, 1], [], []>} : vector<256x128xf32>, vector<128x128xf32>, vector<256x128xf32> -> vector<256x128xf32>
    %c0_4 = arith.constant 0 : index
    %c0_5 = arith.constant 0 : index
    %9 = vector.load %arg3[%c0_4, %c0_5] : memref<128x512xf32, #tpu.memory_space<vmem>>, vector<128x512xf32>
    %cst_6 = arith.constant dense<0.000000e+00> : vector<256x512xf32>
    %10 = tpu.matmul %8, %9, %cst_6 {dimension_numbers = #tpu.dot_dimension_numbers<[1], [0], [0], [1], [0, 0, 1, 1], [], []>} : vector<256x128xf32>, vector<128x512xf32>, vector<256x512xf32> -> vector<256x512xf32>
    %c0_7 = arith.constant 0 : index
    %c0_8 = arith.constant 0 : index
    %11 = vector.load %arg5[%c0_7, %c0_8] : memref<1x512xf32, #tpu.memory_space<vmem>>, vector<1x512xf32>
    %12 = vector.broadcast %11 : vector<1x512xf32> to vector<256x512xf32>
    %13 = arith.addf %10, %12 : vector<256x512xf32>
    %14 = vector.shape_cast %13 : vector<256x512xf32> to vector<16x16x512xf32>
    %c0_9 = arith.constant 0 : index
    %c0_10 = arith.constant 0 : index
    %c0_11 = arith.constant 0 : index
    %15 = vector.load %arg9[%c0_9, %c0_10, %c0_11] : memref<16x16x512xf32, #tpu.memory_space<vmem>>, vector<16x16x512xf32>
    tpu.vector_store %arg9[%c0_9, %c0_10, %c0_11], %14 {strides = array<i32>} : memref<16x16x512xf32, #tpu.memory_space<vmem>>, vector<16x16x512xf32>,
    %c0_12 = arith.constant 0 : index
    %c0_13 = arith.constant 0 : index
    %16 = vector.load %arg4[%c0_12, %c0_13] : memref<128x512xf32, #tpu.memory_space<vmem>>, vector<128x512xf32>
    %cst_14 = arith.constant 0.000000e+00 : f32
    %17 = vector.broadcast %cst_14 : f32 to vector<16x128xf32>
    %cst_15 = arith.constant 0.000000e+00 : f32
    %18 = vector.broadcast %cst_15 : f32 to vector<16x128xf32>
    %c0_i32 = arith.constant 0 : i32
    %19 = arith.index_cast %c0_i32 : i32 to index
    %c0_16 = arith.constant 0 : index
    %c0_17 = arith.constant 0 : index
    %20 = vector.load %arg9[%19, %c0_16, %c0_17] : memref<16x16x512xf32, #tpu.memory_space<vmem>>, vector<1x16x512xf32>
    %21 = vector.shape_cast %20 : vector<1x16x512xf32> to vector<16x512xf32>
    %cst_18 = arith.constant dense<0.000000e+00> : vector<16x512xf32>
    %22 = tpu.matmul %17, %16, %cst_18 {dimension_numbers = #tpu.dot_dimension_numbers<[1], [0], [0], [1], [0, 0, 1, 1], [], []>} : vector<16x128xf32>, vector<128x512xf32>, vector<16x512xf32> -> vector<16x512xf32>
    %23 = arith.addf %21, %22 : vector<16x512xf32>
    %24 = vector.extract_strided_slice %23 {offsets = [0, 0], sizes = [16, 128], strides = [1, 1]} : vector<16x512xf32> to vector<16x128xf32>
    %cst_19 = arith.constant 5.000000e-01 : f32
    %25 = vector.broadcast %cst_19 : f32 to vector<16x128xf32>
    %26 = arith.mulf %25, %24 : vector<16x128xf32>
    %27 = math.tanh %26 : vector<16x128xf32>
    %cst_20 = arith.constant 5.000000e-01 : f32
    %28 = vector.broadcast %cst_20 : f32 to vector<16x128xf32>
    %29 = arith.mulf %28, %27 : vector<16x128xf32>
    %cst_21 = arith.constant 5.000000e-01 : f32
    %30 = vector.broadcast %cst_21 : f32 to vector<16x128xf32>
    %31 = arith.addf %29, %30 : vector<16x128xf32>
    %32 = vector.extract_strided_slice %23 {offsets = [0, 128], sizes = [16, 128], strides = [1, 1]} : vector<16x512xf32> to vector<16x128xf32>
    %cst_22 = arith.constant 5.000000e-01 : f32
    %33 = vector.broadcast %cst_22 : f32 to vector<16x128xf32>
    %34 = arith.mulf %33, %32 : vector<16x128xf32>
    %35 = math.tanh %34 : vector<16x128xf32>
    %cst_23 = arith.constant 5.000000e-01 : f32
    %36 = vector.broadcast %cst_23 : f32 to vector<16x128xf32>
    %37 = arith.mulf %36, %35 : vector<16x128xf32>
    %cst_24 = arith.constant 5.000000e-01 : f32
    %38 = vector.broadcast %cst_24 : f32 to vector<16x128xf32>
    %39 = arith.addf %37, %38 : vector<16x128xf32>
    %40 = vector.extract_strided_slice %23 {offsets = [0, 256], sizes = [16, 128], strides = [1, 1]} : vector<16x512xf32> to vector<16x128xf32>
    %41 = math.tanh %40 : vector<16x128xf32>
    %42 = vector.extract_strided_slice %23 {offsets = [0, 384], sizes = [16, 128], strides = [1, 1]} : vector<16x512xf32> to vector<16x128xf32>
    %cst_25 = arith.constant 5.000000e-01 : f32
    %43 = vector.broadcast %cst_25 : f32 to vector<16x128xf32>
    %44 = arith.mulf %43, %42 : vector<16x128xf32>
    %45 = math.tanh %44 : vector<16x128xf32>
    %cst_26 = arith.constant 5.000000e-01 : f32
    %46 = vector.broadcast %cst_26 : f32 to vector<16x128xf32>
    %47 = arith.mulf %46, %45 : vector<16x128xf32>
    %cst_27 = arith.constant 5.000000e-01 : f32
    %48 = vector.broadcast %cst_27 : f32 to vector<16x128xf32>
    %49 = arith.addf %47, %48 : vector<16x128xf32>
    %50 = arith.mulf %39, %18 : vector<16x128xf32>
    %51 = arith.mulf %31, %41 : vector<16x128xf32>
    %52 = arith.addf %50, %51 : vector<16x128xf32>
    %53 = math.tanh %52 : vector<16x128xf32>
    %54 = arith.mulf %49, %53 : vector<16x128xf32>
    %c1_i32 = arith.constant 1 : i32
    %55 = arith.index_cast %c1_i32 : i32 to index
    %c0_28 = arith.constant 0 : index
    %c0_29 = arith.constant 0 : index
    %56 = vector.load %arg9[%55, %c0_28, %c0_29] : memref<16x16x512xf32, #tpu.memory_space<vmem>>, vector<1x16x512xf32>
    %57 = vector.shape_cast %56 : vector<1x16x512xf32> to vector<16x512xf32>
    %cst_30 = arith.constant dense<0.000000e+00> : vector<16x512xf32>
    %58 = tpu.matmul %54, %16, %cst_30 {dimension_numbers = #tpu.dot_dimension_numbers<[1], [0], [0], [1], [0, 0, 1, 1], [], []>} : vector<16x128xf32>, vector<128x512xf32>, vector<16x512xf32> -> vector<16x512xf32>
    %59 = arith.addf %57, %58 : vector<16x512xf32>
    %60 = vector.extract_strided_slice %59 {offsets = [0, 0], sizes = [16, 128], strides = [1, 1]} : vector<16x512xf32> to vector<16x128xf32>
    %cst_31 = arith.constant 5.000000e-01 : f32
    %61 = vector.broadcast %cst_31 : f32 to vector<16x128xf32>
    %62 = arith.mulf %61, %60 : vector<16x128xf32>
    %63 = math.tanh %62 : vector<16x128xf32>
    %cst_32 = arith.constant 5.000000e-01 : f32
    %64 = vector.broadcast %cst_32 : f32 to vector<16x128xf32>
    %65 = arith.mulf %64, %63 : vector<16x128xf32>
    %cst_33 = arith.constant 5.000000e-01 : f32
    %66 = vector.broadcast %cst_33 : f32 to vector<16x128xf32>
    %67 = arith.addf %65, %66 : vector<16x128xf32>
    %68 = vector.extract_strided_slice %59 {offsets = [0, 128], sizes = [16, 128], strides = [1, 1]} : vector<16x512xf32> to vector<16x128xf32>
    %cst_34 = arith.constant 5.000000e-01 : f32
    %69 = vector.broadcast %cst_34 : f32 to vector<16x128xf32>
    %70 = arith.mulf %69, %68 : vector<16x128xf32>
    %71 = math.tanh %70 : vector<16x128xf32>
    %cst_35 = arith.constant 5.000000e-01 : f32
    %72 = vector.broadcast %cst_35 : f32 to vector<16x128xf32>
    %73 = arith.mulf %72, %71 : vector<16x128xf32>
    %cst_36 = arith.constant 5.000000e-01 : f32
    %74 = vector.broadcast %cst_36 : f32 to vector<16x128xf32>
    %75 = arith.addf %73, %74 : vector<16x128xf32>
    %76 = vector.extract_strided_slice %59 {offsets = [0, 256], sizes = [16, 128], strides = [1, 1]} : vector<16x512xf32> to vector<16x128xf32>
    %77 = math.tanh %76 : vector<16x128xf32>
    %78 = vector.extract_strided_slice %59 {offsets = [0, 384], sizes = [16, 128], strides = [1, 1]} : vector<16x512xf32> to vector<16x128xf32>
    %cst_37 = arith.constant 5.000000e-01 : f32
    %79 = vector.broadcast %cst_37 : f32 to vector<16x128xf32>
    %80 = arith.mulf %79, %78 : vector<16x128xf32>
    %81 = math.tanh %80 : vector<16x128xf32>
    %cst_38 = arith.constant 5.000000e-01 : f32
    %82 = vector.broadcast %cst_38 : f32 to vector<16x128xf32>
    %83 = arith.mulf %82, %81 : vector<16x128xf32>
    %cst_39 = arith.constant 5.000000e-01 : f32
    %84 = vector.broadcast %cst_39 : f32 to vector<16x128xf32>
    %85 = arith.addf %83, %84 : vector<16x128xf32>
    %86 = arith.mulf %75, %52 : vector<16x128xf32>
    %87 = arith.mulf %67, %77 : vector<16x128xf32>
    %88 = arith.addf %86, %87 : vector<16x128xf32>
    %89 = math.tanh %88 : vector<16x128xf32>
    %90 = arith.mulf %85, %89 : vector<16x128xf32>
    %c2_i32 = arith.constant 2 : i32
    %91 = arith.index_cast %c2_i32 : i32 to index
    %c0_40 = arith.constant 0 : index
    %c0_41 = arith.constant 0 : index
    %92 = vector.load %arg9[%91, %c0_40, %c0_41] : memref<16x16x512xf32, #tpu.memory_space<vmem>>, vector<1x16x512xf32>
    %93 = vector.shape_cast %92 : vector<1x16x512xf32> to vector<16x512xf32>
    %cst_42 = arith.constant dense<0.000000e+00> : vector<16x512xf32>
    %94 = tpu.matmul %90, %16, %cst_42 {dimension_numbers = #tpu.dot_dimension_numbers<[1], [0], [0], [1], [0, 0, 1, 1], [], []>} : vector<16x128xf32>, vector<128x512xf32>, vector<16x512xf32> -> vector<16x512xf32>
    %95 = arith.addf %93, %94 : vector<16x512xf32>
    %96 = vector.extract_strided_slice %95 {offsets = [0, 0], sizes = [16, 128], strides = [1, 1]} : vector<16x512xf32> to vector<16x128xf32>
    %cst_43 = arith.constant 5.000000e-01 : f32
    %97 = vector.broadcast %cst_43 : f32 to vector<16x128xf32>
    %98 = arith.mulf %97, %96 : vector<16x128xf32>
    %99 = math.tanh %98 : vector<16x128xf32>
    %cst_44 = arith.constant 5.000000e-01 : f32
    %100 = vector.broadcast %cst_44 : f32 to vector<16x128xf32>
    %101 = arith.mulf %100, %99 : vector<16x128xf32>
    %cst_45 = arith.constant 5.000000e-01 : f32
    %102 = vector.broadcast %cst_45 : f32 to vector<16x128xf32>
    %103 = arith.addf %101, %102 : vector<16x128xf32>
    %104 = vector.extract_strided_slice %95 {offsets = [0, 128], sizes = [16, 128], strides = [1, 1]} : vector<16x512xf32> to vector<16x128xf32>
    %cst_46 = arith.constant 5.000000e-01 : f32
    %105 = vector.broadcast %cst_46 : f32 to vector<16x128xf32>
    %106 = arith.mulf %105, %104 : vector<16x128xf32>
    %107 = math.tanh %106 : vector<16x128xf32>
    %cst_47 = arith.constant 5.000000e-01 : f32
    %108 = vector.broadcast %cst_47 : f32 to vector<16x128xf32>
    %109 = arith.mulf %108, %107 : vector<16x128xf32>
    %cst_48 = arith.constant 5.000000e-01 : f32
    %110 = vector.broadcast %cst_48 : f32 to vector<16x128xf32>
    %111 = arith.addf %109, %110 : vector<16x128xf32>
    %112 = vector.extract_strided_slice %95 {offsets = [0, 256], sizes = [16, 128], strides = [1, 1]} : vector<16x512xf32> to vector<16x128xf32>
    %113 = math.tanh %112 : vector<16x128xf32>
    %114 = vector.extract_strided_slice %95 {offsets = [0, 384], sizes = [16, 128], strides = [1, 1]} : vector<16x512xf32> to vector<16x128xf32>
    %cst_49 = arith.constant 5.000000e-01 : f32
    %115 = vector.broadcast %cst_49 : f32 to vector<16x128xf32>
    %116 = arith.mulf %115, %114 : vector<16x128xf32>
    %117 = math.tanh %116 : vector<16x128xf32>
    %cst_50 = arith.constant 5.000000e-01 : f32
    %118 = vector.broadcast %cst_50 : f32 to vector<16x128xf32>
    %119 = arith.mulf %118, %117 : vector<16x128xf32>
    %cst_51 = arith.constant 5.000000e-01 : f32
    %120 = vector.broadcast %cst_51 : f32 to vector<16x128xf32>
    %121 = arith.addf %119, %120 : vector<16x128xf32>
    %122 = arith.mulf %111, %88 : vector<16x128xf32>
    %123 = arith.mulf %103, %113 : vector<16x128xf32>
    %124 = arith.addf %122, %123 : vector<16x128xf32>
    %125 = math.tanh %124 : vector<16x128xf32>
    %126 = arith.mulf %121, %125 : vector<16x128xf32>
    %c3_i32 = arith.constant 3 : i32
    %127 = arith.index_cast %c3_i32 : i32 to index
    %c0_52 = arith.constant 0 : index
    %c0_53 = arith.constant 0 : index
    %128 = vector.load %arg9[%127, %c0_52, %c0_53] : memref<16x16x512xf32, #tpu.memory_space<vmem>>, vector<1x16x512xf32>
    %129 = vector.shape_cast %128 : vector<1x16x512xf32> to vector<16x512xf32>
    %cst_54 = arith.constant dense<0.000000e+00> : vector<16x512xf32>
    %130 = tpu.matmul %126, %16, %cst_54 {dimension_numbers = #tpu.dot_dimension_numbers<[1], [0], [0], [1], [0, 0, 1, 1], [], []>} : vector<16x128xf32>, vector<128x512xf32>, vector<16x512xf32> -> vector<16x512xf32>
    %131 = arith.addf %129, %130 : vector<16x512xf32>
    %132 = vector.extract_strided_slice %131 {offsets = [0, 0], sizes = [16, 128], strides = [1, 1]} : vector<16x512xf32> to vector<16x128xf32>
    %cst_55 = arith.constant 5.000000e-01 : f32
    %133 = vector.broadcast %cst_55 : f32 to vector<16x128xf32>
    %134 = arith.mulf %133, %132 : vector<16x128xf32>
    %135 = math.tanh %134 : vector<16x128xf32>
    %cst_56 = arith.constant 5.000000e-01 : f32
    %136 = vector.broadcast %cst_56 : f32 to vector<16x128xf32>
    %137 = arith.mulf %136, %135 : vector<16x128xf32>
    %cst_57 = arith.constant 5.000000e-01 : f32
    %138 = vector.broadcast %cst_57 : f32 to vector<16x128xf32>
    %139 = arith.addf %137, %138 : vector<16x128xf32>
    %140 = vector.extract_strided_slice %131 {offsets = [0, 128], sizes = [16, 128], strides = [1, 1]} : vector<16x512xf32> to vector<16x128xf32>
    %cst_58 = arith.constant 5.000000e-01 : f32
    %141 = vector.broadcast %cst_58 : f32 to vector<16x128xf32>
    %142 = arith.mulf %141, %140 : vector<16x128xf32>
    %143 = math.tanh %142 : vector<16x128xf32>
    %cst_59 = arith.constant 5.000000e-01 : f32
    %144 = vector.broadcast %cst_59 : f32 to vector<16x128xf32>
    %145 = arith.mulf %144, %143 : vector<16x128xf32>
    %cst_60 = arith.constant 5.000000e-01 : f32
    %146 = vector.broadcast %cst_60 : f32 to vector<16x128xf32>
    %147 = arith.addf %145, %146 : vector<16x128xf32>
    %148 = vector.extract_strided_slice %131 {offsets = [0, 256], sizes = [16, 128], strides = [1, 1]} : vector<16x512xf32> to vector<16x128xf32>
    %149 = math.tanh %148 : vector<16x128xf32>
    %150 = vector.extract_strided_slice %131 {offsets = [0, 384], sizes = [16, 128], strides = [1, 1]} : vector<16x512xf32> to vector<16x128xf32>
    %cst_61 = arith.constant 5.000000e-01 : f32
    %151 = vector.broadcast %cst_61 : f32 to vector<16x128xf32>
    %152 = arith.mulf %151, %150 : vector<16x128xf32>
    %153 = math.tanh %152 : vector<16x128xf32>
    %cst_62 = arith.constant 5.000000e-01 : f32
    %154 = vector.broadcast %cst_62 : f32 to vector<16x128xf32>
    %155 = arith.mulf %154, %153 : vector<16x128xf32>
    %cst_63 = arith.constant 5.000000e-01 : f32
    %156 = vector.broadcast %cst_63 : f32 to vector<16x128xf32>
    %157 = arith.addf %155, %156 : vector<16x128xf32>
    %158 = arith.mulf %147, %124 : vector<16x128xf32>
    %159 = arith.mulf %139, %149 : vector<16x128xf32>
    %160 = arith.addf %158, %159 : vector<16x128xf32>
    %161 = math.tanh %160 : vector<16x128xf32>
    %162 = arith.mulf %157, %161 : vector<16x128xf32>
    %c4_i32 = arith.constant 4 : i32
    %163 = arith.index_cast %c4_i32 : i32 to index
    %c0_64 = arith.constant 0 : index
    %c0_65 = arith.constant 0 : index
    %164 = vector.load %arg9[%163, %c0_64, %c0_65] : memref<16x16x512xf32, #tpu.memory_space<vmem>>, vector<1x16x512xf32>
    %165 = vector.shape_cast %164 : vector<1x16x512xf32> to vector<16x512xf32>
    %cst_66 = arith.constant dense<0.000000e+00> : vector<16x512xf32>
    %166 = tpu.matmul %162, %16, %cst_66 {dimension_numbers = #tpu.dot_dimension_numbers<[1], [0], [0], [1], [0, 0, 1, 1], [], []>} : vector<16x128xf32>, vector<128x512xf32>, vector<16x512xf32> -> vector<16x512xf32>
    %167 = arith.addf %165, %166 : vector<16x512xf32>
    %168 = vector.extract_strided_slice %167 {offsets = [0, 0], sizes = [16, 128], strides = [1, 1]} : vector<16x512xf32> to vector<16x128xf32>
    %cst_67 = arith.constant 5.000000e-01 : f32
    %169 = vector.broadcast %cst_67 : f32 to vector<16x128xf32>
    %170 = arith.mulf %169, %168 : vector<16x128xf32>
    %171 = math.tanh %170 : vector<16x128xf32>
    %cst_68 = arith.constant 5.000000e-01 : f32
    %172 = vector.broadcast %cst_68 : f32 to vector<16x128xf32>
    %173 = arith.mulf %172, %171 : vector<16x128xf32>
    %cst_69 = arith.constant 5.000000e-01 : f32
    %174 = vector.broadcast %cst_69 : f32 to vector<16x128xf32>
    %175 = arith.addf %173, %174 : vector<16x128xf32>
    %176 = vector.extract_strided_slice %167 {offsets = [0, 128], sizes = [16, 128], strides = [1, 1]} : vector<16x512xf32> to vector<16x128xf32>
    %cst_70 = arith.constant 5.000000e-01 : f32
    %177 = vector.broadcast %cst_70 : f32 to vector<16x128xf32>
    %178 = arith.mulf %177, %176 : vector<16x128xf32>
    %179 = math.tanh %178 : vector<16x128xf32>
    %cst_71 = arith.constant 5.000000e-01 : f32
    %180 = vector.broadcast %cst_71 : f32 to vector<16x128xf32>
    %181 = arith.mulf %180, %179 : vector<16x128xf32>
    %cst_72 = arith.constant 5.000000e-01 : f32
    %182 = vector.broadcast %cst_72 : f32 to vector<16x128xf32>
    %183 = arith.addf %181, %182 : vector<16x128xf32>
    %184 = vector.extract_strided_slice %167 {offsets = [0, 256], sizes = [16, 128], strides = [1, 1]} : vector<16x512xf32> to vector<16x128xf32>
    %185 = math.tanh %184 : vector<16x128xf32>
    %186 = vector.extract_strided_slice %167 {offsets = [0, 384], sizes = [16, 128], strides = [1, 1]} : vector<16x512xf32> to vector<16x128xf32>
    %cst_73 = arith.constant 5.000000e-01 : f32
    %187 = vector.broadcast %cst_73 : f32 to vector<16x128xf32>
    %188 = arith.mulf %187, %186 : vector<16x128xf32>
    %189 = math.tanh %188 : vector<16x128xf32>
    %cst_74 = arith.constant 5.000000e-01 : f32
    %190 = vector.broadcast %cst_74 : f32 to vector<16x128xf32>
    %191 = arith.mulf %190, %189 : vector<16x128xf32>
    %cst_75 = arith.constant 5.000000e-01 : f32
    %192 = vector.broadcast %cst_75 : f32 to vector<16x128xf32>
    %193 = arith.addf %191, %192 : vector<16x128xf32>
    %194 = arith.mulf %183, %160 : vector<16x128xf32>
    %195 = arith.mulf %175, %185 : vector<16x128xf32>
    %196 = arith.addf %194, %195 : vector<16x128xf32>
    %197 = math.tanh %196 : vector<16x128xf32>
    %198 = arith.mulf %193, %197 : vector<16x128xf32>
    %c5_i32 = arith.constant 5 : i32
    %199 = arith.index_cast %c5_i32 : i32 to index
    %c0_76 = arith.constant 0 : index
    %c0_77 = arith.constant 0 : index
    %200 = vector.load %arg9[%199, %c0_76, %c0_77] : memref<16x16x512xf32, #tpu.memory_space<vmem>>, vector<1x16x512xf32>
    %201 = vector.shape_cast %200 : vector<1x16x512xf32> to vector<16x512xf32>
    %cst_78 = arith.constant dense<0.000000e+00> : vector<16x512xf32>
    %202 = tpu.matmul %198, %16, %cst_78 {dimension_numbers = #tpu.dot_dimension_numbers<[1], [0], [0], [1], [0, 0, 1, 1], [], []>} : vector<16x128xf32>, vector<128x512xf32>, vector<16x512xf32> -> vector<16x512xf32>
    %203 = arith.addf %201, %202 : vector<16x512xf32>
    %204 = vector.extract_strided_slice %203 {offsets = [0, 0], sizes = [16, 128], strides = [1, 1]} : vector<16x512xf32> to vector<16x128xf32>
    %cst_79 = arith.constant 5.000000e-01 : f32
    %205 = vector.broadcast %cst_79 : f32 to vector<16x128xf32>
    %206 = arith.mulf %205, %204 : vector<16x128xf32>
    %207 = math.tanh %206 : vector<16x128xf32>
    %cst_80 = arith.constant 5.000000e-01 : f32
    %208 = vector.broadcast %cst_80 : f32 to vector<16x128xf32>
    %209 = arith.mulf %208, %207 : vector<16x128xf32>
    %cst_81 = arith.constant 5.000000e-01 : f32
    %210 = vector.broadcast %cst_81 : f32 to vector<16x128xf32>
    %211 = arith.addf %209, %210 : vector<16x128xf32>
    %212 = vector.extract_strided_slice %203 {offsets = [0, 128], sizes = [16, 128], strides = [1, 1]} : vector<16x512xf32> to vector<16x128xf32>
    %cst_82 = arith.constant 5.000000e-01 : f32
    %213 = vector.broadcast %cst_82 : f32 to vector<16x128xf32>
    %214 = arith.mulf %213, %212 : vector<16x128xf32>
    %215 = math.tanh %214 : vector<16x128xf32>
    %cst_83 = arith.constant 5.000000e-01 : f32
    %216 = vector.broadcast %cst_83 : f32 to vector<16x128xf32>
    %217 = arith.mulf %216, %215 : vector<16x128xf32>
    %cst_84 = arith.constant 5.000000e-01 : f32
    %218 = vector.broadcast %cst_84 : f32 to vector<16x128xf32>
    %219 = arith.addf %217, %218 : vector<16x128xf32>
    %220 = vector.extract_strided_slice %203 {offsets = [0, 256], sizes = [16, 128], strides = [1, 1]} : vector<16x512xf32> to vector<16x128xf32>
    %221 = math.tanh %220 : vector<16x128xf32>
    %222 = vector.extract_strided_slice %203 {offsets = [0, 384], sizes = [16, 128], strides = [1, 1]} : vector<16x512xf32> to vector<16x128xf32>
    %cst_85 = arith.constant 5.000000e-01 : f32
    %223 = vector.broadcast %cst_85 : f32 to vector<16x128xf32>
    %224 = arith.mulf %223, %222 : vector<16x128xf32>
    %225 = math.tanh %224 : vector<16x128xf32>
    %cst_86 = arith.constant 5.000000e-01 : f32
    %226 = vector.broadcast %cst_86 : f32 to vector<16x128xf32>
    %227 = arith.mulf %226, %225 : vector<16x128xf32>
    %cst_87 = arith.constant 5.000000e-01 : f32
    %228 = vector.broadcast %cst_87 : f32 to vector<16x128xf32>
    %229 = arith.addf %227, %228 : vector<16x128xf32>
    %230 = arith.mulf %219, %196 : vector<16x128xf32>
    %231 = arith.mulf %211, %221 : vector<16x128xf32>
    %232 = arith.addf %230, %231 : vector<16x128xf32>
    %233 = math.tanh %232 : vector<16x128xf32>
    %234 = arith.mulf %229, %233 : vector<16x128xf32>
    %c6_i32 = arith.constant 6 : i32
    %235 = arith.index_cast %c6_i32 : i32 to index
    %c0_88 = arith.constant 0 : index
    %c0_89 = arith.constant 0 : index
    %236 = vector.load %arg9[%235, %c0_88, %c0_89] : memref<16x16x512xf32, #tpu.memory_space<vmem>>, vector<1x16x512xf32>
    %237 = vector.shape_cast %236 : vector<1x16x512xf32> to vector<16x512xf32>
    %cst_90 = arith.constant dense<0.000000e+00> : vector<16x512xf32>
    %238 = tpu.matmul %234, %16, %cst_90 {dimension_numbers = #tpu.dot_dimension_numbers<[1], [0], [0], [1], [0, 0, 1, 1], [], []>} : vector<16x128xf32>, vector<128x512xf32>, vector<16x512xf32> -> vector<16x512xf32>
    %239 = arith.addf %237, %238 : vector<16x512xf32>
    %240 = vector.extract_strided_slice %239 {offsets = [0, 0], sizes = [16, 128], strides = [1, 1]} : vector<16x512xf32> to vector<16x128xf32>
    %cst_91 = arith.constant 5.000000e-01 : f32
    %241 = vector.broadcast %cst_91 : f32 to vector<16x128xf32>
    %242 = arith.mulf %241, %240 : vector<16x128xf32>
    %243 = math.tanh %242 : vector<16x128xf32>
    %cst_92 = arith.constant 5.000000e-01 : f32
    %244 = vector.broadcast %cst_92 : f32 to vector<16x128xf32>
    %245 = arith.mulf %244, %243 : vector<16x128xf32>
    %cst_93 = arith.constant 5.000000e-01 : f32
    %246 = vector.broadcast %cst_93 : f32 to vector<16x128xf32>
    %247 = arith.addf %245, %246 : vector<16x128xf32>
    %248 = vector.extract_strided_slice %239 {offsets = [0, 128], sizes = [16, 128], strides = [1, 1]} : vector<16x512xf32> to vector<16x128xf32>
    %cst_94 = arith.constant 5.000000e-01 : f32
    %249 = vector.broadcast %cst_94 : f32 to vector<16x128xf32>
    %250 = arith.mulf %249, %248 : vector<16x128xf32>
    %251 = math.tanh %250 : vector<16x128xf32>
    %cst_95 = arith.constant 5.000000e-01 : f32
    %252 = vector.broadcast %cst_95 : f32 to vector<16x128xf32>
    %253 = arith.mulf %252, %251 : vector<16x128xf32>
    %cst_96 = arith.constant 5.000000e-01 : f32
    %254 = vector.broadcast %cst_96 : f32 to vector<16x128xf32>
    %255 = arith.addf %253, %254 : vector<16x128xf32>
    %256 = vector.extract_strided_slice %239 {offsets = [0, 256], sizes = [16, 128], strides = [1, 1]} : vector<16x512xf32> to vector<16x128xf32>
    %257 = math.tanh %256 : vector<16x128xf32>
    %258 = vector.extract_strided_slice %239 {offsets = [0, 384], sizes = [16, 128], strides = [1, 1]} : vector<16x512xf32> to vector<16x128xf32>
    %cst_97 = arith.constant 5.000000e-01 : f32
    %259 = vector.broadcast %cst_97 : f32 to vector<16x128xf32>
    %260 = arith.mulf %259, %258 : vector<16x128xf32>
    %261 = math.tanh %260 : vector<16x128xf32>
    %cst_98 = arith.constant 5.000000e-01 : f32
    %262 = vector.broadcast %cst_98 : f32 to vector<16x128xf32>
    %263 = arith.mulf %262, %261 : vector<16x128xf32>
    %cst_99 = arith.constant 5.000000e-01 : f32
    %264 = vector.broadcast %cst_99 : f32 to vector<16x128xf32>
    %265 = arith.addf %263, %264 : vector<16x128xf32>
    %266 = arith.mulf %255, %232 : vector<16x128xf32>
    %267 = arith.mulf %247, %257 : vector<16x128xf32>
    %268 = arith.addf %266, %267 : vector<16x128xf32>
    %269 = math.tanh %268 : vector<16x128xf32>
    %270 = arith.mulf %265, %269 : vector<16x128xf32>
    %c7_i32 = arith.constant 7 : i32
    %271 = arith.index_cast %c7_i32 : i32 to index
    %c0_100 = arith.constant 0 : index
    %c0_101 = arith.constant 0 : index
    %272 = vector.load %arg9[%271, %c0_100, %c0_101] : memref<16x16x512xf32, #tpu.memory_space<vmem>>, vector<1x16x512xf32>
    %273 = vector.shape_cast %272 : vector<1x16x512xf32> to vector<16x512xf32>
    %cst_102 = arith.constant dense<0.000000e+00> : vector<16x512xf32>
    %274 = tpu.matmul %270, %16, %cst_102 {dimension_numbers = #tpu.dot_dimension_numbers<[1], [0], [0], [1], [0, 0, 1, 1], [], []>} : vector<16x128xf32>, vector<128x512xf32>, vector<16x512xf32> -> vector<16x512xf32>
    %275 = arith.addf %273, %274 : vector<16x512xf32>
    %276 = vector.extract_strided_slice %275 {offsets = [0, 0], sizes = [16, 128], strides = [1, 1]} : vector<16x512xf32> to vector<16x128xf32>
    %cst_103 = arith.constant 5.000000e-01 : f32
    %277 = vector.broadcast %cst_103 : f32 to vector<16x128xf32>
    %278 = arith.mulf %277, %276 : vector<16x128xf32>
    %279 = math.tanh %278 : vector<16x128xf32>
    %cst_104 = arith.constant 5.000000e-01 : f32
    %280 = vector.broadcast %cst_104 : f32 to vector<16x128xf32>
    %281 = arith.mulf %280, %279 : vector<16x128xf32>
    %cst_105 = arith.constant 5.000000e-01 : f32
    %282 = vector.broadcast %cst_105 : f32 to vector<16x128xf32>
    %283 = arith.addf %281, %282 : vector<16x128xf32>
    %284 = vector.extract_strided_slice %275 {offsets = [0, 128], sizes = [16, 128], strides = [1, 1]} : vector<16x512xf32> to vector<16x128xf32>
    %cst_106 = arith.constant 5.000000e-01 : f32
    %285 = vector.broadcast %cst_106 : f32 to vector<16x128xf32>
    %286 = arith.mulf %285, %284 : vector<16x128xf32>
    %287 = math.tanh %286 : vector<16x128xf32>
    %cst_107 = arith.constant 5.000000e-01 : f32
    %288 = vector.broadcast %cst_107 : f32 to vector<16x128xf32>
    %289 = arith.mulf %288, %287 : vector<16x128xf32>
    %cst_108 = arith.constant 5.000000e-01 : f32
    %290 = vector.broadcast %cst_108 : f32 to vector<16x128xf32>
    %291 = arith.addf %289, %290 : vector<16x128xf32>
    %292 = vector.extract_strided_slice %275 {offsets = [0, 256], sizes = [16, 128], strides = [1, 1]} : vector<16x512xf32> to vector<16x128xf32>
    %293 = math.tanh %292 : vector<16x128xf32>
    %294 = vector.extract_strided_slice %275 {offsets = [0, 384], sizes = [16, 128], strides = [1, 1]} : vector<16x512xf32> to vector<16x128xf32>
    %cst_109 = arith.constant 5.000000e-01 : f32
    %295 = vector.broadcast %cst_109 : f32 to vector<16x128xf32>
    %296 = arith.mulf %295, %294 : vector<16x128xf32>
    %297 = math.tanh %296 : vector<16x128xf32>
    %cst_110 = arith.constant 5.000000e-01 : f32
    %298 = vector.broadcast %cst_110 : f32 to vector<16x128xf32>
    %299 = arith.mulf %298, %297 : vector<16x128xf32>
    %cst_111 = arith.constant 5.000000e-01 : f32
    %300 = vector.broadcast %cst_111 : f32 to vector<16x128xf32>
    %301 = arith.addf %299, %300 : vector<16x128xf32>
    %302 = arith.mulf %291, %268 : vector<16x128xf32>
    %303 = arith.mulf %283, %293 : vector<16x128xf32>
    %304 = arith.addf %302, %303 : vector<16x128xf32>
    %305 = math.tanh %304 : vector<16x128xf32>
    %306 = arith.mulf %301, %305 : vector<16x128xf32>
    %c8_i32 = arith.constant 8 : i32
    %307 = arith.index_cast %c8_i32 : i32 to index
    %c0_112 = arith.constant 0 : index
    %c0_113 = arith.constant 0 : index
    %308 = vector.load %arg9[%307, %c0_112, %c0_113] : memref<16x16x512xf32, #tpu.memory_space<vmem>>, vector<1x16x512xf32>
    %309 = vector.shape_cast %308 : vector<1x16x512xf32> to vector<16x512xf32>
    %cst_114 = arith.constant dense<0.000000e+00> : vector<16x512xf32>
    %310 = tpu.matmul %306, %16, %cst_114 {dimension_numbers = #tpu.dot_dimension_numbers<[1], [0], [0], [1], [0, 0, 1, 1], [], []>} : vector<16x128xf32>, vector<128x512xf32>, vector<16x512xf32> -> vector<16x512xf32>
    %311 = arith.addf %309, %310 : vector<16x512xf32>
    %312 = vector.extract_strided_slice %311 {offsets = [0, 0], sizes = [16, 128], strides = [1, 1]} : vector<16x512xf32> to vector<16x128xf32>
    %cst_115 = arith.constant 5.000000e-01 : f32
    %313 = vector.broadcast %cst_115 : f32 to vector<16x128xf32>
    %314 = arith.mulf %313, %312 : vector<16x128xf32>
    %315 = math.tanh %314 : vector<16x128xf32>
    %cst_116 = arith.constant 5.000000e-01 : f32
    %316 = vector.broadcast %cst_116 : f32 to vector<16x128xf32>
    %317 = arith.mulf %316, %315 : vector<16x128xf32>
    %cst_117 = arith.constant 5.000000e-01 : f32
    %318 = vector.broadcast %cst_117 : f32 to vector<16x128xf32>
    %319 = arith.addf %317, %318 : vector<16x128xf32>
    %320 = vector.extract_strided_slice %311 {offsets = [0, 128], sizes = [16, 128], strides = [1, 1]} : vector<16x512xf32> to vector<16x128xf32>
    %cst_118 = arith.constant 5.000000e-01 : f32
    %321 = vector.broadcast %cst_118 : f32 to vector<16x128xf32>
    %322 = arith.mulf %321, %320 : vector<16x128xf32>
    %323 = math.tanh %322 : vector<16x128xf32>
    %cst_119 = arith.constant 5.000000e-01 : f32
    %324 = vector.broadcast %cst_119 : f32 to vector<16x128xf32>
    %325 = arith.mulf %324, %323 : vector<16x128xf32>
    %cst_120 = arith.constant 5.000000e-01 : f32
    %326 = vector.broadcast %cst_120 : f32 to vector<16x128xf32>
    %327 = arith.addf %325, %326 : vector<16x128xf32>
    %328 = vector.extract_strided_slice %311 {offsets = [0, 256], sizes = [16, 128], strides = [1, 1]} : vector<16x512xf32> to vector<16x128xf32>
    %329 = math.tanh %328 : vector<16x128xf32>
    %330 = vector.extract_strided_slice %311 {offsets = [0, 384], sizes = [16, 128], strides = [1, 1]} : vector<16x512xf32> to vector<16x128xf32>
    %cst_121 = arith.constant 5.000000e-01 : f32
    %331 = vector.broadcast %cst_121 : f32 to vector<16x128xf32>
    %332 = arith.mulf %331, %330 : vector<16x128xf32>
    %333 = math.tanh %332 : vector<16x128xf32>
    %cst_122 = arith.constant 5.000000e-01 : f32
    %334 = vector.broadcast %cst_122 : f32 to vector<16x128xf32>
    %335 = arith.mulf %334, %333 : vector<16x128xf32>
    %cst_123 = arith.constant 5.000000e-01 : f32
    %336 = vector.broadcast %cst_123 : f32 to vector<16x128xf32>
    %337 = arith.addf %335, %336 : vector<16x128xf32>
    %338 = arith.mulf %327, %304 : vector<16x128xf32>
    %339 = arith.mulf %319, %329 : vector<16x128xf32>
    %340 = arith.addf %338, %339 : vector<16x128xf32>
    %341 = math.tanh %340 : vector<16x128xf32>
    %342 = arith.mulf %337, %341 : vector<16x128xf32>
    %c9_i32 = arith.constant 9 : i32
    %343 = arith.index_cast %c9_i32 : i32 to index
    %c0_124 = arith.constant 0 : index
    %c0_125 = arith.constant 0 : index
    %344 = vector.load %arg9[%343, %c0_124, %c0_125] : memref<16x16x512xf32, #tpu.memory_space<vmem>>, vector<1x16x512xf32>
    %345 = vector.shape_cast %344 : vector<1x16x512xf32> to vector<16x512xf32>
    %cst_126 = arith.constant dense<0.000000e+00> : vector<16x512xf32>
    %346 = tpu.matmul %342, %16, %cst_126 {dimension_numbers = #tpu.dot_dimension_numbers<[1], [0], [0], [1], [0, 0, 1, 1], [], []>} : vector<16x128xf32>, vector<128x512xf32>, vector<16x512xf32> -> vector<16x512xf32>
    %347 = arith.addf %345, %346 : vector<16x512xf32>
    %348 = vector.extract_strided_slice %347 {offsets = [0, 0], sizes = [16, 128], strides = [1, 1]} : vector<16x512xf32> to vector<16x128xf32>
    %cst_127 = arith.constant 5.000000e-01 : f32
    %349 = vector.broadcast %cst_127 : f32 to vector<16x128xf32>
    %350 = arith.mulf %349, %348 : vector<16x128xf32>
    %351 = math.tanh %350 : vector<16x128xf32>
    %cst_128 = arith.constant 5.000000e-01 : f32
    %352 = vector.broadcast %cst_128 : f32 to vector<16x128xf32>
    %353 = arith.mulf %352, %351 : vector<16x128xf32>
    %cst_129 = arith.constant 5.000000e-01 : f32
    %354 = vector.broadcast %cst_129 : f32 to vector<16x128xf32>
    %355 = arith.addf %353, %354 : vector<16x128xf32>
    %356 = vector.extract_strided_slice %347 {offsets = [0, 128], sizes = [16, 128], strides = [1, 1]} : vector<16x512xf32> to vector<16x128xf32>
    %cst_130 = arith.constant 5.000000e-01 : f32
    %357 = vector.broadcast %cst_130 : f32 to vector<16x128xf32>
    %358 = arith.mulf %357, %356 : vector<16x128xf32>
    %359 = math.tanh %358 : vector<16x128xf32>
    %cst_131 = arith.constant 5.000000e-01 : f32
    %360 = vector.broadcast %cst_131 : f32 to vector<16x128xf32>
    %361 = arith.mulf %360, %359 : vector<16x128xf32>
    %cst_132 = arith.constant 5.000000e-01 : f32
    %362 = vector.broadcast %cst_132 : f32 to vector<16x128xf32>
    %363 = arith.addf %361, %362 : vector<16x128xf32>
    %364 = vector.extract_strided_slice %347 {offsets = [0, 256], sizes = [16, 128], strides = [1, 1]} : vector<16x512xf32> to vector<16x128xf32>
    %365 = math.tanh %364 : vector<16x128xf32>
    %366 = vector.extract_strided_slice %347 {offsets = [0, 384], sizes = [16, 128], strides = [1, 1]} : vector<16x512xf32> to vector<16x128xf32>
    %cst_133 = arith.constant 5.000000e-01 : f32
    %367 = vector.broadcast %cst_133 : f32 to vector<16x128xf32>
    %368 = arith.mulf %367, %366 : vector<16x128xf32>
    %369 = math.tanh %368 : vector<16x128xf32>
    %cst_134 = arith.constant 5.000000e-01 : f32
    %370 = vector.broadcast %cst_134 : f32 to vector<16x128xf32>
    %371 = arith.mulf %370, %369 : vector<16x128xf32>
    %cst_135 = arith.constant 5.000000e-01 : f32
    %372 = vector.broadcast %cst_135 : f32 to vector<16x128xf32>
    %373 = arith.addf %371, %372 : vector<16x128xf32>
    %374 = arith.mulf %363, %340 : vector<16x128xf32>
    %375 = arith.mulf %355, %365 : vector<16x128xf32>
    %376 = arith.addf %374, %375 : vector<16x128xf32>
    %377 = math.tanh %376 : vector<16x128xf32>
    %378 = arith.mulf %373, %377 : vector<16x128xf32>
    %c10_i32 = arith.constant 10 : i32
    %379 = arith.index_cast %c10_i32 : i32 to index
    %c0_136 = arith.constant 0 : index
    %c0_137 = arith.constant 0 : index
    %380 = vector.load %arg9[%379, %c0_136, %c0_137] : memref<16x16x512xf32, #tpu.memory_space<vmem>>, vector<1x16x512xf32>
    %381 = vector.shape_cast %380 : vector<1x16x512xf32> to vector<16x512xf32>
    %cst_138 = arith.constant dense<0.000000e+00> : vector<16x512xf32>
    %382 = tpu.matmul %378, %16, %cst_138 {dimension_numbers = #tpu.dot_dimension_numbers<[1], [0], [0], [1], [0, 0, 1, 1], [], []>} : vector<16x128xf32>, vector<128x512xf32>, vector<16x512xf32> -> vector<16x512xf32>
    %383 = arith.addf %381, %382 : vector<16x512xf32>
    %384 = vector.extract_strided_slice %383 {offsets = [0, 0], sizes = [16, 128], strides = [1, 1]} : vector<16x512xf32> to vector<16x128xf32>
    %cst_139 = arith.constant 5.000000e-01 : f32
    %385 = vector.broadcast %cst_139 : f32 to vector<16x128xf32>
    %386 = arith.mulf %385, %384 : vector<16x128xf32>
    %387 = math.tanh %386 : vector<16x128xf32>
    %cst_140 = arith.constant 5.000000e-01 : f32
    %388 = vector.broadcast %cst_140 : f32 to vector<16x128xf32>
    %389 = arith.mulf %388, %387 : vector<16x128xf32>
    %cst_141 = arith.constant 5.000000e-01 : f32
    %390 = vector.broadcast %cst_141 : f32 to vector<16x128xf32>
    %391 = arith.addf %389, %390 : vector<16x128xf32>
    %392 = vector.extract_strided_slice %383 {offsets = [0, 128], sizes = [16, 128], strides = [1, 1]} : vector<16x512xf32> to vector<16x128xf32>
    %cst_142 = arith.constant 5.000000e-01 : f32
    %393 = vector.broadcast %cst_142 : f32 to vector<16x128xf32>
    %394 = arith.mulf %393, %392 : vector<16x128xf32>
    %395 = math.tanh %394 : vector<16x128xf32>
    %cst_143 = arith.constant 5.000000e-01 : f32
    %396 = vector.broadcast %cst_143 : f32 to vector<16x128xf32>
    %397 = arith.mulf %396, %395 : vector<16x128xf32>
    %cst_144 = arith.constant 5.000000e-01 : f32
    %398 = vector.broadcast %cst_144 : f32 to vector<16x128xf32>
    %399 = arith.addf %397, %398 : vector<16x128xf32>
    %400 = vector.extract_strided_slice %383 {offsets = [0, 256], sizes = [16, 128], strides = [1, 1]} : vector<16x512xf32> to vector<16x128xf32>
    %401 = math.tanh %400 : vector<16x128xf32>
    %402 = vector.extract_strided_slice %383 {offsets = [0, 384], sizes = [16, 128], strides = [1, 1]} : vector<16x512xf32> to vector<16x128xf32>
    %cst_145 = arith.constant 5.000000e-01 : f32
    %403 = vector.broadcast %cst_145 : f32 to vector<16x128xf32>
    %404 = arith.mulf %403, %402 : vector<16x128xf32>
    %405 = math.tanh %404 : vector<16x128xf32>
    %cst_146 = arith.constant 5.000000e-01 : f32
    %406 = vector.broadcast %cst_146 : f32 to vector<16x128xf32>
    %407 = arith.mulf %406, %405 : vector<16x128xf32>
    %cst_147 = arith.constant 5.000000e-01 : f32
    %408 = vector.broadcast %cst_147 : f32 to vector<16x128xf32>
    %409 = arith.addf %407, %408 : vector<16x128xf32>
    %410 = arith.mulf %399, %376 : vector<16x128xf32>
    %411 = arith.mulf %391, %401 : vector<16x128xf32>
    %412 = arith.addf %410, %411 : vector<16x128xf32>
    %413 = math.tanh %412 : vector<16x128xf32>
    %414 = arith.mulf %409, %413 : vector<16x128xf32>
    %c11_i32 = arith.constant 11 : i32
    %415 = arith.index_cast %c11_i32 : i32 to index
    %c0_148 = arith.constant 0 : index
    %c0_149 = arith.constant 0 : index
    %416 = vector.load %arg9[%415, %c0_148, %c0_149] : memref<16x16x512xf32, #tpu.memory_space<vmem>>, vector<1x16x512xf32>
    %417 = vector.shape_cast %416 : vector<1x16x512xf32> to vector<16x512xf32>
    %cst_150 = arith.constant dense<0.000000e+00> : vector<16x512xf32>
    %418 = tpu.matmul %414, %16, %cst_150 {dimension_numbers = #tpu.dot_dimension_numbers<[1], [0], [0], [1], [0, 0, 1, 1], [], []>} : vector<16x128xf32>, vector<128x512xf32>, vector<16x512xf32> -> vector<16x512xf32>
    %419 = arith.addf %417, %418 : vector<16x512xf32>
    %420 = vector.extract_strided_slice %419 {offsets = [0, 0], sizes = [16, 128], strides = [1, 1]} : vector<16x512xf32> to vector<16x128xf32>
    %cst_151 = arith.constant 5.000000e-01 : f32
    %421 = vector.broadcast %cst_151 : f32 to vector<16x128xf32>
    %422 = arith.mulf %421, %420 : vector<16x128xf32>
    %423 = math.tanh %422 : vector<16x128xf32>
    %cst_152 = arith.constant 5.000000e-01 : f32
    %424 = vector.broadcast %cst_152 : f32 to vector<16x128xf32>
    %425 = arith.mulf %424, %423 : vector<16x128xf32>
    %cst_153 = arith.constant 5.000000e-01 : f32
    %426 = vector.broadcast %cst_153 : f32 to vector<16x128xf32>
    %427 = arith.addf %425, %426 : vector<16x128xf32>
    %428 = vector.extract_strided_slice %419 {offsets = [0, 128], sizes = [16, 128], strides = [1, 1]} : vector<16x512xf32> to vector<16x128xf32>
    %cst_154 = arith.constant 5.000000e-01 : f32
    %429 = vector.broadcast %cst_154 : f32 to vector<16x128xf32>
    %430 = arith.mulf %429, %428 : vector<16x128xf32>
    %431 = math.tanh %430 : vector<16x128xf32>
    %cst_155 = arith.constant 5.000000e-01 : f32
    %432 = vector.broadcast %cst_155 : f32 to vector<16x128xf32>
    %433 = arith.mulf %432, %431 : vector<16x128xf32>
    %cst_156 = arith.constant 5.000000e-01 : f32
    %434 = vector.broadcast %cst_156 : f32 to vector<16x128xf32>
    %435 = arith.addf %433, %434 : vector<16x128xf32>
    %436 = vector.extract_strided_slice %419 {offsets = [0, 256], sizes = [16, 128], strides = [1, 1]} : vector<16x512xf32> to vector<16x128xf32>
    %437 = math.tanh %436 : vector<16x128xf32>
    %438 = vector.extract_strided_slice %419 {offsets = [0, 384], sizes = [16, 128], strides = [1, 1]} : vector<16x512xf32> to vector<16x128xf32>
    %cst_157 = arith.constant 5.000000e-01 : f32
    %439 = vector.broadcast %cst_157 : f32 to vector<16x128xf32>
    %440 = arith.mulf %439, %438 : vector<16x128xf32>
    %441 = math.tanh %440 : vector<16x128xf32>
    %cst_158 = arith.constant 5.000000e-01 : f32
    %442 = vector.broadcast %cst_158 : f32 to vector<16x128xf32>
    %443 = arith.mulf %442, %441 : vector<16x128xf32>
    %cst_159 = arith.constant 5.000000e-01 : f32
    %444 = vector.broadcast %cst_159 : f32 to vector<16x128xf32>
    %445 = arith.addf %443, %444 : vector<16x128xf32>
    %446 = arith.mulf %435, %412 : vector<16x128xf32>
    %447 = arith.mulf %427, %437 : vector<16x128xf32>
    %448 = arith.addf %446, %447 : vector<16x128xf32>
    %449 = math.tanh %448 : vector<16x128xf32>
    %450 = arith.mulf %445, %449 : vector<16x128xf32>
    %c12_i32 = arith.constant 12 : i32
    %451 = arith.index_cast %c12_i32 : i32 to index
    %c0_160 = arith.constant 0 : index
    %c0_161 = arith.constant 0 : index
    %452 = vector.load %arg9[%451, %c0_160, %c0_161] : memref<16x16x512xf32, #tpu.memory_space<vmem>>, vector<1x16x512xf32>
    %453 = vector.shape_cast %452 : vector<1x16x512xf32> to vector<16x512xf32>
    %cst_162 = arith.constant dense<0.000000e+00> : vector<16x512xf32>
    %454 = tpu.matmul %450, %16, %cst_162 {dimension_numbers = #tpu.dot_dimension_numbers<[1], [0], [0], [1], [0, 0, 1, 1], [], []>} : vector<16x128xf32>, vector<128x512xf32>, vector<16x512xf32> -> vector<16x512xf32>
    %455 = arith.addf %453, %454 : vector<16x512xf32>
    %456 = vector.extract_strided_slice %455 {offsets = [0, 0], sizes = [16, 128], strides = [1, 1]} : vector<16x512xf32> to vector<16x128xf32>
    %cst_163 = arith.constant 5.000000e-01 : f32
    %457 = vector.broadcast %cst_163 : f32 to vector<16x128xf32>
    %458 = arith.mulf %457, %456 : vector<16x128xf32>
    %459 = math.tanh %458 : vector<16x128xf32>
    %cst_164 = arith.constant 5.000000e-01 : f32
    %460 = vector.broadcast %cst_164 : f32 to vector<16x128xf32>
    %461 = arith.mulf %460, %459 : vector<16x128xf32>
    %cst_165 = arith.constant 5.000000e-01 : f32
    %462 = vector.broadcast %cst_165 : f32 to vector<16x128xf32>
    %463 = arith.addf %461, %462 : vector<16x128xf32>
    %464 = vector.extract_strided_slice %455 {offsets = [0, 128], sizes = [16, 128], strides = [1, 1]} : vector<16x512xf32> to vector<16x128xf32>
    %cst_166 = arith.constant 5.000000e-01 : f32
    %465 = vector.broadcast %cst_166 : f32 to vector<16x128xf32>
    %466 = arith.mulf %465, %464 : vector<16x128xf32>
    %467 = math.tanh %466 : vector<16x128xf32>
    %cst_167 = arith.constant 5.000000e-01 : f32
    %468 = vector.broadcast %cst_167 : f32 to vector<16x128xf32>
    %469 = arith.mulf %468, %467 : vector<16x128xf32>
    %cst_168 = arith.constant 5.000000e-01 : f32
    %470 = vector.broadcast %cst_168 : f32 to vector<16x128xf32>
    %471 = arith.addf %469, %470 : vector<16x128xf32>
    %472 = vector.extract_strided_slice %455 {offsets = [0, 256], sizes = [16, 128], strides = [1, 1]} : vector<16x512xf32> to vector<16x128xf32>
    %473 = math.tanh %472 : vector<16x128xf32>
    %474 = vector.extract_strided_slice %455 {offsets = [0, 384], sizes = [16, 128], strides = [1, 1]} : vector<16x512xf32> to vector<16x128xf32>
    %cst_169 = arith.constant 5.000000e-01 : f32
    %475 = vector.broadcast %cst_169 : f32 to vector<16x128xf32>
    %476 = arith.mulf %475, %474 : vector<16x128xf32>
    %477 = math.tanh %476 : vector<16x128xf32>
    %cst_170 = arith.constant 5.000000e-01 : f32
    %478 = vector.broadcast %cst_170 : f32 to vector<16x128xf32>
    %479 = arith.mulf %478, %477 : vector<16x128xf32>
    %cst_171 = arith.constant 5.000000e-01 : f32
    %480 = vector.broadcast %cst_171 : f32 to vector<16x128xf32>
    %481 = arith.addf %479, %480 : vector<16x128xf32>
    %482 = arith.mulf %471, %448 : vector<16x128xf32>
    %483 = arith.mulf %463, %473 : vector<16x128xf32>
    %484 = arith.addf %482, %483 : vector<16x128xf32>
    %485 = math.tanh %484 : vector<16x128xf32>
    %486 = arith.mulf %481, %485 : vector<16x128xf32>
    %c13_i32 = arith.constant 13 : i32
    %487 = arith.index_cast %c13_i32 : i32 to index
    %c0_172 = arith.constant 0 : index
    %c0_173 = arith.constant 0 : index
    %488 = vector.load %arg9[%487, %c0_172, %c0_173] : memref<16x16x512xf32, #tpu.memory_space<vmem>>, vector<1x16x512xf32>
    %489 = vector.shape_cast %488 : vector<1x16x512xf32> to vector<16x512xf32>
    %cst_174 = arith.constant dense<0.000000e+00> : vector<16x512xf32>
    %490 = tpu.matmul %486, %16, %cst_174 {dimension_numbers = #tpu.dot_dimension_numbers<[1], [0], [0], [1], [0, 0, 1, 1], [], []>} : vector<16x128xf32>, vector<128x512xf32>, vector<16x512xf32> -> vector<16x512xf32>
    %491 = arith.addf %489, %490 : vector<16x512xf32>
    %492 = vector.extract_strided_slice %491 {offsets = [0, 0], sizes = [16, 128], strides = [1, 1]} : vector<16x512xf32> to vector<16x128xf32>
    %cst_175 = arith.constant 5.000000e-01 : f32
    %493 = vector.broadcast %cst_175 : f32 to vector<16x128xf32>
    %494 = arith.mulf %493, %492 : vector<16x128xf32>
    %495 = math.tanh %494 : vector<16x128xf32>
    %cst_176 = arith.constant 5.000000e-01 : f32
    %496 = vector.broadcast %cst_176 : f32 to vector<16x128xf32>
    %497 = arith.mulf %496, %495 : vector<16x128xf32>
    %cst_177 = arith.constant 5.000000e-01 : f32
    %498 = vector.broadcast %cst_177 : f32 to vector<16x128xf32>
    %499 = arith.addf %497, %498 : vector<16x128xf32>
    %500 = vector.extract_strided_slice %491 {offsets = [0, 128], sizes = [16, 128], strides = [1, 1]} : vector<16x512xf32> to vector<16x128xf32>
    %cst_178 = arith.constant 5.000000e-01 : f32
    %501 = vector.broadcast %cst_178 : f32 to vector<16x128xf32>
    %502 = arith.mulf %501, %500 : vector<16x128xf32>
    %503 = math.tanh %502 : vector<16x128xf32>
    %cst_179 = arith.constant 5.000000e-01 : f32
    %504 = vector.broadcast %cst_179 : f32 to vector<16x128xf32>
    %505 = arith.mulf %504, %503 : vector<16x128xf32>
    %cst_180 = arith.constant 5.000000e-01 : f32
    %506 = vector.broadcast %cst_180 : f32 to vector<16x128xf32>
    %507 = arith.addf %505, %506 : vector<16x128xf32>
    %508 = vector.extract_strided_slice %491 {offsets = [0, 256], sizes = [16, 128], strides = [1, 1]} : vector<16x512xf32> to vector<16x128xf32>
    %509 = math.tanh %508 : vector<16x128xf32>
    %510 = vector.extract_strided_slice %491 {offsets = [0, 384], sizes = [16, 128], strides = [1, 1]} : vector<16x512xf32> to vector<16x128xf32>
    %cst_181 = arith.constant 5.000000e-01 : f32
    %511 = vector.broadcast %cst_181 : f32 to vector<16x128xf32>
    %512 = arith.mulf %511, %510 : vector<16x128xf32>
    %513 = math.tanh %512 : vector<16x128xf32>
    %cst_182 = arith.constant 5.000000e-01 : f32
    %514 = vector.broadcast %cst_182 : f32 to vector<16x128xf32>
    %515 = arith.mulf %514, %513 : vector<16x128xf32>
    %cst_183 = arith.constant 5.000000e-01 : f32
    %516 = vector.broadcast %cst_183 : f32 to vector<16x128xf32>
    %517 = arith.addf %515, %516 : vector<16x128xf32>
    %518 = arith.mulf %507, %484 : vector<16x128xf32>
    %519 = arith.mulf %499, %509 : vector<16x128xf32>
    %520 = arith.addf %518, %519 : vector<16x128xf32>
    %521 = math.tanh %520 : vector<16x128xf32>
    %522 = arith.mulf %517, %521 : vector<16x128xf32>
    %c14_i32 = arith.constant 14 : i32
    %523 = arith.index_cast %c14_i32 : i32 to index
    %c0_184 = arith.constant 0 : index
    %c0_185 = arith.constant 0 : index
    %524 = vector.load %arg9[%523, %c0_184, %c0_185] : memref<16x16x512xf32, #tpu.memory_space<vmem>>, vector<1x16x512xf32>
    %525 = vector.shape_cast %524 : vector<1x16x512xf32> to vector<16x512xf32>
    %cst_186 = arith.constant dense<0.000000e+00> : vector<16x512xf32>
    %526 = tpu.matmul %522, %16, %cst_186 {dimension_numbers = #tpu.dot_dimension_numbers<[1], [0], [0], [1], [0, 0, 1, 1], [], []>} : vector<16x128xf32>, vector<128x512xf32>, vector<16x512xf32> -> vector<16x512xf32>
    %527 = arith.addf %525, %526 : vector<16x512xf32>
    %528 = vector.extract_strided_slice %527 {offsets = [0, 0], sizes = [16, 128], strides = [1, 1]} : vector<16x512xf32> to vector<16x128xf32>
    %cst_187 = arith.constant 5.000000e-01 : f32
    %529 = vector.broadcast %cst_187 : f32 to vector<16x128xf32>
    %530 = arith.mulf %529, %528 : vector<16x128xf32>
    %531 = math.tanh %530 : vector<16x128xf32>
    %cst_188 = arith.constant 5.000000e-01 : f32
    %532 = vector.broadcast %cst_188 : f32 to vector<16x128xf32>
    %533 = arith.mulf %532, %531 : vector<16x128xf32>
    %cst_189 = arith.constant 5.000000e-01 : f32
    %534 = vector.broadcast %cst_189 : f32 to vector<16x128xf32>
    %535 = arith.addf %533, %534 : vector<16x128xf32>
    %536 = vector.extract_strided_slice %527 {offsets = [0, 128], sizes = [16, 128], strides = [1, 1]} : vector<16x512xf32> to vector<16x128xf32>
    %cst_190 = arith.constant 5.000000e-01 : f32
    %537 = vector.broadcast %cst_190 : f32 to vector<16x128xf32>
    %538 = arith.mulf %537, %536 : vector<16x128xf32>
    %539 = math.tanh %538 : vector<16x128xf32>
    %cst_191 = arith.constant 5.000000e-01 : f32
    %540 = vector.broadcast %cst_191 : f32 to vector<16x128xf32>
    %541 = arith.mulf %540, %539 : vector<16x128xf32>
    %cst_192 = arith.constant 5.000000e-01 : f32
    %542 = vector.broadcast %cst_192 : f32 to vector<16x128xf32>
    %543 = arith.addf %541, %542 : vector<16x128xf32>
    %544 = vector.extract_strided_slice %527 {offsets = [0, 256], sizes = [16, 128], strides = [1, 1]} : vector<16x512xf32> to vector<16x128xf32>
    %545 = math.tanh %544 : vector<16x128xf32>
    %546 = vector.extract_strided_slice %527 {offsets = [0, 384], sizes = [16, 128], strides = [1, 1]} : vector<16x512xf32> to vector<16x128xf32>
    %cst_193 = arith.constant 5.000000e-01 : f32
    %547 = vector.broadcast %cst_193 : f32 to vector<16x128xf32>
    %548 = arith.mulf %547, %546 : vector<16x128xf32>
    %549 = math.tanh %548 : vector<16x128xf32>
    %cst_194 = arith.constant 5.000000e-01 : f32
    %550 = vector.broadcast %cst_194 : f32 to vector<16x128xf32>
    %551 = arith.mulf %550, %549 : vector<16x128xf32>
    %cst_195 = arith.constant 5.000000e-01 : f32
    %552 = vector.broadcast %cst_195 : f32 to vector<16x128xf32>
    %553 = arith.addf %551, %552 : vector<16x128xf32>
    %554 = arith.mulf %543, %520 : vector<16x128xf32>
    %555 = arith.mulf %535, %545 : vector<16x128xf32>
    %556 = arith.addf %554, %555 : vector<16x128xf32>
    %557 = math.tanh %556 : vector<16x128xf32>
    %558 = arith.mulf %553, %557 : vector<16x128xf32>
    %c15_i32 = arith.constant 15 : i32
    %559 = arith.index_cast %c15_i32 : i32 to index
    %c0_196 = arith.constant 0 : index
    %c0_197 = arith.constant 0 : index
    %560 = vector.load %arg9[%559, %c0_196, %c0_197] : memref<16x16x512xf32, #tpu.memory_space<vmem>>, vector<1x16x512xf32>
    %561 = vector.shape_cast %560 : vector<1x16x512xf32> to vector<16x512xf32>
    %cst_198 = arith.constant dense<0.000000e+00> : vector<16x512xf32>
    %562 = tpu.matmul %558, %16, %cst_198 {dimension_numbers = #tpu.dot_dimension_numbers<[1], [0], [0], [1], [0, 0, 1, 1], [], []>} : vector<16x128xf32>, vector<128x512xf32>, vector<16x512xf32> -> vector<16x512xf32>
    %563 = arith.addf %561, %562 : vector<16x512xf32>
    %564 = vector.extract_strided_slice %563 {offsets = [0, 0], sizes = [16, 128], strides = [1, 1]} : vector<16x512xf32> to vector<16x128xf32>
    %cst_199 = arith.constant 5.000000e-01 : f32
    %565 = vector.broadcast %cst_199 : f32 to vector<16x128xf32>
    %566 = arith.mulf %565, %564 : vector<16x128xf32>
    %567 = math.tanh %566 : vector<16x128xf32>
    %cst_200 = arith.constant 5.000000e-01 : f32
    %568 = vector.broadcast %cst_200 : f32 to vector<16x128xf32>
    %569 = arith.mulf %568, %567 : vector<16x128xf32>
    %cst_201 = arith.constant 5.000000e-01 : f32
    %570 = vector.broadcast %cst_201 : f32 to vector<16x128xf32>
    %571 = arith.addf %569, %570 : vector<16x128xf32>
    %572 = vector.extract_strided_slice %563 {offsets = [0, 128], sizes = [16, 128], strides = [1, 1]} : vector<16x512xf32> to vector<16x128xf32>
    %cst_202 = arith.constant 5.000000e-01 : f32
    %573 = vector.broadcast %cst_202 : f32 to vector<16x128xf32>
    %574 = arith.mulf %573, %572 : vector<16x128xf32>
    %575 = math.tanh %574 : vector<16x128xf32>
    %cst_203 = arith.constant 5.000000e-01 : f32
    %576 = vector.broadcast %cst_203 : f32 to vector<16x128xf32>
    %577 = arith.mulf %576, %575 : vector<16x128xf32>
    %cst_204 = arith.constant 5.000000e-01 : f32
    %578 = vector.broadcast %cst_204 : f32 to vector<16x128xf32>
    %579 = arith.addf %577, %578 : vector<16x128xf32>
    %580 = vector.extract_strided_slice %563 {offsets = [0, 256], sizes = [16, 128], strides = [1, 1]} : vector<16x512xf32> to vector<16x128xf32>
    %581 = math.tanh %580 : vector<16x128xf32>
    %582 = vector.extract_strided_slice %563 {offsets = [0, 384], sizes = [16, 128], strides = [1, 1]} : vector<16x512xf32> to vector<16x128xf32>
    %cst_205 = arith.constant 5.000000e-01 : f32
    %583 = vector.broadcast %cst_205 : f32 to vector<16x128xf32>
    %584 = arith.mulf %583, %582 : vector<16x128xf32>
    %585 = math.tanh %584 : vector<16x128xf32>
    %cst_206 = arith.constant 5.000000e-01 : f32
    %586 = vector.broadcast %cst_206 : f32 to vector<16x128xf32>
    %587 = arith.mulf %586, %585 : vector<16x128xf32>
    %cst_207 = arith.constant 5.000000e-01 : f32
    %588 = vector.broadcast %cst_207 : f32 to vector<16x128xf32>
    %589 = arith.addf %587, %588 : vector<16x128xf32>
    %590 = arith.mulf %579, %556 : vector<16x128xf32>
    %591 = arith.mulf %571, %581 : vector<16x128xf32>
    %592 = arith.addf %590, %591 : vector<16x128xf32>
    %593 = math.tanh %592 : vector<16x128xf32>
    %594 = arith.mulf %589, %593 : vector<16x128xf32>
    %c16_i32 = arith.constant 16 : i32
    %c0_208 = arith.constant 0 : index
    %c0_209 = arith.constant 0 : index
    %595 = vector.load %arg6[%c0_208, %c0_209] : memref<1x128xf32, #tpu.memory_space<vmem>>, vector<1x128xf32>
    %596 = vector.broadcast %595 : vector<1x128xf32> to vector<16x128xf32>
    %597 = arith.mulf %594, %596 : vector<16x128xf32>
    %cst_210 = arith.constant dense<0.000000e+00> : vector<16xf32>
    %598 = vector.multi_reduction <add>, %597, %cst_210 [1] : vector<16x128xf32> to vector<16xf32>
    %599 = vector.shape_cast %598 : vector<16xf32> to vector<16x1xf32>
    %c0_211 = arith.constant 0 : index
    %c0_212 = arith.constant 0 : index
    %600 = vector.load %arg7[%c0_211, %c0_212] : memref<1x1xf32, #tpu.memory_space<vmem>>, vector<1x1xf32>
    %601 = vector.broadcast %600 : vector<1x1xf32> to vector<16x1xf32>
    %602 = arith.addf %599, %601 : vector<16x1xf32>
    %c0_213 = arith.constant 0 : index
    %c0_214 = arith.constant 0 : index
    %603 = vector.load %arg8[%c0_213, %c0_214] : memref<16x1xf32, #tpu.memory_space<vmem>>, vector<16x1xf32>
    tpu.vector_store %arg8[%c0_213, %c0_214], %602 {strides = array<i32>} : memref<16x1xf32, #tpu.memory_space<vmem>>, vector<16x1xf32>,
    return
  }
  func.func @transform_0(%arg0: i32) -> (i32, i32, i32) {
    %c0_i32 = arith.constant 0 : i32
    %c0_i32_0 = arith.constant 0 : i32
    %c0_i32_1 = arith.constant 0 : i32
    return %c0_i32, %arg0, %c0_i32_0 : i32, i32, i32
  }
  func.func @transform_1(%arg0: i32) -> (i32, i32) {
    %c0_i32 = arith.constant 0 : i32
    %c0_i32_0 = arith.constant 0 : i32
    %c0_i32_1 = arith.constant 0 : i32
    return %c0_i32, %c0_i32_0 : i32, i32
  }
  func.func @transform_2(%arg0: i32) -> (i32, i32) {
    %c0_i32 = arith.constant 0 : i32
    %c0_i32_0 = arith.constant 0 : i32
    %c0_i32_1 = arith.constant 0 : i32
    return %c0_i32, %c0_i32_0 : i32, i32
  }
  func.func @transform_3(%arg0: i32) -> (i32, i32) {
    %c0_i32 = arith.constant 0 : i32
    %c0_i32_0 = arith.constant 0 : i32
    %c0_i32_1 = arith.constant 0 : i32
    return %c0_i32, %c0_i32_0 : i32, i32
  }
  func.func @transform_4(%arg0: i32) -> (i32, i32) {
    %c0_i32 = arith.constant 0 : i32
    %c0_i32_0 = arith.constant 0 : i32
    %c0_i32_1 = arith.constant 0 : i32
    return %c0_i32, %c0_i32_0 : i32, i32
  }
  func.func @transform_5(%arg0: i32) -> (i32, i32) {
    %c0_i32 = arith.constant 0 : i32
    %c0_i32_0 = arith.constant 0 : i32
    %c0_i32_1 = arith.constant 0 : i32
    return %c0_i32, %c0_i32_0 : i32, i32
  }
  func.func @transform_6(%arg0: i32) -> (i32, i32) {
    %c0_i32 = arith.constant 0 : i32
    %c0_i32_0 = arith.constant 0 : i32
    %c0_i32_1 = arith.constant 0 : i32
    return %c0_i32, %c0_i32_0 : i32, i32
  }
  func.func @transform_7(%arg0: i32) -> (i32, i32) {
    %c0_i32 = arith.constant 0 : i32
    %c0_i32_0 = arith.constant 0 : i32
    return %arg0, %c0_i32 : i32, i32
  }
}

</mosaic_0001>

<llo_original>
// kernel: tpu_custom_call.1
$region0: #{tpu_custom_call.1}
  #allocation0 [shape = 'u32[]', space=smem, size = 0x4, offset = 0x4, fixed_abs, tag = 'smem constant byte address 0x4 - core index']
  #allocation1 [shape = 'u32[144,128]{1,0:T(1,128)}', space=vmem, size = 0x12000, scoped, tag = 'internal scratch']
  #allocation2 [shape = 'f32[16,16,512]{2,1,0:T(8,128)}', space=vmem, size = 0x80000, scoped, tag = 'scratch operand']
  #allocation3 [shape = 'f32[1,1]{1,0:T(1,128)S(1)}', space=vmem, size = 0x200, scoped, tag = 'scoped memory for tpu_custom_call.1']
  %s0 = inlined_call_operand.vmem [shape: s32[16,16,1], index: 0, kind: input, shape index: {}]
  %s1 = inlined_call_operand.vmem [shape: f32[128,128], index: 1, kind: input, shape index: {}]
  %s2 = inlined_call_operand.hbm [shape: f32[128,512], index: 2, kind: input, shape index: {}]
  %s3 = inlined_call_operand.hbm [shape: f32[128,512], index: 3, kind: input, shape index: {}]
  %s4 = inlined_call_operand.vmem [shape: f32[1,512], index: 4, kind: input, shape index: {}]
  %s5 = inlined_call_operand.vmem [shape: f32[1,128], index: 5, kind: input, shape index: {}]
  %s6 = inlined_call_operand.<no memory space> [shape: f32[1,1], index: 6, kind: input, shape index: {}]
  %s7 = inlined_call_operand.vmem [shape: f32[16,1], index: 7, kind: output, shape index: {}]
  %s8 = sld [smem:[#allocation0]]
  $region46: #{tpu_custom_call.1} parent=0
    _
  %s10 = ssub.s32 1, %s8
  %s11 = scalar_select 0, %s10, %s8
  %v12 = vstv %s6
  %13 = vst [vmem:[#allocation3] sm:$0x1] %v12
  $region1: #{tpu_custom_call.1} parent=0
    #allocation4 [shape = 'u8[262144]{0}', space=vmem, size = 0x40000, scoped, tag = 'input window, operand 2, single buffered']
    #allocation5 [shape = 's32[1]{0}', space=sflag, size = 0x4, scoped, tag = 'scoped memory for tpu_custom_call.1']
    #allocation6 [shape = 'u8[262144]{0}', space=vmem, size = 0x40000, scoped, tag = 'input window, operand 3, single buffered']
    #allocation7 [shape = 's32[1]{0}', space=sflag, size = 0x4, scoped, tag = 'scoped memory for tpu_custom_call.1']
    %14 = vsyncpa [#allocation5], 0
    %15 = vsyncpa [#allocation7], 0
    // Predicated region
    $region2: #{tpu_custom_call.1} parent=1 // pred_check
      _
    $region3: #{tpu_custom_call.1} parent=1 // pred_check_branch
      %17 = sbr.rel (0) target = $region5
    $region4: #{tpu_custom_call.1} parent=1 // pred_region
      _
    $region5: #{tpu_custom_call.1} parent=1 // pred_fallthru
      _
    // Predicated region
    $region6: #{tpu_custom_call.1} parent=1 // pred_check
      _
    $region7: #{tpu_custom_call.1} parent=1 // pred_check_branch
      %19 = sbr.rel (0) target = $region9
    $region8: #{tpu_custom_call.1} parent=1 // pred_region
      _
    $region9: #{tpu_custom_call.1} parent=1 // pred_fallthru
      _
    // Predicated region
    $region10: #{tpu_custom_call.1} parent=1 // pred_check
      _
    $region11: #{tpu_custom_call.1} parent=1 // pred_check_branch
      %21 = sbr.rel (0) target = $region13
    $region12: #{tpu_custom_call.1} parent=1 // pred_region
      %s23 = ssub.s32 8192, 8192
      %24 = vsyncadd [#allocation5], %s23
      %s25 = sshll.u32 [#allocation4], 4
      %s26 = int_to_ptr.vmem [resolvable:$true] %s25
      %31 = dma.hbm_to_vmem [thread:$0]  %s2, 8192, %s26, [#allocation5], 512, 512, 32
    $region13: #{tpu_custom_call.1} parent=1 // pred_fallthru
      _
    // Predicated region
    $region14: #{tpu_custom_call.1} parent=1 // pred_check
      _
    $region15: #{tpu_custom_call.1} parent=1 // pred_check_branch
      %33 = sbr.rel (0) target = $region17
    $region16: #{tpu_custom_call.1} parent=1 // pred_region
      %s35 = ssub.s32 8192, 8192
      %36 = vsyncadd [#allocation7], %s35
      %s37 = sshll.u32 [#allocation6], 4
      %s38 = int_to_ptr.vmem [resolvable:$true] %s37
      %43 = dma.hbm_to_vmem [thread:$0]  %s3, 8192, %s38, [#allocation7], 512, 512, 32
    $region17: #{tpu_custom_call.1} parent=1 // pred_fallthru
      _
    // Predicated region
    $region18: #{tpu_custom_call.1} parent=1 // pred_check
      _
    $region19: #{tpu_custom_call.1} parent=1 // pred_check_branch
      %45 = sbr.rel (0) target = $region21
    $region20: #{tpu_custom_call.1} parent=1 // pred_region
      _
    $region21: #{tpu_custom_call.1} parent=1 // pred_fallthru
      _
    // Predicated region
    $region22: #{tpu_custom_call.1} parent=1 // pred_check
      _
    $region23: #{tpu_custom_call.1} parent=1 // pred_check_branch
      %47 = sbr.rel (0) target = $region25
    $region24: #{tpu_custom_call.1} parent=1 // pred_region
      _
    $region25: #{tpu_custom_call.1} parent=1 // pred_fallthru
      _
    // Predicated region
    $region26: #{tpu_custom_call.1} parent=1 // pred_check
      _
    $region27: #{tpu_custom_call.1} parent=1 // pred_check_branch
      %49 = sbr.rel (0) target = $region29
    $region28: #{tpu_custom_call.1} parent=1 // pred_region
      _
    $region29: #{tpu_custom_call.1} parent=1 // pred_fallthru
      _
    // Predicated region
    $region30: #{tpu_custom_call.1} parent=1 // pred_check
      _
    $region31: #{tpu_custom_call.1} parent=1 // pred_check_branch
      %51 = sbr.rel (0) target = $region33
    $region32: #{tpu_custom_call.1} parent=1 // pred_region
      %52 = dma.done [#allocation5], 8192
    $region33: #{tpu_custom_call.1} parent=1 // pred_fallthru
      _
    // Predicated region
    $region34: #{tpu_custom_call.1} parent=1 // pred_check
      _
    $region35: #{tpu_custom_call.1} parent=1 // pred_check_branch
      %54 = sbr.rel (0) target = $region37
    $region36: #{tpu_custom_call.1} parent=1 // pred_region
      %55 = dma.done [#allocation7], 8192
    $region37: #{tpu_custom_call.1} parent=1 // pred_fallthru
      _
    %v56 = vld [vmem:[%s0] sm:$0xff]
    %v57 = vld [vmem:[%s0 + $0x8] sm:$0xff]
    %v58 = vld [vmem:[%s0 + $0x10] sm:$0xff]
    %v59 = vld [vmem:[%s0 + $0x18] sm:$0xff]
    %v60 = vld [vmem:[%s0 + $0x20] sm:$0xff]
    %v61 = vld [vmem:[%s0 + $0x28] sm:$0xff]
    %v62 = vld [vmem:[%s0 + $0x30] sm:$0xff]
    %v63 = vld [vmem:[%s0 + $0x38] sm:$0xff]
    %v64 = vld [vmem:[%s0 + $0x40] sm:$0xff]
    %v65 = vld [vmem:[%s0 + $0x48] sm:$0xff]
    %v66 = vld [vmem:[%s0 + $0x50] sm:$0xff]
    %v67 = vld [vmem:[%s0 + $0x58] sm:$0xff]
    %v68 = vld [vmem:[%s0 + $0x60] sm:$0xff]
    %v69 = vld [vmem:[%s0 + $0x68] sm:$0xff]
    %v70 = vld [vmem:[%s0 + $0x70] sm:$0xff]
    %v71 = vld [vmem:[%s0 + $0x78] sm:$0xff]
    %v72 = vld [vmem:[%s0 + $0x80] sm:$0xff]
    %v73 = vld [vmem:[%s0 + $0x88] sm:$0xff]
    %v74 = vld [vmem:[%s0 + $0x90] sm:$0xff]
    %v75 = vld [vmem:[%s0 + $0x98] sm:$0xff]
    %v76 = vld [vmem:[%s0 + $0xa0] sm:$0xff]
    %v77 = vld [vmem:[%s0 + $0xa8] sm:$0xff]
    %v78 = vld [vmem:[%s0 + $0xb0] sm:$0xff]
    %v79 = vld [vmem:[%s0 + $0xb8] sm:$0xff]
    %v80 = vld [vmem:[%s0 + $0xc0] sm:$0xff]
    %v81 = vld [vmem:[%s0 + $0xc8] sm:$0xff]
    %v82 = vld [vmem:[%s0 + $0xd0] sm:$0xff]
    %v83 = vld [vmem:[%s0 + $0xd8] sm:$0xff]
    %v84 = vld [vmem:[%s0 + $0xe0] sm:$0xff]
    %v85 = vld [vmem:[%s0 + $0xe8] sm:$0xff]
    %v86 = vld [vmem:[%s0 + $0xf0] sm:$0xff]
    %v87 = vld [vmem:[%s0 + $0xf8] sm:$0xff]
    %v88 = vlaneseq
    %v89 = vand.u32 %v88, 127
    %90 = vset.pattern.permute.xlu0 0
    %91 = vperm.xlu0 %90, %v56
    %v92 = vpop.permute.xlu0 %91
    %93 = vset.pattern.permute.xlu0 0
    %94 = vperm.xlu0 %93, %v57
    %v95 = vpop.permute.xlu0 %94
    %96 = vset.pattern.permute.xlu0 0
    %97 = vperm.xlu0 %96, %v58
    %v98 = vpop.permute.xlu0 %97
    %99 = vset.pattern.permute.xlu0 0
    %100 = vperm.xlu0 %99, %v59
    %v101 = vpop.permute.xlu0 %100
    %102 = vset.pattern.permute.xlu0 0
    %103 = vperm.xlu0 %102, %v60
    %v104 = vpop.permute.xlu0 %103
    %105 = vset.pattern.permute.xlu0 0
    %106 = vperm.xlu0 %105, %v61
    %v107 = vpop.permute.xlu0 %106
    %108 = vset.pattern.permute.xlu0 0
    %109 = vperm.xlu0 %108, %v62
    %v110 = vpop.permute.xlu0 %109
    %111 = vset.pattern.permute.xlu0 0
    %112 = vperm.xlu0 %111, %v63
    %v113 = vpop.permute.xlu0 %112
    %114 = vset.pattern.permute.xlu0 0
    %115 = vperm.xlu0 %114, %v64
    %v116 = vpop.permute.xlu0 %115
    %117 = vset.pattern.permute.xlu0 0
    %118 = vperm.xlu0 %117, %v65
    %v119 = vpop.permute.xlu0 %118
    %120 = vset.pattern.permute.xlu0 0
    %121 = vperm.xlu0 %120, %v66
    %v122 = vpop.permute.xlu0 %121
    %123 = vset.pattern.permute.xlu0 0
    %124 = vperm.xlu0 %123, %v67
    %v125 = vpop.permute.xlu0 %124
    %126 = vset.pattern.permute.xlu0 0
    %127 = vperm.xlu0 %126, %v68
    %v128 = vpop.permute.xlu0 %127
    %129 = vset.pattern.permute.xlu0 0
    %130 = vperm.xlu0 %129, %v69
    %v131 = vpop.permute.xlu0 %130
    %132 = vset.pattern.permute.xlu0 0
    %133 = vperm.xlu0 %132, %v70
    %v134 = vpop.permute.xlu0 %133
    %135 = vset.pattern.permute.xlu0 0
    %136 = vperm.xlu0 %135, %v71
    %v137 = vpop.permute.xlu0 %136
    %138 = vset.pattern.permute.xlu0 0
    %139 = vperm.xlu0 %138, %v72
    %v140 = vpop.permute.xlu0 %139
    %141 = vset.pattern.permute.xlu0 0
    %142 = vperm.xlu0 %141, %v73
    %v143 = vpop.permute.xlu0 %142
    %144 = vset.pattern.permute.xlu0 0
    %145 = vperm.xlu0 %144, %v74
    %v146 = vpop.permute.xlu0 %145
    %147 = vset.pattern.permute.xlu0 0
    %148 = vperm.xlu0 %147, %v75
    %v149 = vpop.permute.xlu0 %148
    %150 = vset.pattern.permute.xlu0 0
    %151 = vperm.xlu0 %150, %v76
    %v152 = vpop.permute.xlu0 %151
    %153 = vset.pattern.permute.xlu0 0
    %154 = vperm.xlu0 %153, %v77
    %v155 = vpop.permute.xlu0 %154
    %156 = vset.pattern.permute.xlu0 0
    %157 = vperm.xlu0 %156, %v78
    %v158 = vpop.permute.xlu0 %157
    %159 = vset.pattern.permute.xlu0 0
    %160 = vperm.xlu0 %159, %v79
    %v161 = vpop.permute.xlu0 %160
    %162 = vset.pattern.permute.xlu0 0
    %163 = vperm.xlu0 %162, %v80
    %v164 = vpop.permute.xlu0 %163
    %165 = vset.pattern.permute.xlu0 0
    %166 = vperm.xlu0 %165, %v81
    %v167 = vpop.permute.xlu0 %166
    %168 = vset.pattern.permute.xlu0 0
    %169 = vperm.xlu0 %168, %v82
    %v170 = vpop.permute.xlu0 %169
    %171 = vset.pattern.permute.xlu0 0
    %172 = vperm.xlu0 %171, %v83
    %v173 = vpop.permute.xlu0 %172
    %174 = vset.pattern.permute.xlu0 0
    %175 = vperm.xlu0 %174, %v84
    %v176 = vpop.permute.xlu0 %175
    %177 = vset.pattern.permute.xlu0 0
    %178 = vperm.xlu0 %177, %v85
    %v179 = vpop.permute.xlu0 %178
    %180 = vset.pattern.permute.xlu0 0
    %181 = vperm.xlu0 %180, %v86
    %v182 = vpop.permute.xlu0 %181
    %183 = vset.pattern.permute.xlu0 0
    %184 = vperm.xlu0 %183, %v87
    %v185 = vpop.permute.xlu0 %184
    %vm186 = vcmp.eq.s32.totalorder %v89, %v92
    %vm187 = vcmp.eq.s32.totalorder %v89, %v95
    %vm188 = vcmp.eq.s32.totalorder %v89, %v98
    %vm189 = vcmp.eq.s32.totalorder %v89, %v101
    %vm190 = vcmp.eq.s32.totalorder %v89, %v104
    %vm191 = vcmp.eq.s32.totalorder %v89, %v107
    %vm192 = vcmp.eq.s32.totalorder %v89, %v110
    %vm193 = vcmp.eq.s32.totalorder %v89, %v113
    %vm194 = vcmp.eq.s32.totalorder %v89, %v116
    %vm195 = vcmp.eq.s32.totalorder %v89, %v119
    %vm196 = vcmp.eq.s32.totalorder %v89, %v122
    %vm197 = vcmp.eq.s32.totalorder %v89, %v125
    %vm198 = vcmp.eq.s32.totalorder %v89, %v128
    %vm199 = vcmp.eq.s32.totalorder %v89, %v131
    %vm200 = vcmp.eq.s32.totalorder %v89, %v134
    %vm201 = vcmp.eq.s32.totalorder %v89, %v137
    %vm202 = vcmp.eq.s32.totalorder %v89, %v140
    %vm203 = vcmp.eq.s32.totalorder %v89, %v143
    %vm204 = vcmp.eq.s32.totalorder %v89, %v146
    %vm205 = vcmp.eq.s32.totalorder %v89, %v149
    %vm206 = vcmp.eq.s32.totalorder %v89, %v152
    %vm207 = vcmp.eq.s32.totalorder %v89, %v155
    %vm208 = vcmp.eq.s32.totalorder %v89, %v158
    %vm209 = vcmp.eq.s32.totalorder %v89, %v161
    %vm210 = vcmp.eq.s32.totalorder %v89, %v164
    %vm211 = vcmp.eq.s32.totalorder %v89, %v167
    %vm212 = vcmp.eq.s32.totalorder %v89, %v170
    %vm213 = vcmp.eq.s32.totalorder %v89, %v173
    %vm214 = vcmp.eq.s32.totalorder %v89, %v176
    %vm215 = vcmp.eq.s32.totalorder %v89, %v179
    %vm216 = vcmp.eq.s32.totalorder %v89, %v182
    %vm217 = vcmp.eq.s32.totalorder %v89, %v185
    %v218 = vsel %vm186, 1, 0
    %v219 = vsel %vm187, 1, 0
    %v220 = vsel %vm188, 1, 0
    %v221 = vsel %vm189, 1, 0
    %v222 = vsel %vm190, 1, 0
    %v223 = vsel %vm191, 1, 0
    %v224 = vsel %vm192, 1, 0
    %v225 = vsel %vm193, 1, 0
    %v226 = vsel %vm194, 1, 0
    %v227 = vsel %vm195, 1, 0
    %v228 = vsel %vm196, 1, 0
    %v229 = vsel %vm197, 1, 0
    %v230 = vsel %vm198, 1, 0
    %v231 = vsel %vm199, 1, 0
    %v232 = vsel %vm200, 1, 0
    %v233 = vsel %vm201, 1, 0
    %v234 = vsel %vm202, 1, 0
    %v235 = vsel %vm203, 1, 0
    %v236 = vsel %vm204, 1, 0
    %v237 = vsel %vm205, 1, 0
    %v238 = vsel %vm206, 1, 0
    %v239 = vsel %vm207, 1, 0
    %v240 = vsel %vm208, 1, 0
    %v241 = vsel %vm209, 1, 0
    %v242 = vsel %vm210, 1, 0
    %v243 = vsel %vm211, 1, 0
    %v244 = vsel %vm212, 1, 0
    %v245 = vsel %vm213, 1, 0
    %v246 = vsel %vm214, 1, 0
    %v247 = vsel %vm215, 1, 0
    %v248 = vsel %vm216, 1, 0
    %v249 = vsel %vm217, 1, 0
    %v250 = vcvt.s32.f32 %v218
    %v251 = vcvt.s32.f32 %v219
    %v252 = vcvt.s32.f32 %v220
    %v253 = vcvt.s32.f32 %v221
    %v254 = vcvt.s32.f32 %v222
    %v255 = vcvt.s32.f32 %v223
    %v256 = vcvt.s32.f32 %v224
    %v257 = vcvt.s32.f32 %v225
    %v258 = vcvt.s32.f32 %v226
    %v259 = vcvt.s32.f32 %v227
    %v260 = vcvt.s32.f32 %v228
    %v261 = vcvt.s32.f32 %v229
    %v262 = vcvt.s32.f32 %v230
    %v263 = vcvt.s32.f32 %v231
    %v264 = vcvt.s32.f32 %v232
    %v265 = vcvt.s32.f32 %v233
    %v266 = vcvt.s32.f32 %v234
    %v267 = vcvt.s32.f32 %v235
    %v268 = vcvt.s32.f32 %v236
    %v269 = vcvt.s32.f32 %v237
    %v270 = vcvt.s32.f32 %v238
    %v271 = vcvt.s32.f32 %v239
    %v272 = vcvt.s32.f32 %v240
    %v273 = vcvt.s32.f32 %v241
    %v274 = vcvt.s32.f32 %v242
    %v275 = vcvt.s32.f32 %v243
    %v276 = vcvt.s32.f32 %v244
    %v277 = vcvt.s32.f32 %v245
    %v278 = vcvt.s32.f32 %v246
    %v279 = vcvt.s32.f32 %v247
    %v280 = vcvt.s32.f32 %v248
    %v281 = vcvt.s32.f32 %v249
    %v282 = vld [vmem:[%s1] sm:$0xff]
    %v283 = vld [vmem:[%s1 + $0x8] sm:$0xff]
    %v284 = vld [vmem:[%s1 + $0x10] sm:$0xff]
    %v285 = vld [vmem:[%s1 + $0x18] sm:$0xff]
    %v286 = vld [vmem:[%s1 + $0x20] sm:$0xff]
    %v287 = vld [vmem:[%s1 + $0x28] sm:$0xff]
    %v288 = vld [vmem:[%s1 + $0x30] sm:$0xff]
    %v289 = vld [vmem:[%s1 + $0x38] sm:$0xff]
    %v290 = vld [vmem:[%s1 + $0x40] sm:$0xff]
    %v291 = vld [vmem:[%s1 + $0x48] sm:$0xff]
    %v292 = vld [vmem:[%s1 + $0x50] sm:$0xff]
    %v293 = vld [vmem:[%s1 + $0x58] sm:$0xff]
    %v294 = vld [vmem:[%s1 + $0x60] sm:$0xff]
    %v295 = vld [vmem:[%s1 + $0x68] sm:$0xff]
    %v296 = vld [vmem:[%s1 + $0x70] sm:$0xff]
    %v297 = vld [vmem:[%s1 + $0x78] sm:$0xff]
    %298 = vmatprep.subr.mxu0 0.0
    %299 = vmatpush1.msra.mxu0 %v282
    %300 = vmatprep.subr.mxu0 0.0
    %301 = vmatpush1.msra.mxu0 %v283
    %302 = vmatprep.subr.mxu0 0.0
    %303 = vmatpush1.msra.mxu0 %v284
    %304 = vmatprep.subr.mxu0 0.0
    %305 = vmatpush1.msra.mxu0 %v285
    %306 = vmatprep.subr.mxu0 0.0
    %307 = vmatpush1.msra.mxu0 %v286
    %308 = vmatprep.subr.mxu0 0.0
    %309 = vmatpush1.msra.mxu0 %v287
    %310 = vmatprep.subr.mxu0 0.0
    %311 = vmatpush1.msra.mxu0 %v288
    %312 = vmatprep.subr.mxu0 0.0
    %313 = vmatpush1.msra.mxu0 %v289
    %314 = vmatprep.subr.mxu0 0.0
    %315 = vmatpush1.msra.mxu0 %v290
    %316 = vmatprep.subr.mxu0 0.0
    %317 = vmatpush1.msra.mxu0 %v291
    %318 = vmatprep.subr.mxu0 0.0
    %319 = vmatpush1.msra.mxu0 %v292
    %320 = vmatprep.subr.mxu0 0.0
    %321 = vmatpush1.msra.mxu0 %v293
    %322 = vmatprep.subr.mxu0 0.0
    %323 = vmatpush1.msra.mxu0 %v294
    %324 = vmatprep.subr.mxu0 0.0
    %325 = vmatpush1.msra.mxu0 %v295
    %326 = vmatprep.subr.mxu0 0.0
    %327 = vmatpush1.msra.mxu0 %v296
    %328 = vmatprep.subr.mxu0 0.0
    %329 = vmatpush1.msra.mxu0 %v297
    %330 = vmatprep.subr.mxu0 0.0
    %331 = vmatpush1.msra.mxu0 0.0
    %332 = vmatprep.subr.mxu0 0.0
    %333 = vmatpush1.msra.mxu0 0.0
    %334 = vmatprep.subr.mxu0 0.0
    %335 = vmatpush1.msra.mxu0 0.0
    %336 = vmatprep.subr.mxu0 0.0
    %337 = vmatpush1.msra.mxu0 0.0
    %338 = vmatprep.subr.mxu0 0.0
    %339 = vmatpush1.msra.mxu0 0.0
    %340 = vmatprep.subr.mxu0 0.0
    %341 = vmatpush1.msra.mxu0 0.0
    %342 = vmatprep.subr.mxu0 0.0
    %343 = vmatpush1.msra.mxu0 0.0
    %344 = vmatprep.subr.mxu0 0.0
    %345 = vmatpush1.msra.mxu0 0.0
    %346 = vmatprep.subr.mxu0 0.0
    %347 = vmatpush1.msra.mxu0 0.0
    %348 = vmatprep.subr.mxu0 0.0
    %349 = vmatpush1.msra.mxu0 0.0
    %350 = vmatprep.subr.mxu0 0.0
    %351 = vmatpush1.msra.mxu0 0.0
    %352 = vmatprep.subr.mxu0 0.0
    %353 = vmatpush1.msra.mxu0 0.0
    %354 = vmatprep.subr.mxu0 0.0
    %355 = vmatpush1.msra.mxu0 0.0
    %356 = vmatprep.subr.mxu0 0.0
    %357 = vmatpush1.msra.mxu0 0.0
    %358 = vmatprep.subr.mxu0 0.0
    %359 = vmatpush1.msra.mxu0 0.0
    %360 = vmatprep.subr.mxu0 0.0
    %361 = vmatpush1.msra.mxu0 0.0
    %362 = vmatprep.mubr.f32.mxu0 0.0
    %363 = vmatmul.mubr.f32.gmra.mrb[0].mxu0 %v250
    %v364 = vpop.f32.mrb[0].mxu0
    %v365 = vadd.f32 0.0, %v364
    %v366 = vpop.f32.mrb[0].mxu0
    %367 = vmatprep.mubr.f32.mxu0 0.0
    %368 = vmatmul.mubr.f32.gmra.mrb[0].mxu0 %v251
    %v369 = vpop.f32.mrb[0].mxu0
    %v370 = vadd.f32 0.0, %v369
    %v371 = vpop.f32.mrb[0].mxu0
    %372 = vmatprep.mubr.f32.mxu0 0.0
    %373 = vmatmul.mubr.f32.gmra.mrb[0].mxu0 %v252
    %v374 = vpop.f32.mrb[0].mxu0
    %v375 = vadd.f32 0.0, %v374
    %v376 = vpop.f32.mrb[0].mxu0
    %377 = vmatprep.mubr.f32.mxu0 0.0
    %378 = vmatmul.mubr.f32.gmra.mrb[0].mxu0 %v253
    %v379 = vpop.f32.mrb[0].mxu0
    %v380 = vadd.f32 0.0, %v379
    %v381 = vpop.f32.mrb[0].mxu0
    %382 = vmatprep.mubr.f32.mxu0 0.0
    %383 = vmatmul.mubr.f32.gmra.mrb[0].mxu0 %v254
    %v384 = vpop.f32.mrb[0].mxu0
    %v385 = vadd.f32 0.0, %v384
    %v386 = vpop.f32.mrb[0].mxu0
    %387 = vmatprep.mubr.f32.mxu0 0.0
    %388 = vmatmul.mubr.f32.gmra.mrb[0].mxu0 %v255
    %v389 = vpop.f32.mrb[0].mxu0
    %v390 = vadd.f32 0.0, %v389
    %v391 = vpop.f32.mrb[0].mxu0
    %392 = vmatprep.mubr.f32.mxu0 0.0
    %393 = vmatmul.mubr.f32.gmra.mrb[0].mxu0 %v256
    %v394 = vpop.f32.mrb[0].mxu0
    %v395 = vadd.f32 0.0, %v394
    %v396 = vpop.f32.mrb[0].mxu0
    %397 = vmatprep.mubr.f32.mxu0 0.0
    %398 = vmatmul.mubr.f32.gmra.mrb[0].mxu0 %v257
    %v399 = vpop.f32.mrb[0].mxu0
    %v400 = vadd.f32 0.0, %v399
    %v401 = vpop.f32.mrb[0].mxu0
    %402 = vmatprep.mubr.f32.mxu0 0.0
    %403 = vmatmul.mubr.f32.gmra.mrb[0].mxu0 %v258
    %v404 = vpop.f32.mrb[0].mxu0
    %v405 = vadd.f32 0.0, %v404
    %v406 = vpop.f32.mrb[0].mxu0
    %407 = vmatprep.mubr.f32.mxu0 0.0
    %408 = vmatmul.mubr.f32.gmra.mrb[0].mxu0 %v259
    %v409 = vpop.f32.mrb[0].mxu0
    %v410 = vadd.f32 0.0, %v409
    %v411 = vpop.f32.mrb[0].mxu0
    %412 = vmatprep.mubr.f32.mxu0 0.0
    %413 = vmatmul.mubr.f32.gmra.mrb[0].mxu0 %v260
    %v414 = vpop.f32.mrb[0].mxu0
    %v415 = vadd.f32 0.0, %v414
    %v416 = vpop.f32.mrb[0].mxu0
    %417 = vmatprep.mubr.f32.mxu0 0.0
    %418 = vmatmul.mubr.f32.gmra.mrb[0].mxu0 %v261
    %v419 = vpop.f32.mrb[0].mxu0
    %v420 = vadd.f32 0.0, %v419
    %v421 = vpop.f32.mrb[0].mxu0
    %422 = vmatprep.mubr.f32.mxu0 0.0
    %423 = vmatmul.mubr.f32.gmra.mrb[0].mxu0 %v262
    %v424 = vpop.f32.mrb[0].mxu0
    %v425 = vadd.f32 0.0, %v424
    %v426 = vpop.f32.mrb[0].mxu0
    %427 = vmatprep.mubr.f32.mxu0 0.0
    %428 = vmatmul.mubr.f32.gmra.mrb[0].mxu0 %v263
    %v429 = vpop.f32.mrb[0].mxu0
    %v430 = vadd.f32 0.0, %v429
    %v431 = vpop.f32.mrb[0].mxu0
    %432 = vmatprep.mubr.f32.mxu0 0.0
    %433 = vmatmul.mubr.f32.gmra.mrb[0].mxu0 %v264
    %v434 = vpop.f32.mrb[0].mxu0
    %v435 = vadd.f32 0.0, %v434
    %v436 = vpop.f32.mrb[0].mxu0
    %437 = vmatprep.mubr.f32.mxu0 0.0
    %438 = vmatmul.mubr.f32.gmra.mrb[0].mxu0 %v265
    %v439 = vpop.f32.mrb[0].mxu0
    %v440 = vadd.f32 0.0, %v439
    %v441 = vpop.f32.mrb[0].mxu0
    %442 = vmatprep.mubr.f32.mxu0 0.0
    %443 = vmatmul.mubr.f32.gmra.mrb[0].mxu0 %v266
    %v444 = vpop.f32.mrb[0].mxu0
    %v445 = vadd.f32 0.0, %v444
    %v446 = vpop.f32.mrb[0].mxu0
    %447 = vmatprep.mubr.f32.mxu0 0.0
    %448 = vmatmul.mubr.f32.gmra.mrb[0].mxu0 %v267
    %v449 = vpop.f32.mrb[0].mxu0
    %v450 = vadd.f32 0.0, %v449
    %v451 = vpop.f32.mrb[0].mxu0
    %452 = vmatprep.mubr.f32.mxu0 0.0
    %453 = vmatmul.mubr.f32.gmra.mrb[0].mxu0 %v268
    %v454 = vpop.f32.mrb[0].mxu0
    %v455 = vadd.f32 0.0, %v454
    %v456 = vpop.f32.mrb[0].mxu0
    %457 = vmatprep.mubr.f32.mxu0 0.0
    %458 = vmatmul.mubr.f32.gmra.mrb[0].mxu0 %v269
    %v459 = vpop.f32.mrb[0].mxu0
    %v460 = vadd.f32 0.0, %v459
    %v461 = vpop.f32.mrb[0].mxu0
    %462 = vmatprep.mubr.f32.mxu0 0.0
    %463 = vmatmul.mubr.f32.gmra.mrb[0].mxu0 %v270
    %v464 = vpop.f32.mrb[0].mxu0
    %v465 = vadd.f32 0.0, %v464
    %v466 = vpop.f32.mrb[0].mxu0
    %467 = vmatprep.mubr.f32.mxu0 0.0
    %468 = vmatmul.mubr.f32.gmra.mrb[0].mxu0 %v271
    %v469 = vpop.f32.mrb[0].mxu0
    %v470 = vadd.f32 0.0, %v469
    %v471 = vpop.f32.mrb[0].mxu0
    %472 = vmatprep.mubr.f32.mxu0 0.0
    %473 = vmatmul.mubr.f32.gmra.mrb[0].mxu0 %v272
    %v474 = vpop.f32.mrb[0].mxu0
    %v475 = vadd.f32 0.0, %v474
    %v476 = vpop.f32.mrb[0].mxu0
    %477 = vmatprep.mubr.f32.mxu0 0.0
    %478 = vmatmul.mubr.f32.gmra.mrb[0].mxu0 %v273
    %v479 = vpop.f32.mrb[0].mxu0
    %v480 = vadd.f32 0.0, %v479
    %v481 = vpop.f32.mrb[0].mxu0
    %482 = vmatprep.mubr.f32.mxu0 0.0
    %483 = vmatmul.mubr.f32.gmra.mrb[0].mxu0 %v274
    %v484 = vpop.f32.mrb[0].mxu0
    %v485 = vadd.f32 0.0, %v484
    %v486 = vpop.f32.mrb[0].mxu0
    %487 = vmatprep.mubr.f32.mxu0 0.0
    %488 = vmatmul.mubr.f32.gmra.mrb[0].mxu0 %v275
    %v489 = vpop.f32.mrb[0].mxu0
    %v490 = vadd.f32 0.0, %v489
    %v491 = vpop.f32.mrb[0].mxu0
    %492 = vmatprep.mubr.f32.mxu0 0.0
    %493 = vmatmul.mubr.f32.gmra.mrb[0].mxu0 %v276
    %v494 = vpop.f32.mrb[0].mxu0
    %v495 = vadd.f32 0.0, %v494
    %v496 = vpop.f32.mrb[0].mxu0
    %497 = vmatprep.mubr.f32.mxu0 0.0
    %498 = vmatmul.mubr.f32.gmra.mrb[0].mxu0 %v277
    %v499 = vpop.f32.mrb[0].mxu0
    %v500 = vadd.f32 0.0, %v499
    %v501 = vpop.f32.mrb[0].mxu0
    %502 = vmatprep.mubr.f32.mxu0 0.0
    %503 = vmatmul.mubr.f32.gmra.mrb[0].mxu0 %v278
    %v504 = vpop.f32.mrb[0].mxu0
    %v505 = vadd.f32 0.0, %v504
    %v506 = vpop.f32.mrb[0].mxu0
    %507 = vmatprep.mubr.f32.mxu0 0.0
    %508 = vmatmul.mubr.f32.gmra.mrb[0].mxu0 %v279
    %v509 = vpop.f32.mrb[0].mxu0
    %v510 = vadd.f32 0.0, %v509
    %v511 = vpop.f32.mrb[0].mxu0
    %512 = vmatprep.mubr.f32.mxu0 0.0
    %513 = vmatmul.mubr.f32.gmra.mrb[0].mxu0 %v280
    %v514 = vpop.f32.mrb[0].mxu0
    %v515 = vadd.f32 0.0, %v514
    %v516 = vpop.f32.mrb[0].mxu0
    %517 = vmatprep.mubr.f32.mxu0 0.0
    %518 = vmatmul.mubr.f32.gmra.mrb[0].mxu0 %v281
    %v519 = vpop.f32.mrb[0].mxu0
    %v520 = vadd.f32 0.0, %v519
    %v521 = vpop.f32.mrb[0].mxu0
    %522 = vdwg.mxu0
    %v523 = vld [vmem:[#allocation4] sm:$0xff]
    %v524 = vld [vmem:[#allocation4 + $0x8] sm:$0xff]
    %v525 = vld [vmem:[#allocation4 + $0x10] sm:$0xff]
    %v526 = vld [vmem:[#allocation4 + $0x18] sm:$0xff]
    %v527 = vld [vmem:[#allocation4 + $0x20] sm:$0xff]
    %v528 = vld [vmem:[#allocation4 + $0x28] sm:$0xff]
    %v529 = vld [vmem:[#allocation4 + $0x30] sm:$0xff]
    %v530 = vld [vmem:[#allocation4 + $0x38] sm:$0xff]
    %v531 = vld [vmem:[#allocation4 + $0x40] sm:$0xff]
    %v532 = vld [vmem:[#allocation4 + $0x48] sm:$0xff]
    %v533 = vld [vmem:[#allocation4 + $0x50] sm:$0xff]
    %v534 = vld [vmem:[#allocation4 + $0x58] sm:$0xff]
    %v535 = vld [vmem:[#allocation4 + $0x60] sm:$0xff]
    %v536 = vld [vmem:[#allocation4 + $0x68] sm:$0xff]
    %v537 = vld [vmem:[#allocation4 + $0x70] sm:$0xff]
    %v538 = vld [vmem:[#allocation4 + $0x78] sm:$0xff]
    %v539 = vld [vmem:[#allocation4 + $0x80] sm:$0xff]
    %v540 = vld [vmem:[#allocation4 + $0x88] sm:$0xff]
    %v541 = vld [vmem:[#allocation4 + $0x90] sm:$0xff]
    %v542 = vld [vmem:[#allocation4 + $0x98] sm:$0xff]
    %v543 = vld [vmem:[#allocation4 + $0xa0] sm:$0xff]
    %v544 = vld [vmem:[#allocation4 + $0xa8] sm:$0xff]
    %v545 = vld [vmem:[#allocation4 + $0xb0] sm:$0xff]
    %v546 = vld [vmem:[#allocation4 + $0xb8] sm:$0xff]
    %v547 = vld [vmem:[#allocation4 + $0xc0] sm:$0xff]
    %v548 = vld [vmem:[#allocation4 + $0xc8] sm:$0xff]
    %v549 = vld [vmem:[#allocation4 + $0xd0] sm:$0xff]
    %v550 = vld [vmem:[#allocation4 + $0xd8] sm:$0xff]
    %v551 = vld [vmem:[#allocation4 + $0xe0] sm:$0xff]
    %v552 = vld [vmem:[#allocation4 + $0xe8] sm:$0xff]
    %v553 = vld [vmem:[#allocation4 + $0xf0] sm:$0xff]
    %v554 = vld [vmem:[#allocation4 + $0xf8] sm:$0xff]
    %v555 = vld [vmem:[#allocation4 + $0x100] sm:$0xff]
    %v556 = vld [vmem:[#allocation4 + $0x108] sm:$0xff]
    %v557 = vld [vmem:[#allocation4 + $0x110] sm:$0xff]
    %v558 = vld [vmem:[#allocation4 + $0x118] sm:$0xff]
    %v559 = vld [vmem:[#allocation4 + $0x120] sm:$0xff]
    %v560 = vld [vmem:[#allocation4 + $0x128] sm:$0xff]
    %v561 = vld [vmem:[#allocation4 + $0x130] sm:$0xff]
    %v562 = vld [vmem:[#allocation4 + $0x138] sm:$0xff]
    %v563 = vld [vmem:[#allocation4 + $0x140] sm:$0xff]
    %v564 = vld [vmem:[#allocation4 + $0x148] sm:$0xff]
    %v565 = vld [vmem:[#allocation4 + $0x150] sm:$0xff]
    %v566 = vld [vmem:[#allocation4 + $0x158] sm:$0xff]
    %v567 = vld [vmem:[#allocation4 + $0x160] sm:$0xff]
    %v568 = vld [vmem:[#allocation4 + $0x168] sm:$0xff]
    %v569 = vld [vmem:[#allocation4 + $0x170] sm:$0xff]
    %v570 = vld [vmem:[#allocation4 + $0x178] sm:$0xff]
    %v571 = vld [vmem:[#allocation4 + $0x180] sm:$0xff]
    %v572 = vld [vmem:[#allocation4 + $0x188] sm:$0xff]
    %v573 = vld [vmem:[#allocation4 + $0x190] sm:$0xff]
    %v574 = vld [vmem:[#allocation4 + $0x198] sm:$0xff]
    %v575 = vld [vmem:[#allocation4 + $0x1a0] sm:$0xff]
    %v576 = vld [vmem:[#allocation4 + $0x1a8] sm:$0xff]
    %v577 = vld [vmem:[#allocation4 + $0x1b0] sm:$0xff]
    %v578 = vld [vmem:[#allocation4 + $0x1b8] sm:$0xff]
    %v579 = vld [vmem:[#allocation4 + $0x1c0] sm:$0xff]
    %v580 = vld [vmem:[#allocation4 + $0x1c8] sm:$0xff]
    %v581 = vld [vmem:[#allocation4 + $0x1d0] sm:$0xff]
    %v582 = vld [vmem:[#allocation4 + $0x1d8] sm:$0xff]
    %v583 = vld [vmem:[#allocation4 + $0x1e0] sm:$0xff]
    %v584 = vld [vmem:[#allocation4 + $0x1e8] sm:$0xff]
    %v585 = vld [vmem:[#allocation4 + $0x1f0] sm:$0xff]
    %v586 = vld [vmem:[#allocation4 + $0x1f8] sm:$0xff]
    %v587 = vld [vmem:[%s4] sm:$0xf]
    %v589 = vlaneseq
    %v590 = vshrl.u32 %v589, 7
    %v591 = vsub.s32 0, %v590
    %v592 = vrot.slane %v587, %v591
    %v593 = vlaneseq
    %v594 = vshrl.u32 %v593, 7
    %v595 = vsub.s32 1, %v594
    %v596 = vrot.slane %v587, %v595
    %v597 = vlaneseq
    %v598 = vshrl.u32 %v597, 7
    %v599 = vsub.s32 2, %v598
    %v600 = vrot.slane %v587, %v599
    %v601 = vlaneseq
    %v602 = vshrl.u32 %v601, 7
    %v603 = vsub.s32 3, %v602
    %v604 = vrot.slane %v587, %v603
    %609 = vmatprep.subr.mxu0 %v524
    %610 = vmatpush1.msra.mxu0 %v523
    %611 = vmatprep.subr.mxu0 %v528
    %612 = vmatpush1.msra.mxu0 %v527
    %613 = vmatprep.subr.mxu0 %v532
    %614 = vmatpush1.msra.mxu0 %v531
    %615 = vmatprep.subr.mxu0 %v536
    %616 = vmatpush1.msra.mxu0 %v535
    %617 = vmatprep.subr.mxu0 %v540
    %618 = vmatpush1.msra.mxu0 %v539
    %619 = vmatprep.subr.mxu0 %v544
    %620 = vmatpush1.msra.mxu0 %v543
    %621 = vmatprep.subr.mxu0 %v548
    %622 = vmatpush1.msra.mxu0 %v547
    %623 = vmatprep.subr.mxu0 %v552
    %624 = vmatpush1.msra.mxu0 %v551
    %625 = vmatprep.subr.mxu0 %v556
    %626 = vmatpush1.msra.mxu0 %v555
    %627 = vmatprep.subr.mxu0 %v560
    %628 = vmatpush1.msra.mxu0 %v559
    %629 = vmatprep.subr.mxu0 %v564
    %630 = vmatpush1.msra.mxu0 %v563
    %631 = vmatprep.subr.mxu0 %v568
    %632 = vmatpush1.msra.mxu0 %v567
    %633 = vmatprep.subr.mxu0 %v572
    %634 = vmatpush1.msra.mxu0 %v571
    %635 = vmatprep.subr.mxu0 %v576
    %636 = vmatpush1.msra.mxu0 %v575
    %637 = vmatprep.subr.mxu0 %v580
    %638 = vmatpush1.msra.mxu0 %v579
    %639 = vmatprep.subr.mxu0 %v584
    %640 = vmatpush1.msra.mxu0 %v583
    %641 = vmatprep.subr.mxu0 0.0
    %642 = vmatpush1.msra.mxu0 0.0
    %643 = vmatprep.subr.mxu0 0.0
    %644 = vmatpush1.msra.mxu0 0.0
    %645 = vmatprep.subr.mxu0 0.0
    %646 = vmatpush1.msra.mxu0 0.0
    %647 = vmatprep.subr.mxu0 0.0
    %648 = vmatpush1.msra.mxu0 0.0
    %649 = vmatprep.subr.mxu0 0.0
    %650 = vmatpush1.msra.mxu0 0.0
    %651 = vmatprep.subr.mxu0 0.0
    %652 = vmatpush1.msra.mxu0 0.0
    %653 = vmatprep.subr.mxu0 0.0
    %654 = vmatpush1.msra.mxu0 0.0
    %655 = vmatprep.subr.mxu0 0.0
    %656 = vmatpush1.msra.mxu0 0.0
    %657 = vmatprep.subr.mxu0 0.0
    %658 = vmatpush1.msra.mxu0 0.0
    %659 = vmatprep.subr.mxu0 0.0
    %660 = vmatpush1.msra.mxu0 0.0
    %661 = vmatprep.subr.mxu0 0.0
    %662 = vmatpush1.msra.mxu0 0.0
    %663 = vmatprep.subr.mxu0 0.0
    %664 = vmatpush1.msra.mxu0 0.0
    %665 = vmatprep.subr.mxu0 0.0
    %666 = vmatpush1.msra.mxu0 0.0
    %667 = vmatprep.subr.mxu0 0.0
    %668 = vmatpush1.msra.mxu0 0.0
    %669 = vmatprep.subr.mxu0 0.0
    %670 = vmatpush1.msra.mxu0 0.0
    %671 = vmatprep.subr.mxu0 0.0
    %672 = vmatpush1.msra.mxu0 0.0
    %673 = vmatprep.mubr.f32.mxu0 0.0
    %674 = vmatmul.mubr.f32.gmra.mrb[0].mxu0 %v365
    %v675 = vpop.f32.mrb[0].mxu0
    %v676 = vadd.f32 %v592, %v675
    %v677 = vpop.f32.mrb[0].mxu0
    %v678 = vadd.f32 %v596, %v677
    %679 = vmatprep.mubr.f32.mxu0 0.0
    %680 = vmatmul.mubr.f32.gmra.mrb[0].mxu0 %v370
    %v681 = vpop.f32.mrb[0].mxu0
    %v682 = vadd.f32 %v592, %v681
    %v683 = vpop.f32.mrb[0].mxu0
    %v684 = vadd.f32 %v596, %v683
    %685 = vmatprep.mubr.f32.mxu0 0.0
    %686 = vmatmul.mubr.f32.gmra.mrb[0].mxu0 %v375
    %v687 = vpop.f32.mrb[0].mxu0
    %v688 = vadd.f32 %v592, %v687
    %v689 = vpop.f32.mrb[0].mxu0
    %v690 = vadd.f32 %v596, %v689
    %691 = vmatprep.mubr.f32.mxu0 0.0
    %692 = vmatmul.mubr.f32.gmra.mrb[0].mxu0 %v380
    %v693 = vpop.f32.mrb[0].mxu0
    %v694 = vadd.f32 %v592, %v693
    %v695 = vpop.f32.mrb[0].mxu0
    %v696 = vadd.f32 %v596, %v695
    %697 = vmatprep.mubr.f32.mxu0 0.0
    %698 = vmatmul.mubr.f32.gmra.mrb[0].mxu0 %v385
    %v699 = vpop.f32.mrb[0].mxu0
    %v700 = vadd.f32 %v592, %v699
    %v701 = vpop.f32.mrb[0].mxu0
    %v702 = vadd.f32 %v596, %v701
    %703 = vmatprep.mubr.f32.mxu0 0.0
    %704 = vmatmul.mubr.f32.gmra.mrb[0].mxu0 %v390
    %v705 = vpop.f32.mrb[0].mxu0
    %v706 = vadd.f32 %v592, %v705
    %v707 = vpop.f32.mrb[0].mxu0
    %v708 = vadd.f32 %v596, %v707
    %709 = vmatprep.mubr.f32.mxu0 0.0
    %710 = vmatmul.mubr.f32.gmra.mrb[0].mxu0 %v395
    %v711 = vpop.f32.mrb[0].mxu0
    %v712 = vadd.f32 %v592, %v711
    %v713 = vpop.f32.mrb[0].mxu0
    %v714 = vadd.f32 %v596, %v713
    %715 = vmatprep.mubr.f32.mxu0 0.0
    %716 = vmatmul.mubr.f32.gmra.mrb[0].mxu0 %v400
    %v717 = vpop.f32.mrb[0].mxu0
    %v718 = vadd.f32 %v592, %v717
    %v719 = vpop.f32.mrb[0].mxu0
    %v720 = vadd.f32 %v596, %v719
    %721 = vmatprep.mubr.f32.mxu0 0.0
    %722 = vmatmul.mubr.f32.gmra.mrb[0].mxu0 %v405
    %v723 = vpop.f32.mrb[0].mxu0
    %v724 = vadd.f32 %v592, %v723
    %v725 = vpop.f32.mrb[0].mxu0
    %v726 = vadd.f32 %v596, %v725
    %727 = vmatprep.mubr.f32.mxu0 0.0
    %728 = vmatmul.mubr.f32.gmra.mrb[0].mxu0 %v410
    %v729 = vpop.f32.mrb[0].mxu0
    %v730 = vadd.f32 %v592, %v729
    %v731 = vpop.f32.mrb[0].mxu0
    %v732 = vadd.f32 %v596, %v731
    %733 = vmatprep.mubr.f32.mxu0 0.0
    %734 = vmatmul.mubr.f32.gmra.mrb[0].mxu0 %v415
    %v735 = vpop.f32.mrb[0].mxu0
    %v736 = vadd.f32 %v592, %v735
    %v737 = vpop.f32.mrb[0].mxu0
    %v738 = vadd.f32 %v596, %v737
    %739 = vmatprep.mubr.f32.mxu0 0.0
    %740 = vmatmul.mubr.f32.gmra.mrb[0].mxu0 %v420
    %v741 = vpop.f32.mrb[0].mxu0
    %v742 = vadd.f32 %v592, %v741
    %v743 = vpop.f32.mrb[0].mxu0
    %v744 = vadd.f32 %v596, %v743
    %745 = vmatprep.mubr.f32.mxu0 0.0
    %746 = vmatmul.mubr.f32.gmra.mrb[0].mxu0 %v425
    %v747 = vpop.f32.mrb[0].mxu0
    %v748 = vadd.f32 %v592, %v747
    %v749 = vpop.f32.mrb[0].mxu0
    %v750 = vadd.f32 %v596, %v749
    %751 = vmatprep.mubr.f32.mxu0 0.0
    %752 = vmatmul.mubr.f32.gmra.mrb[0].mxu0 %v430
    %v753 = vpop.f32.mrb[0].mxu0
    %v754 = vadd.f32 %v592, %v753
    %v755 = vpop.f32.mrb[0].mxu0
    %v756 = vadd.f32 %v596, %v755
    %757 = vmatprep.mubr.f32.mxu0 0.0
    %758 = vmatmul.mubr.f32.gmra.mrb[0].mxu0 %v435
    %v759 = vpop.f32.mrb[0].mxu0
    %v760 = vadd.f32 %v592, %v759
    %v761 = vpop.f32.mrb[0].mxu0
    %v762 = vadd.f32 %v596, %v761
    %763 = vmatprep.mubr.f32.mxu0 0.0
    %764 = vmatmul.mubr.f32.gmra.mrb[0].mxu0 %v440
    %v765 = vpop.f32.mrb[0].mxu0
    %v766 = vadd.f32 %v592, %v765
    %v767 = vpop.f32.mrb[0].mxu0
    %v768 = vadd.f32 %v596, %v767
    %769 = vmatprep.mubr.f32.mxu0 0.0
    %770 = vmatmul.mubr.f32.gmra.mrb[0].mxu0 %v445
    %v771 = vpop.f32.mrb[0].mxu0
    %v772 = vadd.f32 %v592, %v771
    %v773 = vpop.f32.mrb[0].mxu0
    %v774 = vadd.f32 %v596, %v773
    %775 = vmatprep.mubr.f32.mxu0 0.0
    %776 = vmatmul.mubr.f32.gmra.mrb[0].mxu0 %v450
    %v777 = vpop.f32.mrb[0].mxu0
    %v778 = vadd.f32 %v592, %v777
    %v779 = vpop.f32.mrb[0].mxu0
    %v780 = vadd.f32 %v596, %v779
    %781 = vmatprep.mubr.f32.mxu0 0.0
    %782 = vmatmul.mubr.f32.gmra.mrb[0].mxu0 %v455
    %v783 = vpop.f32.mrb[0].mxu0
    %v784 = vadd.f32 %v592, %v783
    %v785 = vpop.f32.mrb[0].mxu0
    %v786 = vadd.f32 %v596, %v785
    %787 = vmatprep.mubr.f32.mxu0 0.0
    %788 = vmatmul.mubr.f32.gmra.mrb[0].mxu0 %v460
    %v789 = vpop.f32.mrb[0].mxu0
    %v790 = vadd.f32 %v592, %v789
    %v791 = vpop.f32.mrb[0].mxu0
    %v792 = vadd.f32 %v596, %v791
    %793 = vmatprep.mubr.f32.mxu0 0.0
    %794 = vmatmul.mubr.f32.gmra.mrb[0].mxu0 %v465
    %v795 = vpop.f32.mrb[0].mxu0
    %v796 = vadd.f32 %v592, %v795
    %v797 = vpop.f32.mrb[0].mxu0
    %v798 = vadd.f32 %v596, %v797
    %799 = vmatprep.mubr.f32.mxu0 0.0
    %800 = vmatmul.mubr.f32.gmra.mrb[0].mxu0 %v470
    %v801 = vpop.f32.mrb[0].mxu0
    %v802 = vadd.f32 %v592, %v801
    %v803 = vpop.f32.mrb[0].mxu0
    %v804 = vadd.f32 %v596, %v803
    %805 = vmatprep.mubr.f32.mxu0 0.0
    %806 = vmatmul.mubr.f32.gmra.mrb[0].mxu0 %v475
    %v807 = vpop.f32.mrb[0].mxu0
    %v808 = vadd.f32 %v592, %v807
    %v809 = vpop.f32.mrb[0].mxu0
    %v810 = vadd.f32 %v596, %v809
    %811 = vmatprep.mubr.f32.mxu0 0.0
    %812 = vmatmul.mubr.f32.gmra.mrb[0].mxu0 %v480
    %v813 = vpop.f32.mrb[0].mxu0
    %v814 = vadd.f32 %v592, %v813
    %v815 = vpop.f32.mrb[0].mxu0
    %v816 = vadd.f32 %v596, %v815
    %817 = vmatprep.mubr.f32.mxu0 0.0
    %818 = vmatmul.mubr.f32.gmra.mrb[0].mxu0 %v485
    %v819 = vpop.f32.mrb[0].mxu0
    %v820 = vadd.f32 %v592, %v819
    %v821 = vpop.f32.mrb[0].mxu0
    %v822 = vadd.f32 %v596, %v821
    %823 = vmatprep.mubr.f32.mxu0 0.0
    %824 = vmatmul.mubr.f32.gmra.mrb[0].mxu0 %v490
    %v825 = vpop.f32.mrb[0].mxu0
    %v826 = vadd.f32 %v592, %v825
    %v827 = vpop.f32.mrb[0].mxu0
    %v828 = vadd.f32 %v596, %v827
    %829 = vmatprep.mubr.f32.mxu0 0.0
    %830 = vmatmul.mubr.f32.gmra.mrb[0].mxu0 %v495
    %v831 = vpop.f32.mrb[0].mxu0
    %v832 = vadd.f32 %v592, %v831
    %v833 = vpop.f32.mrb[0].mxu0
    %v834 = vadd.f32 %v596, %v833
    %835 = vmatprep.mubr.f32.mxu0 0.0
    %836 = vmatmul.mubr.f32.gmra.mrb[0].mxu0 %v500
    %v837 = vpop.f32.mrb[0].mxu0
    %v838 = vadd.f32 %v592, %v837
    %v839 = vpop.f32.mrb[0].mxu0
    %v840 = vadd.f32 %v596, %v839
    %841 = vmatprep.mubr.f32.mxu0 0.0
    %842 = vmatmul.mubr.f32.gmra.mrb[0].mxu0 %v505
    %v843 = vpop.f32.mrb[0].mxu0
    %v844 = vadd.f32 %v592, %v843
    %v845 = vpop.f32.mrb[0].mxu0
    %v846 = vadd.f32 %v596, %v845
    %847 = vmatprep.mubr.f32.mxu0 0.0
    %848 = vmatmul.mubr.f32.gmra.mrb[0].mxu0 %v510
    %v849 = vpop.f32.mrb[0].mxu0
    %v850 = vadd.f32 %v592, %v849
    %v851 = vpop.f32.mrb[0].mxu0
    %v852 = vadd.f32 %v596, %v851
    %853 = vmatprep.mubr.f32.mxu0 0.0
    %854 = vmatmul.mubr.f32.gmra.mrb[0].mxu0 %v515
    %v855 = vpop.f32.mrb[0].mxu0
    %v856 = vadd.f32 %v592, %v855
    %v857 = vpop.f32.mrb[0].mxu0
    %v858 = vadd.f32 %v596, %v857
    %859 = vmatprep.mubr.f32.mxu0 0.0
    %860 = vmatmul.mubr.f32.gmra.mrb[0].mxu0 %v520
    %v861 = vpop.f32.mrb[0].mxu0
    %v862 = vadd.f32 %v592, %v861
    %v863 = vpop.f32.mrb[0].mxu0
    %v864 = vadd.f32 %v596, %v863
    %865 = vdwg.mxu0
    %866 = vmatprep.subr.mxu0 %v526
    %867 = vmatpush1.msra.mxu0 %v525
    %868 = vmatprep.subr.mxu0 %v530
    %869 = vmatpush1.msra.mxu0 %v529
    %870 = vmatprep.subr.mxu0 %v534
    %871 = vmatpush1.msra.mxu0 %v533
    %872 = vmatprep.subr.mxu0 %v538
    %873 = vmatpush1.msra.mxu0 %v537
    %874 = vmatprep.subr.mxu0 %v542
    %875 = vmatpush1.msra.mxu0 %v541
    %876 = vmatprep.subr.mxu0 %v546
    %877 = vmatpush1.msra.mxu0 %v545
    %878 = vmatprep.subr.mxu0 %v550
    %879 = vmatpush1.msra.mxu0 %v549
    %880 = vmatprep.subr.mxu0 %v554
    %881 = vmatpush1.msra.mxu0 %v553
    %882 = vmatprep.subr.mxu0 %v558
    %883 = vmatpush1.msra.mxu0 %v557
    %884 = vmatprep.subr.mxu0 %v562
    %885 = vmatpush1.msra.mxu0 %v561
    %886 = vmatprep.subr.mxu0 %v566
    %887 = vmatpush1.msra.mxu0 %v565
    %888 = vmatprep.subr.mxu0 %v570
    %889 = vmatpush1.msra.mxu0 %v569
    %890 = vmatprep.subr.mxu0 %v574
    %891 = vmatpush1.msra.mxu0 %v573
    %892 = vmatprep.subr.mxu0 %v578
    %893 = vmatpush1.msra.mxu0 %v577
    %894 = vmatprep.subr.mxu0 %v582
    %895 = vmatpush1.msra.mxu0 %v581
    %896 = vmatprep.subr.mxu0 %v586
    %897 = vmatpush1.msra.mxu0 %v585
    %898 = vmatprep.subr.mxu0 0.0
    %899 = vmatpush1.msra.mxu0 0.0
    %900 = vmatprep.subr.mxu0 0.0
    %901 = vmatpush1.msra.mxu0 0.0
    %902 = vmatprep.subr.mxu0 0.0
    %903 = vmatpush1.msra.mxu0 0.0
    %904 = vmatprep.subr.mxu0 0.0
    %905 = vmatpush1.msra.mxu0 0.0
    %906 = vmatprep.subr.mxu0 0.0
    %907 = vmatpush1.msra.mxu0 0.0
    %908 = vmatprep.subr.mxu0 0.0
    %909 = vmatpush1.msra.mxu0 0.0
    %910 = vmatprep.subr.mxu0 0.0
    %911 = vmatpush1.msra.mxu0 0.0
    %912 = vmatprep.subr.mxu0 0.0
    %913 = vmatpush1.msra.mxu0 0.0
    %914 = vmatprep.subr.mxu0 0.0
    %915 = vmatpush1.msra.mxu0 0.0
    %916 = vmatprep.subr.mxu0 0.0
    %917 = vmatpush1.msra.mxu0 0.0
    %918 = vmatprep.subr.mxu0 0.0
    %919 = vmatpush1.msra.mxu0 0.0
    %920 = vmatprep.subr.mxu0 0.0
    %921 = vmatpush1.msra.mxu0 0.0
    %922 = vmatprep.subr.mxu0 0.0
    %923 = vmatpush1.msra.mxu0 0.0
    %924 = vmatprep.subr.mxu0 0.0
    %925 = vmatpush1.msra.mxu0 0.0
    %926 = vmatprep.subr.mxu0 0.0
    %927 = vmatpush1.msra.mxu0 0.0
    %928 = vmatprep.subr.mxu0 0.0
    %929 = vmatpush1.msra.mxu0 0.0
    %930 = vmatprep.mubr.f32.mxu0 0.0
    %931 = vmatmul.mubr.f32.gmra.mrb[0].mxu0 %v365
    %v932 = vpop.f32.mrb[0].mxu0
    %v933 = vadd.f32 %v600, %v932
    %v934 = vpop.f32.mrb[0].mxu0
    %v935 = vadd.f32 %v604, %v934
    %936 = vmatprep.mubr.f32.mxu0 0.0
    %937 = vmatmul.mubr.f32.gmra.mrb[0].mxu0 %v370
    %v938 = vpop.f32.mrb[0].mxu0
    %v939 = vadd.f32 %v600, %v938
    %v940 = vpop.f32.mrb[0].mxu0
    %v941 = vadd.f32 %v604, %v940
    %942 = vmatprep.mubr.f32.mxu0 0.0
    %943 = vmatmul.mubr.f32.gmra.mrb[0].mxu0 %v375
    %v944 = vpop.f32.mrb[0].mxu0
    %v945 = vadd.f32 %v600, %v944
    %v946 = vpop.f32.mrb[0].mxu0
    %v947 = vadd.f32 %v604, %v946
    %948 = vmatprep.mubr.f32.mxu0 0.0
    %949 = vmatmul.mubr.f32.gmra.mrb[0].mxu0 %v380
    %v950 = vpop.f32.mrb[0].mxu0
    %v951 = vadd.f32 %v600, %v950
    %v952 = vpop.f32.mrb[0].mxu0
    %v953 = vadd.f32 %v604, %v952
    %954 = vmatprep.mubr.f32.mxu0 0.0
    %955 = vmatmul.mubr.f32.gmra.mrb[0].mxu0 %v385
    %v956 = vpop.f32.mrb[0].mxu0
    %v957 = vadd.f32 %v600, %v956
    %v958 = vpop.f32.mrb[0].mxu0
    %v959 = vadd.f32 %v604, %v958
    %960 = vmatprep.mubr.f32.mxu0 0.0
    %961 = vmatmul.mubr.f32.gmra.mrb[0].mxu0 %v390
    %v962 = vpop.f32.mrb[0].mxu0
    %v963 = vadd.f32 %v600, %v962
    %v964 = vpop.f32.mrb[0].mxu0
    %v965 = vadd.f32 %v604, %v964
    %966 = vmatprep.mubr.f32.mxu0 0.0
    %967 = vmatmul.mubr.f32.gmra.mrb[0].mxu0 %v395
    %v968 = vpop.f32.mrb[0].mxu0
    %v969 = vadd.f32 %v600, %v968
    %v970 = vpop.f32.mrb[0].mxu0
    %v971 = vadd.f32 %v604, %v970
    %972 = vmatprep.mubr.f32.mxu0 0.0
    %973 = vmatmul.mubr.f32.gmra.mrb[0].mxu0 %v400
    %v974 = vpop.f32.mrb[0].mxu0
    %v975 = vadd.f32 %v600, %v974
    %v976 = vpop.f32.mrb[0].mxu0
    %v977 = vadd.f32 %v604, %v976
    %978 = vmatprep.mubr.f32.mxu0 0.0
    %979 = vmatmul.mubr.f32.gmra.mrb[0].mxu0 %v405
    %v980 = vpop.f32.mrb[0].mxu0
    %v981 = vadd.f32 %v600, %v980
    %v982 = vpop.f32.mrb[0].mxu0
    %v983 = vadd.f32 %v604, %v982
    %984 = vmatprep.mubr.f32.mxu0 0.0
    %985 = vmatmul.mubr.f32.gmra.mrb[0].mxu0 %v410
    %v986 = vpop.f32.mrb[0].mxu0
    %v987 = vadd.f32 %v600, %v986
    %v988 = vpop.f32.mrb[0].mxu0
    %v989 = vadd.f32 %v604, %v988
    %990 = vmatprep.mubr.f32.mxu0 0.0
    %991 = vmatmul.mubr.f32.gmra.mrb[0].mxu0 %v415
    %v992 = vpop.f32.mrb[0].mxu0
    %v993 = vadd.f32 %v600, %v992
    %v994 = vpop.f32.mrb[0].mxu0
    %v995 = vadd.f32 %v604, %v994
    %996 = vmatprep.mubr.f32.mxu0 0.0
    %997 = vmatmul.mubr.f32.gmra.mrb[0].mxu0 %v420
    %v998 = vpop.f32.mrb[0].mxu0
    %v999 = vadd.f32 %v600, %v998
    %v1000 = vpop.f32.mrb[0].mxu0
    %v1001 = vadd.f32 %v604, %v1000
    %1002 = vmatprep.mubr.f32.mxu0 0.0
    %1003 = vmatmul.mubr.f32.gmra.mrb[0].mxu0 %v425
    %v1004 = vpop.f32.mrb[0].mxu0
    %v1005 = vadd.f32 %v600, %v1004
    %v1006 = vpop.f32.mrb[0].mxu0
    %v1007 = vadd.f32 %v604, %v1006
    %1008 = vmatprep.mubr.f32.mxu0 0.0
    %1009 = vmatmul.mubr.f32.gmra.mrb[0].mxu0 %v430
    %v1010 = vpop.f32.mrb[0].mxu0
    %v1011 = vadd.f32 %v600, %v1010
    %v1012 = vpop.f32.mrb[0].mxu0
    %v1013 = vadd.f32 %v604, %v1012
    %1014 = vmatprep.mubr.f32.mxu0 0.0
    %1015 = vmatmul.mubr.f32.gmra.mrb[0].mxu0 %v435
    %v1016 = vpop.f32.mrb[0].mxu0
    %v1017 = vadd.f32 %v600, %v1016
    %v1018 = vpop.f32.mrb[0].mxu0
    %v1019 = vadd.f32 %v604, %v1018
    %1020 = vmatprep.mubr.f32.mxu0 0.0
    %1021 = vmatmul.mubr.f32.gmra.mrb[0].mxu0 %v440
    %v1022 = vpop.f32.mrb[0].mxu0
    %v1023 = vadd.f32 %v600, %v1022
    %v1024 = vpop.f32.mrb[0].mxu0
    %v1025 = vadd.f32 %v604, %v1024
    %1026 = vmatprep.mubr.f32.mxu0 0.0
    %1027 = vmatmul.mubr.f32.gmra.mrb[0].mxu0 %v445
    %v1028 = vpop.f32.mrb[0].mxu0
    %v1029 = vadd.f32 %v600, %v1028
    %v1030 = vpop.f32.mrb[0].mxu0
    %v1031 = vadd.f32 %v604, %v1030
    %1032 = vmatprep.mubr.f32.mxu0 0.0
    %1033 = vmatmul.mubr.f32.gmra.mrb[0].mxu0 %v450
    %v1034 = vpop.f32.mrb[0].mxu0
    %v1035 = vadd.f32 %v600, %v1034
    %v1036 = vpop.f32.mrb[0].mxu0
    %v1037 = vadd.f32 %v604, %v1036
    %1038 = vmatprep.mubr.f32.mxu0 0.0
    %1039 = vmatmul.mubr.f32.gmra.mrb[0].mxu0 %v455
    %v1040 = vpop.f32.mrb[0].mxu0
    %v1041 = vadd.f32 %v600, %v1040
    %v1042 = vpop.f32.mrb[0].mxu0
    %v1043 = vadd.f32 %v604, %v1042
    %1044 = vmatprep.mubr.f32.mxu0 0.0
    %1045 = vmatmul.mubr.f32.gmra.mrb[0].mxu0 %v460
    %v1046 = vpop.f32.mrb[0].mxu0
    %v1047 = vadd.f32 %v600, %v1046
    %v1048 = vpop.f32.mrb[0].mxu0
    %v1049 = vadd.f32 %v604, %v1048
    %1050 = vmatprep.mubr.f32.mxu0 0.0
    %1051 = vmatmul.mubr.f32.gmra.mrb[0].mxu0 %v465
    %v1052 = vpop.f32.mrb[0].mxu0
    %v1053 = vadd.f32 %v600, %v1052
    %v1054 = vpop.f32.mrb[0].mxu0
    %v1055 = vadd.f32 %v604, %v1054
    %1056 = vmatprep.mubr.f32.mxu0 0.0
    %1057 = vmatmul.mubr.f32.gmra.mrb[0].mxu0 %v470
    %v1058 = vpop.f32.mrb[0].mxu0
    %v1059 = vadd.f32 %v600, %v1058
    %v1060 = vpop.f32.mrb[0].mxu0
    %v1061 = vadd.f32 %v604, %v1060
    %1062 = vmatprep.mubr.f32.mxu0 0.0
    %1063 = vmatmul.mubr.f32.gmra.mrb[0].mxu0 %v475
    %v1064 = vpop.f32.mrb[0].mxu0
    %v1065 = vadd.f32 %v600, %v1064
    %v1066 = vpop.f32.mrb[0].mxu0
    %v1067 = vadd.f32 %v604, %v1066
    %1068 = vmatprep.mubr.f32.mxu0 0.0
    %1069 = vmatmul.mubr.f32.gmra.mrb[0].mxu0 %v480
    %v1070 = vpop.f32.mrb[0].mxu0
    %v1071 = vadd.f32 %v600, %v1070
    %v1072 = vpop.f32.mrb[0].mxu0
    %v1073 = vadd.f32 %v604, %v1072
    %1074 = vmatprep.mubr.f32.mxu0 0.0
    %1075 = vmatmul.mubr.f32.gmra.mrb[0].mxu0 %v485
    %v1076 = vpop.f32.mrb[0].mxu0
    %v1077 = vadd.f32 %v600, %v1076
    %v1078 = vpop.f32.mrb[0].mxu0
    %v1079 = vadd.f32 %v604, %v1078
    %1080 = vmatprep.mubr.f32.mxu0 0.0
    %1081 = vmatmul.mubr.f32.gmra.mrb[0].mxu0 %v490
    %v1082 = vpop.f32.mrb[0].mxu0
    %v1083 = vadd.f32 %v600, %v1082
    %v1084 = vpop.f32.mrb[0].mxu0
    %v1085 = vadd.f32 %v604, %v1084
    %1086 = vmatprep.mubr.f32.mxu0 0.0
    %1087 = vmatmul.mubr.f32.gmra.mrb[0].mxu0 %v495
    %v1088 = vpop.f32.mrb[0].mxu0
    %v1089 = vadd.f32 %v600, %v1088
    %v1090 = vpop.f32.mrb[0].mxu0
    %v1091 = vadd.f32 %v604, %v1090
    %1092 = vmatprep.mubr.f32.mxu0 0.0
    %1093 = vmatmul.mubr.f32.gmra.mrb[0].mxu0 %v500
    %v1094 = vpop.f32.mrb[0].mxu0
    %v1095 = vadd.f32 %v600, %v1094
    %v1096 = vpop.f32.mrb[0].mxu0
    %v1097 = vadd.f32 %v604, %v1096
    %1098 = vmatprep.mubr.f32.mxu0 0.0
    %1099 = vmatmul.mubr.f32.gmra.mrb[0].mxu0 %v505
    %v1100 = vpop.f32.mrb[0].mxu0
    %v1101 = vadd.f32 %v600, %v1100
    %v1102 = vpop.f32.mrb[0].mxu0
    %v1103 = vadd.f32 %v604, %v1102
    %1104 = vmatprep.mubr.f32.mxu0 0.0
    %1105 = vmatmul.mubr.f32.gmra.mrb[0].mxu0 %v510
    %v1106 = vpop.f32.mrb[0].mxu0
    %v1107 = vadd.f32 %v600, %v1106
    %v1108 = vpop.f32.mrb[0].mxu0
    %v1109 = vadd.f32 %v604, %v1108
    %1110 = vmatprep.mubr.f32.mxu0 0.0
    %1111 = vmatmul.mubr.f32.gmra.mrb[0].mxu0 %v515
    %v1112 = vpop.f32.mrb[0].mxu0
    %v1113 = vadd.f32 %v600, %v1112
    %v1114 = vpop.f32.mrb[0].mxu0
    %v1115 = vadd.f32 %v604, %v1114
    %1116 = vmatprep.mubr.f32.mxu0 0.0
    %1117 = vmatmul.mubr.f32.gmra.mrb[0].mxu0 %v520
    %v1118 = vpop.f32.mrb[0].mxu0
    %v1119 = vadd.f32 %v600, %v1118
    %v1120 = vpop.f32.mrb[0].mxu0
    %v1121 = vadd.f32 %v604, %v1120
    %1122 = vdwg.mxu0
    %1123 = vst [vmem:[#allocation2] sm:$0xff] %v676
    %1124 = vst [vmem:[#allocation2 + $0x8] sm:$0xff] %v678
    %1125 = vst [vmem:[#allocation2 + $0x10] sm:$0xff] %v933
    %1126 = vst [vmem:[#allocation2 + $0x18] sm:$0xff] %v935
    %1127 = vst [vmem:[#allocation2 + $0x20] sm:$0xff] %v682
    %1128 = vst [vmem:[#allocation2 + $0x28] sm:$0xff] %v684
    %1129 = vst [vmem:[#allocation2 + $0x30] sm:$0xff] %v939
    %1130 = vst [vmem:[#allocation2 + $0x38] sm:$0xff] %v941
    %1131 = vst [vmem:[#allocation2 + $0x40] sm:$0xff] %v688
    %1132 = vst [vmem:[#allocation2 + $0x48] sm:$0xff] %v690
    %1133 = vst [vmem:[#allocation2 + $0x50] sm:$0xff] %v945
    %1134 = vst [vmem:[#allocation2 + $0x58] sm:$0xff] %v947
    %1135 = vst [vmem:[#allocation2 + $0x60] sm:$0xff] %v694
    %1136 = vst [vmem:[#allocation2 + $0x68] sm:$0xff] %v696
    %1137 = vst [vmem:[#allocation2 + $0x70] sm:$0xff] %v951
    %1138 = vst [vmem:[#allocation2 + $0x78] sm:$0xff] %v953
    %1139 = vst [vmem:[#allocation2 + $0x80] sm:$0xff] %v700
    %1140 = vst [vmem:[#allocation2 + $0x88] sm:$0xff] %v702
    %1141 = vst [vmem:[#allocation2 + $0x90] sm:$0xff] %v957
    %1142 = vst [vmem:[#allocation2 + $0x98] sm:$0xff] %v959
    %1143 = vst [vmem:[#allocation2 + $0xa0] sm:$0xff] %v706
    %1144 = vst [vmem:[#allocation2 + $0xa8] sm:$0xff] %v708
    %1145 = vst [vmem:[#allocation2 + $0xb0] sm:$0xff] %v963
    %1146 = vst [vmem:[#allocation2 + $0xb8] sm:$0xff] %v965
    %1147 = vst [vmem:[#allocation2 + $0xc0] sm:$0xff] %v712
    %1148 = vst [vmem:[#allocation2 + $0xc8] sm:$0xff] %v714
    %1149 = vst [vmem:[#allocation2 + $0xd0] sm:$0xff] %v969
    %1150 = vst [vmem:[#allocation2 + $0xd8] sm:$0xff] %v971
    %1151 = vst [vmem:[#allocation2 + $0xe0] sm:$0xff] %v718
    %1152 = vst [vmem:[#allocation2 + $0xe8] sm:$0xff] %v720
    %1153 = vst [vmem:[#allocation2 + $0xf0] sm:$0xff] %v975
    %1154 = vst [vmem:[#allocation2 + $0xf8] sm:$0xff] %v977
    %1155 = vst [vmem:[#allocation2 + $0x100] sm:$0xff] %v724
    %1156 = vst [vmem:[#allocation2 + $0x108] sm:$0xff] %v726
    %1157 = vst [vmem:[#allocation2 + $0x110] sm:$0xff] %v981
    %1158 = vst [vmem:[#allocation2 + $0x118] sm:$0xff] %v983
    %1159 = vst [vmem:[#allocation2 + $0x120] sm:$0xff] %v730
    %1160 = vst [vmem:[#allocation2 + $0x128] sm:$0xff] %v732
    %1161 = vst [vmem:[#allocation2 + $0x130] sm:$0xff] %v987
    %1162 = vst [vmem:[#allocation2 + $0x138] sm:$0xff] %v989
    %1163 = vst [vmem:[#allocation2 + $0x140] sm:$0xff] %v736
    %1164 = vst [vmem:[#allocation2 + $0x148] sm:$0xff] %v738
    %1165 = vst [vmem:[#allocation2 + $0x150] sm:$0xff] %v993
    %1166 = vst [vmem:[#allocation2 + $0x158] sm:$0xff] %v995
    %1167 = vst [vmem:[#allocation2 + $0x160] sm:$0xff] %v742
    %1168 = vst [vmem:[#allocation2 + $0x168] sm:$0xff] %v744
    %1169 = vst [vmem:[#allocation2 + $0x170] sm:$0xff] %v999
    %1170 = vst [vmem:[#allocation2 + $0x178] sm:$0xff] %v1001
    %1171 = vst [vmem:[#allocation2 + $0x180] sm:$0xff] %v748
    %1172 = vst [vmem:[#allocation2 + $0x188] sm:$0xff] %v750
    %1173 = vst [vmem:[#allocation2 + $0x190] sm:$0xff] %v1005
    %1174 = vst [vmem:[#allocation2 + $0x198] sm:$0xff] %v1007
    %1175 = vst [vmem:[#allocation2 + $0x1a0] sm:$0xff] %v754
    %1176 = vst [vmem:[#allocation2 + $0x1a8] sm:$0xff] %v756
    %1177 = vst [vmem:[#allocation2 + $0x1b0] sm:$0xff] %v1011
    %1178 = vst [vmem:[#allocation2 + $0x1b8] sm:$0xff] %v1013
    %1179 = vst [vmem:[#allocation2 + $0x1c0] sm:$0xff] %v760
    %1180 = vst [vmem:[#allocation2 + $0x1c8] sm:$0xff] %v762
    %1181 = vst [vmem:[#allocation2 + $0x1d0] sm:$0xff] %v1017
    %1182 = vst [vmem:[#allocation2 + $0x1d8] sm:$0xff] %v1019
    %1183 = vst [vmem:[#allocation2 + $0x1e0] sm:$0xff] %v766
    %1184 = vst [vmem:[#allocation2 + $0x1e8] sm:$0xff] %v768
    %1185 = vst [vmem:[#allocation2 + $0x1f0] sm:$0xff] %v1023
    %1186 = vst [vmem:[#allocation2 + $0x1f8] sm:$0xff] %v1025
    %1187 = vst [vmem:[#allocation2 + $0x200] sm:$0xff] %v772
    %1188 = vst [vmem:[#allocation2 + $0x208] sm:$0xff] %v774
    %1189 = vst [vmem:[#allocation2 + $0x210] sm:$0xff] %v1029
    %1190 = vst [vmem:[#allocation2 + $0x218] sm:$0xff] %v1031
    %1191 = vst [vmem:[#allocation2 + $0x220] sm:$0xff] %v778
    %1192 = vst [vmem:[#allocation2 + $0x228] sm:$0xff] %v780
    %1193 = vst [vmem:[#allocation2 + $0x230] sm:$0xff] %v1035
    %1194 = vst [vmem:[#allocation2 + $0x238] sm:$0xff] %v1037
    %1195 = vst [vmem:[#allocation2 + $0x240] sm:$0xff] %v784
    %1196 = vst [vmem:[#allocation2 + $0x248] sm:$0xff] %v786
    %1197 = vst [vmem:[#allocation2 + $0x250] sm:$0xff] %v1041
    %1198 = vst [vmem:[#allocation2 + $0x258] sm:$0xff] %v1043
    %1199 = vst [vmem:[#allocation2 + $0x260] sm:$0xff] %v790
    %1200 = vst [vmem:[#allocation2 + $0x268] sm:$0xff] %v792
    %1201 = vst [vmem:[#allocation2 + $0x270] sm:$0xff] %v1047
    %1202 = vst [vmem:[#allocation2 + $0x278] sm:$0xff] %v1049
    %1203 = vst [vmem:[#allocation2 + $0x280] sm:$0xff] %v796
    %1204 = vst [vmem:[#allocation2 + $0x288] sm:$0xff] %v798
    %1205 = vst [vmem:[#allocation2 + $0x290] sm:$0xff] %v1053
    %1206 = vst [vmem:[#allocation2 + $0x298] sm:$0xff] %v1055
    %1207 = vst [vmem:[#allocation2 + $0x2a0] sm:$0xff] %v802
    %1208 = vst [vmem:[#allocation2 + $0x2a8] sm:$0xff] %v804
    %1209 = vst [vmem:[#allocation2 + $0x2b0] sm:$0xff] %v1059
    %1210 = vst [vmem:[#allocation2 + $0x2b8] sm:$0xff] %v1061
    %1211 = vst [vmem:[#allocation2 + $0x2c0] sm:$0xff] %v808
    %1212 = vst [vmem:[#allocation2 + $0x2c8] sm:$0xff] %v810
    %1213 = vst [vmem:[#allocation2 + $0x2d0] sm:$0xff] %v1065
    %1214 = vst [vmem:[#allocation2 + $0x2d8] sm:$0xff] %v1067
    %1215 = vst [vmem:[#allocation2 + $0x2e0] sm:$0xff] %v814
    %1216 = vst [vmem:[#allocation2 + $0x2e8] sm:$0xff] %v816
    %1217 = vst [vmem:[#allocation2 + $0x2f0] sm:$0xff] %v1071
    %1218 = vst [vmem:[#allocation2 + $0x2f8] sm:$0xff] %v1073
    %1219 = vst [vmem:[#allocation2 + $0x300] sm:$0xff] %v820
    %1220 = vst [vmem:[#allocation2 + $0x308] sm:$0xff] %v822
    %1221 = vst [vmem:[#allocation2 + $0x310] sm:$0xff] %v1077
    %1222 = vst [vmem:[#allocation2 + $0x318] sm:$0xff] %v1079
    %1223 = vst [vmem:[#allocation2 + $0x320] sm:$0xff] %v826
    %1224 = vst [vmem:[#allocation2 + $0x328] sm:$0xff] %v828
    %1225 = vst [vmem:[#allocation2 + $0x330] sm:$0xff] %v1083
    %1226 = vst [vmem:[#allocation2 + $0x338] sm:$0xff] %v1085
    %1227 = vst [vmem:[#allocation2 + $0x340] sm:$0xff] %v832
    %1228 = vst [vmem:[#allocation2 + $0x348] sm:$0xff] %v834
    %1229 = vst [vmem:[#allocation2 + $0x350] sm:$0xff] %v1089
    %1230 = vst [vmem:[#allocation2 + $0x358] sm:$0xff] %v1091
    %1231 = vst [vmem:[#allocation2 + $0x360] sm:$0xff] %v838
    %1232 = vst [vmem:[#allocation2 + $0x368] sm:$0xff] %v840
    %1233 = vst [vmem:[#allocation2 + $0x370] sm:$0xff] %v1095
    %1234 = vst [vmem:[#allocation2 + $0x378] sm:$0xff] %v1097
    %1235 = vst [vmem:[#allocation2 + $0x380] sm:$0xff] %v844
    %1236 = vst [vmem:[#allocation2 + $0x388] sm:$0xff] %v846
    %1237 = vst [vmem:[#allocation2 + $0x390] sm:$0xff] %v1101
    %1238 = vst [vmem:[#allocation2 + $0x398] sm:$0xff] %v1103
    %1239 = vst [vmem:[#allocation2 + $0x3a0] sm:$0xff] %v850
    %1240 = vst [vmem:[#allocation2 + $0x3a8] sm:$0xff] %v852
    %1241 = vst [vmem:[#allocation2 + $0x3b0] sm:$0xff] %v1107
    %1242 = vst [vmem:[#allocation2 + $0x3b8] sm:$0xff] %v1109
    %1243 = vst [vmem:[#allocation2 + $0x3c0] sm:$0xff] %v856
    %1244 = vst [vmem:[#allocation2 + $0x3c8] sm:$0xff] %v858
    %1245 = vst [vmem:[#allocation2 + $0x3d0] sm:$0xff] %v1113
    %1246 = vst [vmem:[#allocation2 + $0x3d8] sm:$0xff] %v1115
    %1247 = vst [vmem:[#allocation2 + $0x3e0] sm:$0xff] %v862
    %1248 = vst [vmem:[#allocation2 + $0x3e8] sm:$0xff] %v864
    %1249 = vst [vmem:[#allocation2 + $0x3f0] sm:$0xff] %v1119
    %1250 = vst [vmem:[#allocation2 + $0x3f8] sm:$0xff] %v1121
    %v1251 = vld [vmem:[#allocation6] sm:$0xff]
    %v1252 = vld [vmem:[#allocation6 + $0x8] sm:$0xff]
    %v1253 = vld [vmem:[#allocation6 + $0x10] sm:$0xff]
    %v1254 = vld [vmem:[#allocation6 + $0x18] sm:$0xff]
    %v1255 = vld [vmem:[#allocation6 + $0x20] sm:$0xff]
    %v1256 = vld [vmem:[#allocation6 + $0x28] sm:$0xff]
    %v1257 = vld [vmem:[#allocation6 + $0x30] sm:$0xff]
    %v1258 = vld [vmem:[#allocation6 + $0x38] sm:$0xff]
    %v1259 = vld [vmem:[#allocation6 + $0x40] sm:$0xff]
    %v1260 = vld [vmem:[#allocation6 + $0x48] sm:$0xff]
    %v1261 = vld [vmem:[#allocation6 + $0x50] sm:$0xff]
    %v1262 = vld [vmem:[#allocation6 + $0x58] sm:$0xff]
    %v1263 = vld [vmem:[#allocation6 + $0x60] sm:$0xff]
    %v1264 = vld [vmem:[#allocation6 + $0x68] sm:$0xff]
    %v1265 = vld [vmem:[#allocation6 + $0x70] sm:$0xff]
    %v1266 = vld [vmem:[#allocation6 + $0x78] sm:$0xff]
    %v1267 = vld [vmem:[#allocation6 + $0x80] sm:$0xff]
    %v1268 = vld [vmem:[#allocation6 + $0x88] sm:$0xff]
    %v1269 = vld [vmem:[#allocation6 + $0x90] sm:$0xff]
    %v1270 = vld [vmem:[#allocation6 + $0x98] sm:$0xff]
    %v1271 = vld [vmem:[#allocation6 + $0xa0] sm:$0xff]
    %v1272 = vld [vmem:[#allocation6 + $0xa8] sm:$0xff]
    %v1273 = vld [vmem:[#allocation6 + $0xb0] sm:$0xff]
    %v1274 = vld [vmem:[#allocation6 + $0xb8] sm:$0xff]
    %v1275 = vld [vmem:[#allocation6 + $0xc0] sm:$0xff]
    %v1276 = vld [vmem:[#allocation6 + $0xc8] sm:$0xff]
    %v1277 = vld [vmem:[#allocation6 + $0xd0] sm:$0xff]
    %v1278 = vld [vmem:[#allocation6 + $0xd8] sm:$0xff]
    %v1279 = vld [vmem:[#allocation6 + $0xe0] sm:$0xff]
    %v1280 = vld [vmem:[#allocation6 + $0xe8] sm:$0xff]
    %v1281 = vld [vmem:[#allocation6 + $0xf0] sm:$0xff]
    %v1282 = vld [vmem:[#allocation6 + $0xf8] sm:$0xff]
    %v1283 = vld [vmem:[#allocation6 + $0x100] sm:$0xff]
    %v1284 = vld [vmem:[#allocation6 + $0x108] sm:$0xff]
    %v1285 = vld [vmem:[#allocation6 + $0x110] sm:$0xff]
    %v1286 = vld [vmem:[#allocation6 + $0x118] sm:$0xff]
    %v1287 = vld [vmem:[#allocation6 + $0x120] sm:$0xff]
    %v1288 = vld [vmem:[#allocation6 + $0x128] sm:$0xff]
    %v1289 = vld [vmem:[#allocation6 + $0x130] sm:$0xff]
    %v1290 = vld [vmem:[#allocation6 + $0x138] sm:$0xff]
    %v1291 = vld [vmem:[#allocation6 + $0x140] sm:$0xff]
    %v1292 = vld [vmem:[#allocation6 + $0x148] sm:$0xff]
    %v1293 = vld [vmem:[#allocation6 + $0x150] sm:$0xff]
    %v1294 = vld [vmem:[#allocation6 + $0x158] sm:$0xff]
    %v1295 = vld [vmem:[#allocation6 + $0x160] sm:$0xff]
    %v1296 = vld [vmem:[#allocation6 + $0x168] sm:$0xff]
    %v1297 = vld [vmem:[#allocation6 + $0x170] sm:$0xff]
    %v1298 = vld [vmem:[#allocation6 + $0x178] sm:$0xff]
    %v1299 = vld [vmem:[#allocation6 + $0x180] sm:$0xff]
    %v1300 = vld [vmem:[#allocation6 + $0x188] sm:$0xff]
    %v1301 = vld [vmem:[#allocation6 + $0x190] sm:$0xff]
    %v1302 = vld [vmem:[#allocation6 + $0x198] sm:$0xff]
    %v1303 = vld [vmem:[#allocation6 + $0x1a0] sm:$0xff]
    %v1304 = vld [vmem:[#allocation6 + $0x1a8] sm:$0xff]
    %v1305 = vld [vmem:[#allocation6 + $0x1b0] sm:$0xff]
    %v1306 = vld [vmem:[#allocation6 + $0x1b8] sm:$0xff]
    %v1307 = vld [vmem:[#allocation6 + $0x1c0] sm:$0xff]
    %v1308 = vld [vmem:[#allocation6 + $0x1c8] sm:$0xff]
    %v1309 = vld [vmem:[#allocation6 + $0x1d0] sm:$0xff]
    %v1310 = vld [vmem:[#allocation6 + $0x1d8] sm:$0xff]
    %v1311 = vld [vmem:[#allocation6 + $0x1e0] sm:$0xff]
    %v1312 = vld [vmem:[#allocation6 + $0x1e8] sm:$0xff]
    %v1313 = vld [vmem:[#allocation6 + $0x1f0] sm:$0xff]
    %v1314 = vld [vmem:[#allocation6 + $0x1f8] sm:$0xff]
    %v1315 = vld [vmem:[#allocation2] sm:$0xff]
    %v1316 = vld [vmem:[#allocation2 + $0x8] sm:$0xff]
    %v1317 = vld [vmem:[#allocation2 + $0x10] sm:$0xff]
    %v1318 = vld [vmem:[#allocation2 + $0x18] sm:$0xff]
    %v1319 = vld [vmem:[#allocation2 + $0x20] sm:$0xff]
    %v1320 = vld [vmem:[#allocation2 + $0x28] sm:$0xff]
    %v1321 = vld [vmem:[#allocation2 + $0x30] sm:$0xff]
    %v1322 = vld [vmem:[#allocation2 + $0x38] sm:$0xff]
    %1323 = vmatprep.subr.mxu0 %v1252
    %1324 = vmatpush1.msra.mxu0 %v1251
    %1325 = vmatprep.subr.mxu0 %v1256
    %1326 = vmatpush1.msra.mxu0 %v1255
    %1327 = vmatprep.subr.mxu0 %v1260
    %1328 = vmatpush1.msra.mxu0 %v1259
    %1329 = vmatprep.subr.mxu0 %v1264
    %1330 = vmatpush1.msra.mxu0 %v1263
    %1331 = vmatprep.subr.mxu0 %v1268
    %1332 = vmatpush1.msra.mxu0 %v1267
    %1333 = vmatprep.subr.mxu0 %v1272
    %1334 = vmatpush1.msra.mxu0 %v1271
    %1335 = vmatprep.subr.mxu0 %v1276
    %1336 = vmatpush1.msra.mxu0 %v1275
    %1337 = vmatprep.subr.mxu0 %v1280
    %1338 = vmatpush1.msra.mxu0 %v1279
    %1339 = vmatprep.subr.mxu0 %v1284
    %1340 = vmatpush1.msra.mxu0 %v1283
    %1341 = vmatprep.subr.mxu0 %v1288
    %1342 = vmatpush1.msra.mxu0 %v1287
    %1343 = vmatprep.subr.mxu0 %v1292
    %1344 = vmatpush1.msra.mxu0 %v1291
    %1345 = vmatprep.subr.mxu0 %v1296
    %1346 = vmatpush1.msra.mxu0 %v1295
    %1347 = vmatprep.subr.mxu0 %v1300
    %1348 = vmatpush1.msra.mxu0 %v1299
    %1349 = vmatprep.subr.mxu0 %v1304
    %1350 = vmatpush1.msra.mxu0 %v1303
    %1351 = vmatprep.subr.mxu0 %v1308
    %1352 = vmatpush1.msra.mxu0 %v1307
    %1353 = vmatprep.subr.mxu0 %v1312
    %1354 = vmatpush1.msra.mxu0 %v1311
    %1355 = vmatprep.subr.mxu0 0.0
    %1356 = vmatpush1.msra.mxu0 0.0
    %1357 = vmatprep.subr.mxu0 0.0
    %1358 = vmatpush1.msra.mxu0 0.0
    %1359 = vmatprep.subr.mxu0 0.0
    %1360 = vmatpush1.msra.mxu0 0.0
    %1361 = vmatprep.subr.mxu0 0.0
    %1362 = vmatpush1.msra.mxu0 0.0
    %1363 = vmatprep.subr.mxu0 0.0
    %1364 = vmatpush1.msra.mxu0 0.0
    %1365 = vmatprep.subr.mxu0 0.0
    %1366 = vmatpush1.msra.mxu0 0.0
    %1367 = vmatprep.subr.mxu0 0.0
    %1368 = vmatpush1.msra.mxu0 0.0
    %1369 = vmatprep.subr.mxu0 0.0
    %1370 = vmatpush1.msra.mxu0 0.0
    %1371 = vmatprep.subr.mxu0 0.0
    %1372 = vmatpush1.msra.mxu0 0.0
    %1373 = vmatprep.subr.mxu0 0.0
    %1374 = vmatpush1.msra.mxu0 0.0
    %1375 = vmatprep.subr.mxu0 0.0
    %1376 = vmatpush1.msra.mxu0 0.0
    %1377 = vmatprep.subr.mxu0 0.0
    %1378 = vmatpush1.msra.mxu0 0.0
    %1379 = vmatprep.subr.mxu0 0.0
    %1380 = vmatpush1.msra.mxu0 0.0
    %1381 = vmatprep.subr.mxu0 0.0
    %1382 = vmatpush1.msra.mxu0 0.0
    %1383 = vmatprep.subr.mxu0 0.0
    %1384 = vmatpush1.msra.mxu0 0.0
    %1385 = vmatprep.subr.mxu0 0.0
    %1386 = vmatpush1.msra.mxu0 0.0
    %1387 = vmatprep.mubr.f32.mxu0 0.0
    %1388 = vmatmul.mubr.f32.gmra.mrb[0].mxu0 0.0
    %v1389 = vpop.f32.mrb[0].mxu0
    %v1390 = vadd.f32 0.0, %v1389
    %v1391 = vpop.f32.mrb[0].mxu0
    %v1392 = vadd.f32 0.0, %v1391
    %1393 = vmatprep.mubr.f32.mxu0 0.0
    %1394 = vmatmul.mubr.f32.gmra.mrb[0].mxu0 0.0
    %v1395 = vpop.f32.mrb[0].mxu0
    %v1396 = vadd.f32 0.0, %v1395
    %v1397 = vpop.f32.mrb[0].mxu0
    %v1398 = vadd.f32 0.0, %v1397
    %1399 = vdwg.mxu0
    %1400 = vmatprep.subr.mxu0 %v1254
    %1401 = vmatpush1.msra.mxu0 %v1253
    %1402 = vmatprep.subr.mxu0 %v1258
    %1403 = vmatpush1.msra.mxu0 %v1257
    %1404 = vmatprep.subr.mxu0 %v1262
    %1405 = vmatpush1.msra.mxu0 %v1261
    %1406 = vmatprep.subr.mxu0 %v1266
    %1407 = vmatpush1.msra.mxu0 %v1265
    %1408 = vmatprep.subr.mxu0 %v1270
    %1409 = vmatpush1.msra.mxu0 %v1269
    %1410 = vmatprep.subr.mxu0 %v1274
    %1411 = vmatpush1.msra.mxu0 %v1273
    %1412 = vmatprep.subr.mxu0 %v1278
    %1413 = vmatpush1.msra.mxu0 %v1277
    %1414 = vmatprep.subr.mxu0 %v1282
    %1415 = vmatpush1.msra.mxu0 %v1281
    %1416 = vmatprep.subr.mxu0 %v1286
    %1417 = vmatpush1.msra.mxu0 %v1285
    %1418 = vmatprep.subr.mxu0 %v1290
    %1419 = vmatpush1.msra.mxu0 %v1289
    %1420 = vmatprep.subr.mxu0 %v1294
    %1421 = vmatpush1.msra.mxu0 %v1293
    %1422 = vmatprep.subr.mxu0 %v1298
    %1423 = vmatpush1.msra.mxu0 %v1297
    %1424 = vmatprep.subr.mxu0 %v1302
    %1425 = vmatpush1.msra.mxu0 %v1301
    %1426 = vmatprep.subr.mxu0 %v1306
    %1427 = vmatpush1.msra.mxu0 %v1305
    %1428 = vmatprep.subr.mxu0 %v1310
    %1429 = vmatpush1.msra.mxu0 %v1309
    %1430 = vmatprep.subr.mxu0 %v1314
    %1431 = vmatpush1.msra.mxu0 %v1313
    %1432 = vmatprep.subr.mxu0 0.0
    %1433 = vmatpush1.msra.mxu0 0.0
    %1434 = vmatprep.subr.mxu0 0.0
    %1435 = vmatpush1.msra.mxu0 0.0
    %1436 = vmatprep.subr.mxu0 0.0
    %1437 = vmatpush1.msra.mxu0 0.0
    %1438 = vmatprep.subr.mxu0 0.0
    %1439 = vmatpush1.msra.mxu0 0.0
    %1440 = vmatprep.subr.mxu0 0.0
    %1441 = vmatpush1.msra.mxu0 0.0
    %1442 = vmatprep.subr.mxu0 0.0
    %1443 = vmatpush1.msra.mxu0 0.0
    %1444 = vmatprep.subr.mxu0 0.0
    %1445 = vmatpush1.msra.mxu0 0.0
    %1446 = vmatprep.subr.mxu0 0.0
    %1447 = vmatpush1.msra.mxu0 0.0
    %1448 = vmatprep.subr.mxu0 0.0
    %1449 = vmatpush1.msra.mxu0 0.0
    %1450 = vmatprep.subr.mxu0 0.0
    %1451 = vmatpush1.msra.mxu0 0.0
    %1452 = vmatprep.subr.mxu0 0.0
    %1453 = vmatpush1.msra.mxu0 0.0
    %1454 = vmatprep.subr.mxu0 0.0
    %1455 = vmatpush1.msra.mxu0 0.0
    %1456 = vmatprep.subr.mxu0 0.0
    %1457 = vmatpush1.msra.mxu0 0.0
    %1458 = vmatprep.subr.mxu0 0.0
    %1459 = vmatpush1.msra.mxu0 0.0
    %1460 = vmatprep.subr.mxu0 0.0
    %1461 = vmatpush1.msra.mxu0 0.0
    %1462 = vmatprep.subr.mxu0 0.0
    %1463 = vmatpush1.msra.mxu0 0.0
    %1464 = vmatprep.mubr.f32.mxu0 0.0
    %1465 = vmatmul.mubr.f32.gmra.mrb[0].mxu0 0.0
    %v1466 = vpop.f32.mrb[0].mxu0
    %v1467 = vadd.f32 0.0, %v1466
    %v1468 = vpop.f32.mrb[0].mxu0
    %v1469 = vadd.f32 0.0, %v1468
    %1470 = vmatprep.mubr.f32.mxu0 0.0
    %1471 = vmatmul.mubr.f32.gmra.mrb[0].mxu0 0.0
    %v1472 = vpop.f32.mrb[0].mxu0
    %v1473 = vadd.f32 0.0, %v1472
    %v1474 = vpop.f32.mrb[0].mxu0
    %v1475 = vadd.f32 0.0, %v1474
    %1476 = vdwg.mxu0
    %v1477 = vadd.f32 %v1315, %v1390
    %v1478 = vadd.f32 %v1316, %v1392
    %v1479 = vadd.f32 %v1317, %v1467
    %v1480 = vadd.f32 %v1318, %v1469
    %v1481 = vadd.f32 %v1319, %v1396
    %v1482 = vadd.f32 %v1320, %v1398
    %v1483 = vadd.f32 %v1321, %v1473
    %v1484 = vadd.f32 %v1322, %v1475
    %v1485 = vmul.f32 %v1477, 0.5
    %v1486 = vmul.f32 %v1481, 0.5
    %v1487 = vtanh.pop %v1485
    %v1488 = vtanh.pop %v1486
    %v1489 = vmul.f32 %v1487, 0.5
    %v1490 = vmul.f32 %v1488, 0.5
    %v1491 = vadd.f32 %v1489, 0.5
    %v1492 = vadd.f32 %v1490, 0.5
    %v1493 = vmul.f32 %v1478, 0.5
    %v1494 = vmul.f32 %v1482, 0.5
    %v1495 = vtanh.pop %v1493
    %v1496 = vtanh.pop %v1494
    %v1497 = vmul.f32 %v1495, 0.5
    %v1498 = vmul.f32 %v1496, 0.5
    %v1499 = vadd.f32 %v1497, 0.5
    %v1500 = vadd.f32 %v1498, 0.5
    %v1501 = vtanh.pop %v1479
    %v1502 = vtanh.pop %v1483
    %v1503 = vmul.f32 %v1480, 0.5
    %v1504 = vmul.f32 %v1484, 0.5
    %v1505 = vtanh.pop %v1503
    %v1506 = vtanh.pop %v1504
    %v1507 = vmul.f32 %v1505, 0.5
    %v1508 = vmul.f32 %v1506, 0.5
    %v1509 = vadd.f32 %v1507, 0.5
    %v1510 = vadd.f32 %v1508, 0.5
    %v1511 = vmul.f32 %v1499, 0.0
    %v1512 = vmul.f32 %v1500, 0.0
    %v1513 = vmul.f32 %v1491, %v1501
    %v1514 = vmul.f32 %v1492, %v1502
    %v1515 = vadd.f32 %v1511, %v1513
    %v1516 = vadd.f32 %v1512, %v1514
    %v1517 = vtanh.pop %v1515
    %v1518 = vtanh.pop %v1516
    %v1519 = vmul.f32 %v1509, %v1517
    %v1520 = vmul.f32 %v1510, %v1518
    %s1521 = scalar_lea.vmem [#allocation2], 64
    %v1522 = vld [vmem:[%s1521] sm:$0xff]
    %v1523 = vld [vmem:[%s1521 + $0x8] sm:$0xff]
    %v1524 = vld [vmem:[%s1521 + $0x10] sm:$0xff]
    %v1525 = vld [vmem:[%s1521 + $0x18] sm:$0xff]
    %v1526 = vld [vmem:[%s1521 + $0x20] sm:$0xff]
    %v1527 = vld [vmem:[%s1521 + $0x28] sm:$0xff]
    %v1528 = vld [vmem:[%s1521 + $0x30] sm:$0xff]
    %v1529 = vld [vmem:[%s1521 + $0x38] sm:$0xff]
    %1530 = vmatprep.subr.mxu0 %v1252
    %1531 = vmatpush1.msra.mxu0 %v1251
    %1532 = vmatprep.subr.mxu0 %v1256
    %1533 = vmatpush1.msra.mxu0 %v1255
    %1534 = vmatprep.subr.mxu0 %v1260
    %1535 = vmatpush1.msra.mxu0 %v1259
    %1536 = vmatprep.subr.mxu0 %v1264
    %1537 = vmatpush1.msra.mxu0 %v1263
    %1538 = vmatprep.subr.mxu0 %v1268
    %1539 = vmatpush1.msra.mxu0 %v1267
    %1540 = vmatprep.subr.mxu0 %v1272
    %1541 = vmatpush1.msra.mxu0 %v1271
    %1542 = vmatprep.subr.mxu0 %v1276
    %1543 = vmatpush1.msra.mxu0 %v1275
    %1544 = vmatprep.subr.mxu0 %v1280
    %1545 = vmatpush1.msra.mxu0 %v1279
    %1546 = vmatprep.subr.mxu0 %v1284
    %1547 = vmatpush1.msra.mxu0 %v1283
    %1548 = vmatprep.subr.mxu0 %v1288
    %1549 = vmatpush1.msra.mxu0 %v1287
    %1550 = vmatprep.subr.mxu0 %v1292
    %1551 = vmatpush1.msra.mxu0 %v1291
    %1552 = vmatprep.subr.mxu0 %v1296
    %1553 = vmatpush1.msra.mxu0 %v1295
    %1554 = vmatprep.subr.mxu0 %v1300
    %1555 = vmatpush1.msra.mxu0 %v1299
    %1556 = vmatprep.subr.mxu0 %v1304
    %1557 = vmatpush1.msra.mxu0 %v1303
    %1558 = vmatprep.subr.mxu0 %v1308
    %1559 = vmatpush1.msra.mxu0 %v1307
    %1560 = vmatprep.subr.mxu0 %v1312
    %1561 = vmatpush1.msra.mxu0 %v1311
    %1562 = vmatprep.subr.mxu0 0.0
    %1563 = vmatpush1.msra.mxu0 0.0
    %1564 = vmatprep.subr.mxu0 0.0
    %1565 = vmatpush1.msra.mxu0 0.0
    %1566 = vmatprep.subr.mxu0 0.0
    %1567 = vmatpush1.msra.mxu0 0.0
    %1568 = vmatprep.subr.mxu0 0.0
    %1569 = vmatpush1.msra.mxu0 0.0
    %1570 = vmatprep.subr.mxu0 0.0
    %1571 = vmatpush1.msra.mxu0 0.0
    %1572 = vmatprep.subr.mxu0 0.0
    %1573 = vmatpush1.msra.mxu0 0.0
    %1574 = vmatprep.subr.mxu0 0.0
    %1575 = vmatpush1.msra.mxu0 0.0
    %1576 = vmatprep.subr.mxu0 0.0
    %1577 = vmatpush1.msra.mxu0 0.0
    %1578 = vmatprep.subr.mxu0 0.0
    %1579 = vmatpush1.msra.mxu0 0.0
    %1580 = vmatprep.subr.mxu0 0.0
    %1581 = vmatpush1.msra.mxu0 0.0
    %1582 = vmatprep.subr.mxu0 0.0
    %1583 = vmatpush1.msra.mxu0 0.0
    %1584 = vmatprep.subr.mxu0 0.0
    %1585 = vmatpush1.msra.mxu0 0.0
    %1586 = vmatprep.subr.mxu0 0.0
    %1587 = vmatpush1.msra.mxu0 0.0
    %1588 = vmatprep.subr.mxu0 0.0
    %1589 = vmatpush1.msra.mxu0 0.0
    %1590 = vmatprep.subr.mxu0 0.0
    %1591 = vmatpush1.msra.mxu0 0.0
    %1592 = vmatprep.subr.mxu0 0.0
    %1593 = vmatpush1.msra.mxu0 0.0
    %1594 = vmatprep.mubr.f32.mxu0 0.0
    %1595 = vmatmul.mubr.f32.gmra.mrb[0].mxu0 %v1519
    %v1596 = vpop.f32.mrb[0].mxu0
    %v1597 = vadd.f32 0.0, %v1596
    %v1598 = vpop.f32.mrb[0].mxu0
    %v1599 = vadd.f32 0.0, %v1598
    %1600 = vmatprep.mubr.f32.mxu0 0.0
    %1601 = vmatmul.mubr.f32.gmra.mrb[0].mxu0 %v1520
    %v1602 = vpop.f32.mrb[0].mxu0
    %v1603 = vadd.f32 0.0, %v1602
    %v1604 = vpop.f32.mrb[0].mxu0
    %v1605 = vadd.f32 0.0, %v1604
    %1606 = vdwg.mxu0
    %1607 = vmatprep.subr.mxu0 %v1254
    %1608 = vmatpush1.msra.mxu0 %v1253
    %1609 = vmatprep.subr.mxu0 %v1258
    %1610 = vmatpush1.msra.mxu0 %v1257
    %1611 = vmatprep.subr.mxu0 %v1262
    %1612 = vmatpush1.msra.mxu0 %v1261
    %1613 = vmatprep.subr.mxu0 %v1266
    %1614 = vmatpush1.msra.mxu0 %v1265
    %1615 = vmatprep.subr.mxu0 %v1270
    %1616 = vmatpush1.msra.mxu0 %v1269
    %1617 = vmatprep.subr.mxu0 %v1274
    %1618 = vmatpush1.msra.mxu0 %v1273
    %1619 = vmatprep.subr.mxu0 %v1278
    %1620 = vmatpush1.msra.mxu0 %v1277
    %1621 = vmatprep.subr.mxu0 %v1282
    %1622 = vmatpush1.msra.mxu0 %v1281
    %1623 = vmatprep.subr.mxu0 %v1286
    %1624 = vmatpush1.msra.mxu0 %v1285
    %1625 = vmatprep.subr.mxu0 %v1290
    %1626 = vmatpush1.msra.mxu0 %v1289
    %1627 = vmatprep.subr.mxu0 %v1294
    %1628 = vmatpush1.msra.mxu0 %v1293
    %1629 = vmatprep.subr.mxu0 %v1298
    %1630 = vmatpush1.msra.mxu0 %v1297
    %1631 = vmatprep.subr.mxu0 %v1302
    %1632 = vmatpush1.msra.mxu0 %v1301
    %1633 = vmatprep.subr.mxu0 %v1306
    %1634 = vmatpush1.msra.mxu0 %v1305
    %1635 = vmatprep.subr.mxu0 %v1310
    %1636 = vmatpush1.msra.mxu0 %v1309
    %1637 = vmatprep.subr.mxu0 %v1314
    %1638 = vmatpush1.msra.mxu0 %v1313
    %1639 = vmatprep.subr.mxu0 0.0
    %1640 = vmatpush1.msra.mxu0 0.0
    %1641 = vmatprep.subr.mxu0 0.0
    %1642 = vmatpush1.msra.mxu0 0.0
    %1643 = vmatprep.subr.mxu0 0.0
    %1644 = vmatpush1.msra.mxu0 0.0
    %1645 = vmatprep.subr.mxu0 0.0
    %1646 = vmatpush1.msra.mxu0 0.0
    %1647 = vmatprep.subr.mxu0 0.0
    %1648 = vmatpush1.msra.mxu0 0.0
    %1649 = vmatprep.subr.mxu0 0.0
    %1650 = vmatpush1.msra.mxu0 0.0
    %1651 = vmatprep.subr.mxu0 0.0
    %1652 = vmatpush1.msra.mxu0 0.0
    %1653 = vmatprep.subr.mxu0 0.0
    %1654 = vmatpush1.msra.mxu0 0.0
    %1655 = vmatprep.subr.mxu0 0.0
    %1656 = vmatpush1.msra.mxu0 0.0
    %1657 = vmatprep.subr.mxu0 0.0
    %1658 = vmatpush1.msra.mxu0 0.0
    %1659 = vmatprep.subr.mxu0 0.0
    %1660 = vmatpush1.msra.mxu0 0.0
    %1661 = vmatprep.subr.mxu0 0.0
    %1662 = vmatpush1.msra.mxu0 0.0
    %1663 = vmatprep.subr.mxu0 0.0
    %1664 = vmatpush1.msra.mxu0 0.0
    %1665 = vmatprep.subr.mxu0 0.0
    %1666 = vmatpush1.msra.mxu0 0.0
    %1667 = vmatprep.subr.mxu0 0.0
    %1668 = vmatpush1.msra.mxu0 0.0
    %1669 = vmatprep.subr.mxu0 0.0
    %1670 = vmatpush1.msra.mxu0 0.0
    %1671 = vmatprep.mubr.f32.mxu0 0.0
    %1672 = vmatmul.mubr.f32.gmra.mrb[0].mxu0 %v1519
    %v1673 = vpop.f32.mrb[0].mxu0
    %v1674 = vadd.f32 0.0, %v1673
    %v1675 = vpop.f32.mrb[0].mxu0
    %v1676 = vadd.f32 0.0, %v1675
    %1677 = vmatprep.mubr.f32.mxu0 0.0
    %1678 = vmatmul.mubr.f32.gmra.mrb[0].mxu0 %v1520
    %v1679 = vpop.f32.mrb[0].mxu0
    %v1680 = vadd.f32 0.0, %v1679
    %v1681 = vpop.f32.mrb[0].mxu0
    %v1682 = vadd.f32 0.0, %v1681
    %1683 = vdwg.mxu0
    %v1684 = vadd.f32 %v1522, %v1597
    %v1685 = vadd.f32 %v1523, %v1599
    %v1686 = vadd.f32 %v1524, %v1674
    %v1687 = vadd.f32 %v1525, %v1676
    %v1688 = vadd.f32 %v1526, %v1603
    %v1689 = vadd.f32 %v1527, %v1605
    %v1690 = vadd.f32 %v1528, %v1680
    %v1691 = vadd.f32 %v1529, %v1682
    %v1692 = vmul.f32 %v1684, 0.5
    %v1693 = vmul.f32 %v1688, 0.5
    %v1694 = vtanh.pop %v1692
    %v1695 = vtanh.pop %v1693
    %v1696 = vmul.f32 %v1694, 0.5
    %v1697 = vmul.f32 %v1695, 0.5
    %v1698 = vadd.f32 %v1696, 0.5
    %v1699 = vadd.f32 %v1697, 0.5
    %v1700 = vmul.f32 %v1685, 0.5
    %v1701 = vmul.f32 %v1689, 0.5
    %v1702 = vtanh.pop %v1700
    %v1703 = vtanh.pop %v1701
    %v1704 = vmul.f32 %v1702, 0.5
    %v1705 = vmul.f32 %v1703, 0.5
    %v1706 = vadd.f32 %v1704, 0.5
    %v1707 = vadd.f32 %v1705, 0.5
    %v1708 = vtanh.pop %v1686
    %v1709 = vtanh.pop %v1690
    %v1710 = vmul.f32 %v1687, 0.5
    %v1711 = vmul.f32 %v1691, 0.5
    %v1712 = vtanh.pop %v1710
    %v1713 = vtanh.pop %v1711
    %v1714 = vmul.f32 %v1712, 0.5
    %v1715 = vmul.f32 %v1713, 0.5
    %v1716 = vadd.f32 %v1714, 0.5
    %v1717 = vadd.f32 %v1715, 0.5
    %v1718 = vmul.f32 %v1706, %v1515
    %v1719 = vmul.f32 %v1707, %v1516
    %v1720 = vmul.f32 %v1698, %v1708
    %v1721 = vmul.f32 %v1699, %v1709
    %v1722 = vadd.f32 %v1718, %v1720
    %v1723 = vadd.f32 %v1719, %v1721
    %v1724 = vtanh.pop %v1722
    %v1725 = vtanh.pop %v1723
    %v1726 = vmul.f32 %v1716, %v1724
    %v1727 = vmul.f32 %v1717, %v1725
    %s1728 = scalar_lea.vmem [#allocation2], 128
    %v1729 = vld [vmem:[%s1728] sm:$0xff]
    %v1730 = vld [vmem:[%s1728 + $0x8] sm:$0xff]
    %v1731 = vld [vmem:[%s1728 + $0x10] sm:$0xff]
    %v1732 = vld [vmem:[%s1728 + $0x18] sm:$0xff]
    %v1733 = vld [vmem:[%s1728 + $0x20] sm:$0xff]
    %v1734 = vld [vmem:[%s1728 + $0x28] sm:$0xff]
    %v1735 = vld [vmem:[%s1728 + $0x30] sm:$0xff]
    %v1736 = vld [vmem:[%s1728 + $0x38] sm:$0xff]
    %1737 = vmatprep.subr.mxu0 %v1252
    %1738 = vmatpush1.msra.mxu0 %v1251
    %1739 = vmatprep.subr.mxu0 %v1256
    %1740 = vmatpush1.msra.mxu0 %v1255
    %1741 = vmatprep.subr.mxu0 %v1260
    %1742 = vmatpush1.msra.mxu0 %v1259
    %1743 = vmatprep.subr.mxu0 %v1264
    %1744 = vmatpush1.msra.mxu0 %v1263
    %1745 = vmatprep.subr.mxu0 %v1268
    %1746 = vmatpush1.msra.mxu0 %v1267
    %1747 = vmatprep.subr.mxu0 %v1272
    %1748 = vmatpush1.msra.mxu0 %v1271
    %1749 = vmatprep.subr.mxu0 %v1276
    %1750 = vmatpush1.msra.mxu0 %v1275
    %1751 = vmatprep.subr.mxu0 %v1280
    %1752 = vmatpush1.msra.mxu0 %v1279
    %1753 = vmatprep.subr.mxu0 %v1284
    %1754 = vmatpush1.msra.mxu0 %v1283
    %1755 = vmatprep.subr.mxu0 %v1288
    %1756 = vmatpush1.msra.mxu0 %v1287
    %1757 = vmatprep.subr.mxu0 %v1292
    %1758 = vmatpush1.msra.mxu0 %v1291
    %1759 = vmatprep.subr.mxu0 %v1296
    %1760 = vmatpush1.msra.mxu0 %v1295
    %1761 = vmatprep.subr.mxu0 %v1300
    %1762 = vmatpush1.msra.mxu0 %v1299
    %1763 = vmatprep.subr.mxu0 %v1304
    %1764 = vmatpush1.msra.mxu0 %v1303
    %1765 = vmatprep.subr.mxu0 %v1308
    %1766 = vmatpush1.msra.mxu0 %v1307
    %1767 = vmatprep.subr.mxu0 %v1312
    %1768 = vmatpush1.msra.mxu0 %v1311
    %1769 = vmatprep.subr.mxu0 0.0
    %1770 = vmatpush1.msra.mxu0 0.0
    %1771 = vmatprep.subr.mxu0 0.0
    %1772 = vmatpush1.msra.mxu0 0.0
    %1773 = vmatprep.subr.mxu0 0.0
    %1774 = vmatpush1.msra.mxu0 0.0
    %1775 = vmatprep.subr.mxu0 0.0
    %1776 = vmatpush1.msra.mxu0 0.0
    %1777 = vmatprep.subr.mxu0 0.0
    %1778 = vmatpush1.msra.mxu0 0.0
    %1779 = vmatprep.subr.mxu0 0.0
    %1780 = vmatpush1.msra.mxu0 0.0
    %1781 = vmatprep.subr.mxu0 0.0
    %1782 = vmatpush1.msra.mxu0 0.0
    %1783 = vmatprep.subr.mxu0 0.0
    %1784 = vmatpush1.msra.mxu0 0.0
    %1785 = vmatprep.subr.mxu0 0.0
    %1786 = vmatpush1.msra.mxu0 0.0
    %1787 = vmatprep.subr.mxu0 0.0
    %1788 = vmatpush1.msra.mxu0 0.0
    %1789 = vmatprep.subr.mxu0 0.0
    %1790 = vmatpush1.msra.mxu0 0.0
    %1791 = vmatprep.subr.mxu0 0.0
    %1792 = vmatpush1.msra.mxu0 0.0
    %1793 = vmatprep.subr.mxu0 0.0
    %1794 = vmatpush1.msra.mxu0 0.0
    %1795 = vmatprep.subr.mxu0 0.0
    %1796 = vmatpush1.msra.mxu0 0.0
    %1797 = vmatprep.subr.mxu0 0.0
    %1798 = vmatpush1.msra.mxu0 0.0
    %1799 = vmatprep.subr.mxu0 0.0
    %1800 = vmatpush1.msra.mxu0 0.0
    %1801 = vmatprep.mubr.f32.mxu0 0.0
    %1802 = vmatmul.mubr.f32.gmra.mrb[0].mxu0 %v1726
    %v1803 = vpop.f32.mrb[0].mxu0
    %v1804 = vadd.f32 0.0, %v1803
    %v1805 = vpop.f32.mrb[0].mxu0
    %v1806 = vadd.f32 0.0, %v1805
    %1807 = vmatprep.mubr.f32.mxu0 0.0
    %1808 = vmatmul.mubr.f32.gmra.mrb[0].mxu0 %v1727
    %v1809 = vpop.f32.mrb[0].mxu0
    %v1810 = vadd.f32 0.0, %v1809
    %v1811 = vpop.f32.mrb[0].mxu0
    %v1812 = vadd.f32 0.0, %v1811
    %1813 = vdwg.mxu0
    %1814 = vmatprep.subr.mxu0 %v1254
    %1815 = vmatpush1.msra.mxu0 %v1253
    %1816 = vmatprep.subr.mxu0 %v1258
    %1817 = vmatpush1.msra.mxu0 %v1257
    %1818 = vmatprep.subr.mxu0 %v1262
    %1819 = vmatpush1.msra.mxu0 %v1261
    %1820 = vmatprep.subr.mxu0 %v1266
    %1821 = vmatpush1.msra.mxu0 %v1265
    %1822 = vmatprep.subr.mxu0 %v1270
    %1823 = vmatpush1.msra.mxu0 %v1269
    %1824 = vmatprep.subr.mxu0 %v1274
    %1825 = vmatpush1.msra.mxu0 %v1273
    %1826 = vmatprep.subr.mxu0 %v1278
    %1827 = vmatpush1.msra.mxu0 %v1277
    %1828 = vmatprep.subr.mxu0 %v1282
    %1829 = vmatpush1.msra.mxu0 %v1281
    %1830 = vmatprep.subr.mxu0 %v1286
    %1831 = vmatpush1.msra.mxu0 %v1285
    %1832 = vmatprep.subr.mxu0 %v1290
    %1833 = vmatpush1.msra.mxu0 %v1289
    %1834 = vmatprep.subr.mxu0 %v1294
    %1835 = vmatpush1.msra.mxu0 %v1293
    %1836 = vmatprep.subr.mxu0 %v1298
    %1837 = vmatpush1.msra.mxu0 %v1297
    %1838 = vmatprep.subr.mxu0 %v1302
    %1839 = vmatpush1.msra.mxu0 %v1301
    %1840 = vmatprep.subr.mxu0 %v1306
    %1841 = vmatpush1.msra.mxu0 %v1305
    %1842 = vmatprep.subr.mxu0 %v1310
    %1843 = vmatpush1.msra.mxu0 %v1309
    %1844 = vmatprep.subr.mxu0 %v1314
    %1845 = vmatpush1.msra.mxu0 %v1313
    %1846 = vmatprep.subr.mxu0 0.0
    %1847 = vmatpush1.msra.mxu0 0.0
    %1848 = vmatprep.subr.mxu0 0.0
    %1849 = vmatpush1.msra.mxu0 0.0
    %1850 = vmatprep.subr.mxu0 0.0
    %1851 = vmatpush1.msra.mxu0 0.0
    %1852 = vmatprep.subr.mxu0 0.0
    %1853 = vmatpush1.msra.mxu0 0.0
    %1854 = vmatprep.subr.mxu0 0.0
    %1855 = vmatpush1.msra.mxu0 0.0
    %1856 = vmatprep.subr.mxu0 0.0
    %1857 = vmatpush1.msra.mxu0 0.0
    %1858 = vmatprep.subr.mxu0 0.0
    %1859 = vmatpush1.msra.mxu0 0.0
    %1860 = vmatprep.subr.mxu0 0.0
    %1861 = vmatpush1.msra.mxu0 0.0
    %1862 = vmatprep.subr.mxu0 0.0
    %1863 = vmatpush1.msra.mxu0 0.0
    %1864 = vmatprep.subr.mxu0 0.0
    %1865 = vmatpush1.msra.mxu0 0.0
    %1866 = vmatprep.subr.mxu0 0.0
    %1867 = vmatpush1.msra.mxu0 0.0
    %1868 = vmatprep.subr.mxu0 0.0
    %1869 = vmatpush1.msra.mxu0 0.0
    %1870 = vmatprep.subr.mxu0 0.0
    %1871 = vmatpush1.msra.mxu0 0.0
    %1872 = vmatprep.subr.mxu0 0.0
    %1873 = vmatpush1.msra.mxu0 0.0
    %1874 = vmatprep.subr.mxu0 0.0
    %1875 = vmatpush1.msra.mxu0 0.0
    %1876 = vmatprep.subr.mxu0 0.0
    %1877 = vmatpush1.msra.mxu0 0.0
    %1878 = vmatprep.mubr.f32.mxu0 0.0
    %1879 = vmatmul.mubr.f32.gmra.mrb[0].mxu0 %v1726
    %v1880 = vpop.f32.mrb[0].mxu0
    %v1881 = vadd.f32 0.0, %v1880
    %v1882 = vpop.f32.mrb[0].mxu0
    %v1883 = vadd.f32 0.0, %v1882
    %1884 = vmatprep.mubr.f32.mxu0 0.0
    %1885 = vmatmul.mubr.f32.gmra.mrb[0].mxu0 %v1727
    %v1886 = vpop.f32.mrb[0].mxu0
    %v1887 = vadd.f32 0.0, %v1886
    %v1888 = vpop.f32.mrb[0].mxu0
    %v1889 = vadd.f32 0.0, %v1888
    %1890 = vdwg.mxu0
    %v1891 = vadd.f32 %v1729, %v1804
    %v1892 = vadd.f32 %v1730, %v1806
    %v1893 = vadd.f32 %v1731, %v1881
    %v1894 = vadd.f32 %v1732, %v1883
    %v1895 = vadd.f32 %v1733, %v1810
    %v1896 = vadd.f32 %v1734, %v1812
    %v1897 = vadd.f32 %v1735, %v1887
    %v1898 = vadd.f32 %v1736, %v1889
    %v1899 = vmul.f32 %v1891, 0.5
    %v1900 = vmul.f32 %v1895, 0.5
    %v1901 = vtanh.pop %v1899
    %v1902 = vtanh.pop %v1900
    %v1903 = vmul.f32 %v1901, 0.5
    %v1904 = vmul.f32 %v1902, 0.5
    %v1905 = vadd.f32 %v1903, 0.5
    %v1906 = vadd.f32 %v1904, 0.5
    %v1907 = vmul.f32 %v1892, 0.5
    %v1908 = vmul.f32 %v1896, 0.5
    %v1909 = vtanh.pop %v1907
    %v1910 = vtanh.pop %v1908
    %v1911 = vmul.f32 %v1909, 0.5
    %v1912 = vmul.f32 %v1910, 0.5
    %v1913 = vadd.f32 %v1911, 0.5
    %v1914 = vadd.f32 %v1912, 0.5
    %v1915 = vtanh.pop %v1893
    %v1916 = vtanh.pop %v1897
    %v1917 = vmul.f32 %v1894, 0.5
    %v1918 = vmul.f32 %v1898, 0.5
    %v1919 = vtanh.pop %v1917
    %v1920 = vtanh.pop %v1918
    %v1921 = vmul.f32 %v1919, 0.5
    %v1922 = vmul.f32 %v1920, 0.5
    %v1923 = vadd.f32 %v1921, 0.5
    %v1924 = vadd.f32 %v1922, 0.5
    %v1925 = vmul.f32 %v1913, %v1722
    %v1926 = vmul.f32 %v1914, %v1723
    %v1927 = vmul.f32 %v1905, %v1915
    %v1928 = vmul.f32 %v1906, %v1916
    %v1929 = vadd.f32 %v1925, %v1927
    %v1930 = vadd.f32 %v1926, %v1928
    %v1931 = vtanh.pop %v1929
    %v1932 = vtanh.pop %v1930
    %v1933 = vmul.f32 %v1923, %v1931
    %v1934 = vmul.f32 %v1924, %v1932
    %s1935 = scalar_lea.vmem [#allocation2], 192
    %v1936 = vld [vmem:[%s1935] sm:$0xff]
    %v1937 = vld [vmem:[%s1935 + $0x8] sm:$0xff]
    %v1938 = vld [vmem:[%s1935 + $0x10] sm:$0xff]
    %v1939 = vld [vmem:[%s1935 + $0x18] sm:$0xff]
    %v1940 = vld [vmem:[%s1935 + $0x20] sm:$0xff]
    %v1941 = vld [vmem:[%s1935 + $0x28] sm:$0xff]
    %v1942 = vld [vmem:[%s1935 + $0x30] sm:$0xff]
    %v1943 = vld [vmem:[%s1935 + $0x38] sm:$0xff]
    %1944 = vmatprep.subr.mxu0 %v1252
    %1945 = vmatpush1.msra.mxu0 %v1251
    %1946 = vmatprep.subr.mxu0 %v1256
    %1947 = vmatpush1.msra.mxu0 %v1255
    %1948 = vmatprep.subr.mxu0 %v1260
    %1949 = vmatpush1.msra.mxu0 %v1259
    %1950 = vmatprep.subr.mxu0 %v1264
    %1951 = vmatpush1.msra.mxu0 %v1263
    %1952 = vmatprep.subr.mxu0 %v1268
    %1953 = vmatpush1.msra.mxu0 %v1267
    %1954 = vmatprep.subr.mxu0 %v1272
    %1955 = vmatpush1.msra.mxu0 %v1271
    %1956 = vmatprep.subr.mxu0 %v1276
    %1957 = vmatpush1.msra.mxu0 %v1275
    %1958 = vmatprep.subr.mxu0 %v1280
    %1959 = vmatpush1.msra.mxu0 %v1279
    %1960 = vmatprep.subr.mxu0 %v1284
    %1961 = vmatpush1.msra.mxu0 %v1283
    %1962 = vmatprep.subr.mxu0 %v1288
    %1963 = vmatpush1.msra.mxu0 %v1287
    %1964 = vmatprep.subr.mxu0 %v1292
    %1965 = vmatpush1.msra.mxu0 %v1291
    %1966 = vmatprep.subr.mxu0 %v1296
    %1967 = vmatpush1.msra.mxu0 %v1295
    %1968 = vmatprep.subr.mxu0 %v1300
    %1969 = vmatpush1.msra.mxu0 %v1299
    %1970 = vmatprep.subr.mxu0 %v1304
    %1971 = vmatpush1.msra.mxu0 %v1303
    %1972 = vmatprep.subr.mxu0 %v1308
    %1973 = vmatpush1.msra.mxu0 %v1307
    %1974 = vmatprep.subr.mxu0 %v1312
    %1975 = vmatpush1.msra.mxu0 %v1311
    %1976 = vmatprep.subr.mxu0 0.0
    %1977 = vmatpush1.msra.mxu0 0.0
    %1978 = vmatprep.subr.mxu0 0.0
    %1979 = vmatpush1.msra.mxu0 0.0
    %1980 = vmatprep.subr.mxu0 0.0
    %1981 = vmatpush1.msra.mxu0 0.0
    %1982 = vmatprep.subr.mxu0 0.0
    %1983 = vmatpush1.msra.mxu0 0.0
    %1984 = vmatprep.subr.mxu0 0.0
    %1985 = vmatpush1.msra.mxu0 0.0
    %1986 = vmatprep.subr.mxu0 0.0
    %1987 = vmatpush1.msra.mxu0 0.0
    %1988 = vmatprep.subr.mxu0 0.0
    %1989 = vmatpush1.msra.mxu0 0.0
    %1990 = vmatprep.subr.mxu0 0.0
    %1991 = vmatpush1.msra.mxu0 0.0
    %1992 = vmatprep.subr.mxu0 0.0
    %1993 = vmatpush1.msra.mxu0 0.0
    %1994 = vmatprep.subr.mxu0 0.0
    %1995 = vmatpush1.msra.mxu0 0.0
    %1996 = vmatprep.subr.mxu0 0.0
    %1997 = vmatpush1.msra.mxu0 0.0
    %1998 = vmatprep.subr.mxu0 0.0
    %1999 = vmatpush1.msra.mxu0 0.0
    %2000 = vmatprep.subr.mxu0 0.0
    %2001 = vmatpush1.msra.mxu0 0.0
    %2002 = vmatprep.subr.mxu0 0.0
    %2003 = vmatpush1.msra.mxu0 0.0
    %2004 = vmatprep.subr.mxu0 0.0
    %2005 = vmatpush1.msra.mxu0 0.0
    %2006 = vmatprep.subr.mxu0 0.0
    %2007 = vmatpush1.msra.mxu0 0.0
    %2008 = vmatprep.mubr.f32.mxu0 0.0
    %2009 = vmatmul.mubr.f32.gmra.mrb[0].mxu0 %v1933
    %v2010 = vpop.f32.mrb[0].mxu0
    %v2011 = vadd.f32 0.0, %v2010
    %v2012 = vpop.f32.mrb[0].mxu0
    %v2013 = vadd.f32 0.0, %v2012
    %2014 = vmatprep.mubr.f32.mxu0 0.0
    %2015 = vmatmul.mubr.f32.gmra.mrb[0].mxu0 %v1934
    %v2016 = vpop.f32.mrb[0].mxu0
    %v2017 = vadd.f32 0.0, %v2016
    %v2018 = vpop.f32.mrb[0].mxu0
    %v2019 = vadd.f32 0.0, %v2018
    %2020 = vdwg.mxu0
    %2021 = vmatprep.subr.mxu0 %v1254
    %2022 = vmatpush1.msra.mxu0 %v1253
    %2023 = vmatprep.subr.mxu0 %v1258
    %2024 = vmatpush1.msra.mxu0 %v1257
    %2025 = vmatprep.subr.mxu0 %v1262
    %2026 = vmatpush1.msra.mxu0 %v1261
    %2027 = vmatprep.subr.mxu0 %v1266
    %2028 = vmatpush1.msra.mxu0 %v1265
    %2029 = vmatprep.subr.mxu0 %v1270
    %2030 = vmatpush1.msra.mxu0 %v1269
    %2031 = vmatprep.subr.mxu0 %v1274
    %2032 = vmatpush1.msra.mxu0 %v1273
    %2033 = vmatprep.subr.mxu0 %v1278
    %2034 = vmatpush1.msra.mxu0 %v1277
    %2035 = vmatprep.subr.mxu0 %v1282
    %2036 = vmatpush1.msra.mxu0 %v1281
    %2037 = vmatprep.subr.mxu0 %v1286
    %2038 = vmatpush1.msra.mxu0 %v1285
    %2039 = vmatprep.subr.mxu0 %v1290
    %2040 = vmatpush1.msra.mxu0 %v1289
    %2041 = vmatprep.subr.mxu0 %v1294
    %2042 = vmatpush1.msra.mxu0 %v1293
    %2043 = vmatprep.subr.mxu0 %v1298
    %2044 = vmatpush1.msra.mxu0 %v1297
    %2045 = vmatprep.subr.mxu0 %v1302
    %2046 = vmatpush1.msra.mxu0 %v1301
    %2047 = vmatprep.subr.mxu0 %v1306
    %2048 = vmatpush1.msra.mxu0 %v1305
    %2049 = vmatprep.subr.mxu0 %v1310
    %2050 = vmatpush1.msra.mxu0 %v1309
    %2051 = vmatprep.subr.mxu0 %v1314
    %2052 = vmatpush1.msra.mxu0 %v1313
    %2053 = vmatprep.subr.mxu0 0.0
    %2054 = vmatpush1.msra.mxu0 0.0
    %2055 = vmatprep.subr.mxu0 0.0
    %2056 = vmatpush1.msra.mxu0 0.0
    %2057 = vmatprep.subr.mxu0 0.0
    %2058 = vmatpush1.msra.mxu0 0.0
    %2059 = vmatprep.subr.mxu0 0.0
    %2060 = vmatpush1.msra.mxu0 0.0
    %2061 = vmatprep.subr.mxu0 0.0
    %2062 = vmatpush1.msra.mxu0 0.0
    %2063 = vmatprep.subr.mxu0 0.0
    %2064 = vmatpush1.msra.mxu0 0.0
    %2065 = vmatprep.subr.mxu0 0.0
    %2066 = vmatpush1.msra.mxu0 0.0
    %2067 = vmatprep.subr.mxu0 0.0
    %2068 = vmatpush1.msra.mxu0 0.0
    %2069 = vmatprep.subr.mxu0 0.0
    %2070 = vmatpush1.msra.mxu0 0.0
    %2071 = vmatprep.subr.mxu0 0.0
    %2072 = vmatpush1.msra.mxu0 0.0
    %2073 = vmatprep.subr.mxu0 0.0
    %2074 = vmatpush1.msra.mxu0 0.0
    %2075 = vmatprep.subr.mxu0 0.0
    %2076 = vmatpush1.msra.mxu0 0.0
    %2077 = vmatprep.subr.mxu0 0.0
    %2078 = vmatpush1.msra.mxu0 0.0
    %2079 = vmatprep.subr.mxu0 0.0
    %2080 = vmatpush1.msra.mxu0 0.0
    %2081 = vmatprep.subr.mxu0 0.0
    %2082 = vmatpush1.msra.mxu0 0.0
    %2083 = vmatprep.subr.mxu0 0.0
    %2084 = vmatpush1.msra.mxu0 0.0
    %2085 = vmatprep.mubr.f32.mxu0 0.0
    %2086 = vmatmul.mubr.f32.gmra.mrb[0].mxu0 %v1933
    %v2087 = vpop.f32.mrb[0].mxu0
    %v2088 = vadd.f32 0.0, %v2087
    %v2089 = vpop.f32.mrb[0].mxu0
    %v2090 = vadd.f32 0.0, %v2089
    %2091 = vmatprep.mubr.f32.mxu0 0.0
    %2092 = vmatmul.mubr.f32.gmra.mrb[0].mxu0 %v1934
    %v2093 = vpop.f32.mrb[0].mxu0
    %v2094 = vadd.f32 0.0, %v2093
    %v2095 = vpop.f32.mrb[0].mxu0
    %v2096 = vadd.f32 0.0, %v2095
    %2097 = vdwg.mxu0
    %v2098 = vadd.f32 %v1936, %v2011
    %v2099 = vadd.f32 %v1937, %v2013
    %v2100 = vadd.f32 %v1938, %v2088
    %v2101 = vadd.f32 %v1939, %v2090
    %v2102 = vadd.f32 %v1940, %v2017
    %v2103 = vadd.f32 %v1941, %v2019
    %v2104 = vadd.f32 %v1942, %v2094
    %v2105 = vadd.f32 %v1943, %v2096
    %v2106 = vmul.f32 %v2098, 0.5
    %v2107 = vmul.f32 %v2102, 0.5
    %v2108 = vtanh.pop %v2106
    %v2109 = vtanh.pop %v2107
    %v2110 = vmul.f32 %v2108, 0.5
    %v2111 = vmul.f32 %v2109, 0.5
    %v2112 = vadd.f32 %v2110, 0.5
    %v2113 = vadd.f32 %v2111, 0.5
    %v2114 = vmul.f32 %v2099, 0.5
    %v2115 = vmul.f32 %v2103, 0.5
    %v2116 = vtanh.pop %v2114
    %v2117 = vtanh.pop %v2115
    %v2118 = vmul.f32 %v2116, 0.5
    %v2119 = vmul.f32 %v2117, 0.5
    %v2120 = vadd.f32 %v2118, 0.5
    %v2121 = vadd.f32 %v2119, 0.5
    %v2122 = vtanh.pop %v2100
    %v2123 = vtanh.pop %v2104
    %v2124 = vmul.f32 %v2101, 0.5
    %v2125 = vmul.f32 %v2105, 0.5
    %v2126 = vtanh.pop %v2124
    %v2127 = vtanh.pop %v2125
    %v2128 = vmul.f32 %v2126, 0.5
    %v2129 = vmul.f32 %v2127, 0.5
    %v2130 = vadd.f32 %v2128, 0.5
    %v2131 = vadd.f32 %v2129, 0.5
    %v2132 = vmul.f32 %v2120, %v1929
    %v2133 = vmul.f32 %v2121, %v1930
    %v2134 = vmul.f32 %v2112, %v2122
    %v2135 = vmul.f32 %v2113, %v2123
    %v2136 = vadd.f32 %v2132, %v2134
    %v2137 = vadd.f32 %v2133, %v2135
    %v2138 = vtanh.pop %v2136
    %v2139 = vtanh.pop %v2137
    %v2140 = vmul.f32 %v2130, %v2138
    %v2141 = vmul.f32 %v2131, %v2139
    %s2142 = scalar_lea.vmem [#allocation2], 256
    %v2143 = vld [vmem:[%s2142] sm:$0xff]
    %v2144 = vld [vmem:[%s2142 + $0x8] sm:$0xff]
    %v2145 = vld [vmem:[%s2142 + $0x10] sm:$0xff]
    %v2146 = vld [vmem:[%s2142 + $0x18] sm:$0xff]
    %v2147 = vld [vmem:[%s2142 + $0x20] sm:$0xff]
    %v2148 = vld [vmem:[%s2142 + $0x28] sm:$0xff]
    %v2149 = vld [vmem:[%s2142 + $0x30] sm:$0xff]
    %v2150 = vld [vmem:[%s2142 + $0x38] sm:$0xff]
    %2151 = vmatprep.subr.mxu0 %v1252
    %2152 = vmatpush1.msra.mxu0 %v1251
    %2153 = vmatprep.subr.mxu0 %v1256
    %2154 = vmatpush1.msra.mxu0 %v1255
    %2155 = vmatprep.subr.mxu0 %v1260
    %2156 = vmatpush1.msra.mxu0 %v1259
    %2157 = vmatprep.subr.mxu0 %v1264
    %2158 = vmatpush1.msra.mxu0 %v1263
    %2159 = vmatprep.subr.mxu0 %v1268
    %2160 = vmatpush1.msra.mxu0 %v1267
    %2161 = vmatprep.subr.mxu0 %v1272
    %2162 = vmatpush1.msra.mxu0 %v1271
    %2163 = vmatprep.subr.mxu0 %v1276
    %2164 = vmatpush1.msra.mxu0 %v1275
    %2165 = vmatprep.subr.mxu0 %v1280
    %2166 = vmatpush1.msra.mxu0 %v1279
    %2167 = vmatprep.subr.mxu0 %v1284
    %2168 = vmatpush1.msra.mxu0 %v1283
    %2169 = vmatprep.subr.mxu0 %v1288
    %2170 = vmatpush1.msra.mxu0 %v1287
    %2171 = vmatprep.subr.mxu0 %v1292
    %2172 = vmatpush1.msra.mxu0 %v1291
    %2173 = vmatprep.subr.mxu0 %v1296
    %2174 = vmatpush1.msra.mxu0 %v1295
    %2175 = vmatprep.subr.mxu0 %v1300
    %2176 = vmatpush1.msra.mxu0 %v1299
    %2177 = vmatprep.subr.mxu0 %v1304
    %2178 = vmatpush1.msra.mxu0 %v1303
    %2179 = vmatprep.subr.mxu0 %v1308
    %2180 = vmatpush1.msra.mxu0 %v1307
    %2181 = vmatprep.subr.mxu0 %v1312
    %2182 = vmatpush1.msra.mxu0 %v1311
    %2183 = vmatprep.subr.mxu0 0.0
    %2184 = vmatpush1.msra.mxu0 0.0
    %2185 = vmatprep.subr.mxu0 0.0
    %2186 = vmatpush1.msra.mxu0 0.0
    %2187 = vmatprep.subr.mxu0 0.0
    %2188 = vmatpush1.msra.mxu0 0.0
    %2189 = vmatprep.subr.mxu0 0.0
    %2190 = vmatpush1.msra.mxu0 0.0
    %2191 = vmatprep.subr.mxu0 0.0
    %2192 = vmatpush1.msra.mxu0 0.0
    %2193 = vmatprep.subr.mxu0 0.0
    %2194 = vmatpush1.msra.mxu0 0.0
    %2195 = vmatprep.subr.mxu0 0.0
    %2196 = vmatpush1.msra.mxu0 0.0
    %2197 = vmatprep.subr.mxu0 0.0
    %2198 = vmatpush1.msra.mxu0 0.0
    %2199 = vmatprep.subr.mxu0 0.0
    %2200 = vmatpush1.msra.mxu0 0.0
    %2201 = vmatprep.subr.mxu0 0.0
    %2202 = vmatpush1.msra.mxu0 0.0
    %2203 = vmatprep.subr.mxu0 0.0
    %2204 = vmatpush1.msra.mxu0 0.0
    %2205 = vmatprep.subr.mxu0 0.0
    %2206 = vmatpush1.msra.mxu0 0.0
    %2207 = vmatprep.subr.mxu0 0.0
    %2208 = vmatpush1.msra.mxu0 0.0
    %2209 = vmatprep.subr.mxu0 0.0
    %2210 = vmatpush1.msra.mxu0 0.0
    %2211 = vmatprep.subr.mxu0 0.0
    %2212 = vmatpush1.msra.mxu0 0.0
    %2213 = vmatprep.subr.mxu0 0.0
    %2214 = vmatpush1.msra.mxu0 0.0
    %2215 = vmatprep.mubr.f32.mxu0 0.0
    %2216 = vmatmul.mubr.f32.gmra.mrb[0].mxu0 %v2140
    %v2217 = vpop.f32.mrb[0].mxu0
    %v2218 = vadd.f32 0.0, %v2217
    %v2219 = vpop.f32.mrb[0].mxu0
    %v2220 = vadd.f32 0.0, %v2219
    %2221 = vmatprep.mubr.f32.mxu0 0.0
    %2222 = vmatmul.mubr.f32.gmra.mrb[0].mxu0 %v2141
    %v2223 = vpop.f32.mrb[0].mxu0
    %v2224 = vadd.f32 0.0, %v2223
    %v2225 = vpop.f32.mrb[0].mxu0
    %v2226 = vadd.f32 0.0, %v2225
    %2227 = vdwg.mxu0
    %2228 = vmatprep.subr.mxu0 %v1254
    %2229 = vmatpush1.msra.mxu0 %v1253
    %2230 = vmatprep.subr.mxu0 %v1258
    %2231 = vmatpush1.msra.mxu0 %v1257
    %2232 = vmatprep.subr.mxu0 %v1262
    %2233 = vmatpush1.msra.mxu0 %v1261
    %2234 = vmatprep.subr.mxu0 %v1266
    %2235 = vmatpush1.msra.mxu0 %v1265
    %2236 = vmatprep.subr.mxu0 %v1270
    %2237 = vmatpush1.msra.mxu0 %v1269
    %2238 = vmatprep.subr.mxu0 %v1274
    %2239 = vmatpush1.msra.mxu0 %v1273
    %2240 = vmatprep.subr.mxu0 %v1278
    %2241 = vmatpush1.msra.mxu0 %v1277
    %2242 = vmatprep.subr.mxu0 %v1282
    %2243 = vmatpush1.msra.mxu0 %v1281
    %2244 = vmatprep.subr.mxu0 %v1286
    %2245 = vmatpush1.msra.mxu0 %v1285
    %2246 = vmatprep.subr.mxu0 %v1290
    %2247 = vmatpush1.msra.mxu0 %v1289
    %2248 = vmatprep.subr.mxu0 %v1294
    %2249 = vmatpush1.msra.mxu0 %v1293
    %2250 = vmatprep.subr.mxu0 %v1298
    %2251 = vmatpush1.msra.mxu0 %v1297
    %2252 = vmatprep.subr.mxu0 %v1302
    %2253 = vmatpush1.msra.mxu0 %v1301
    %2254 = vmatprep.subr.mxu0 %v1306
    %2255 = vmatpush1.msra.mxu0 %v1305
    %2256 = vmatprep.subr.mxu0 %v1310
    %2257 = vmatpush1.msra.mxu0 %v1309
    %2258 = vmatprep.subr.mxu0 %v1314
    %2259 = vmatpush1.msra.mxu0 %v1313
    %2260 = vmatprep.subr.mxu0 0.0
    %2261 = vmatpush1.msra.mxu0 0.0
    %2262 = vmatprep.subr.mxu0 0.0
    %2263 = vmatpush1.msra.mxu0 0.0
    %2264 = vmatprep.subr.mxu0 0.0
    %2265 = vmatpush1.msra.mxu0 0.0
    %2266 = vmatprep.subr.mxu0 0.0
    %2267 = vmatpush1.msra.mxu0 0.0
    %2268 = vmatprep.subr.mxu0 0.0
    %2269 = vmatpush1.msra.mxu0 0.0
    %2270 = vmatprep.subr.mxu0 0.0
    %2271 = vmatpush1.msra.mxu0 0.0
    %2272 = vmatprep.subr.mxu0 0.0
    %2273 = vmatpush1.msra.mxu0 0.0
    %2274 = vmatprep.subr.mxu0 0.0
    %2275 = vmatpush1.msra.mxu0 0.0
    %2276 = vmatprep.subr.mxu0 0.0
    %2277 = vmatpush1.msra.mxu0 0.0
    %2278 = vmatprep.subr.mxu0 0.0
    %2279 = vmatpush1.msra.mxu0 0.0
    %2280 = vmatprep.subr.mxu0 0.0
    %2281 = vmatpush1.msra.mxu0 0.0
    %2282 = vmatprep.subr.mxu0 0.0
    %2283 = vmatpush1.msra.mxu0 0.0
    %2284 = vmatprep.subr.mxu0 0.0
    %2285 = vmatpush1.msra.mxu0 0.0
    %2286 = vmatprep.subr.mxu0 0.0
    %2287 = vmatpush1.msra.mxu0 0.0
    %2288 = vmatprep.subr.mxu0 0.0
    %2289 = vmatpush1.msra.mxu0 0.0
    %2290 = vmatprep.subr.mxu0 0.0
    %2291 = vmatpush1.msra.mxu0 0.0
    %2292 = vmatprep.mubr.f32.mxu0 0.0
    %2293 = vmatmul.mubr.f32.gmra.mrb[0].mxu0 %v2140
    %v2294 = vpop.f32.mrb[0].mxu0
    %v2295 = vadd.f32 0.0, %v2294
    %v2296 = vpop.f32.mrb[0].mxu0
    %v2297 = vadd.f32 0.0, %v2296
    %2298 = vmatprep.mubr.f32.mxu0 0.0
    %2299 = vmatmul.mubr.f32.gmra.mrb[0].mxu0 %v2141
    %v2300 = vpop.f32.mrb[0].mxu0
    %v2301 = vadd.f32 0.0, %v2300
    %v2302 = vpop.f32.mrb[0].mxu0
    %v2303 = vadd.f32 0.0, %v2302
    %2304 = vdwg.mxu0
    %v2305 = vadd.f32 %v2143, %v2218
    %v2306 = vadd.f32 %v2144, %v2220
    %v2307 = vadd.f32 %v2145, %v2295
    %v2308 = vadd.f32 %v2146, %v2297
    %v2309 = vadd.f32 %v2147, %v2224
    %v2310 = vadd.f32 %v2148, %v2226
    %v2311 = vadd.f32 %v2149, %v2301
    %v2312 = vadd.f32 %v2150, %v2303
    %v2313 = vmul.f32 %v2305, 0.5
    %v2314 = vmul.f32 %v2309, 0.5
    %v2315 = vtanh.pop %v2313
    %v2316 = vtanh.pop %v2314
    %v2317 = vmul.f32 %v2315, 0.5
    %v2318 = vmul.f32 %v2316, 0.5
    %v2319 = vadd.f32 %v2317, 0.5
    %v2320 = vadd.f32 %v2318, 0.5
    %v2321 = vmul.f32 %v2306, 0.5
    %v2322 = vmul.f32 %v2310, 0.5
    %v2323 = vtanh.pop %v2321
    %v2324 = vtanh.pop %v2322
    %v2325 = vmul.f32 %v2323, 0.5
    %v2326 = vmul.f32 %v2324, 0.5
    %v2327 = vadd.f32 %v2325, 0.5
    %v2328 = vadd.f32 %v2326, 0.5
    %v2329 = vtanh.pop %v2307
    %v2330 = vtanh.pop %v2311
    %v2331 = vmul.f32 %v2308, 0.5
    %v2332 = vmul.f32 %v2312, 0.5
    %v2333 = vtanh.pop %v2331
    %v2334 = vtanh.pop %v2332
    %v2335 = vmul.f32 %v2333, 0.5
    %v2336 = vmul.f32 %v2334, 0.5
    %v2337 = vadd.f32 %v2335, 0.5
    %v2338 = vadd.f32 %v2336, 0.5
    %v2339 = vmul.f32 %v2327, %v2136
    %v2340 = vmul.f32 %v2328, %v2137
    %v2341 = vmul.f32 %v2319, %v2329
    %v2342 = vmul.f32 %v2320, %v2330
    %v2343 = vadd.f32 %v2339, %v2341
    %v2344 = vadd.f32 %v2340, %v2342
    %v2345 = vtanh.pop %v2343
    %v2346 = vtanh.pop %v2344
    %v2347 = vmul.f32 %v2337, %v2345
    %v2348 = vmul.f32 %v2338, %v2346
    %s2349 = scalar_lea.vmem [#allocation2], 320
    %v2350 = vld [vmem:[%s2349] sm:$0xff]
    %v2351 = vld [vmem:[%s2349 + $0x8] sm:$0xff]
    %v2352 = vld [vmem:[%s2349 + $0x10] sm:$0xff]
    %v2353 = vld [vmem:[%s2349 + $0x18] sm:$0xff]
    %v2354 = vld [vmem:[%s2349 + $0x20] sm:$0xff]
    %v2355 = vld [vmem:[%s2349 + $0x28] sm:$0xff]
    %v2356 = vld [vmem:[%s2349 + $0x30] sm:$0xff]
    %v2357 = vld [vmem:[%s2349 + $0x38] sm:$0xff]
    %2358 = vmatprep.subr.mxu0 %v1252
    %2359 = vmatpush1.msra.mxu0 %v1251
    %2360 = vmatprep.subr.mxu0 %v1256
    %2361 = vmatpush1.msra.mxu0 %v1255
    %2362 = vmatprep.subr.mxu0 %v1260
    %2363 = vmatpush1.msra.mxu0 %v1259
    %2364 = vmatprep.subr.mxu0 %v1264
    %2365 = vmatpush1.msra.mxu0 %v1263
    %2366 = vmatprep.subr.mxu0 %v1268
    %2367 = vmatpush1.msra.mxu0 %v1267
    %2368 = vmatprep.subr.mxu0 %v1272
    %2369 = vmatpush1.msra.mxu0 %v1271
    %2370 = vmatprep.subr.mxu0 %v1276
    %2371 = vmatpush1.msra.mxu0 %v1275
    %2372 = vmatprep.subr.mxu0 %v1280
    %2373 = vmatpush1.msra.mxu0 %v1279
    %2374 = vmatprep.subr.mxu0 %v1284
    %2375 = vmatpush1.msra.mxu0 %v1283
    %2376 = vmatprep.subr.mxu0 %v1288
    %2377 = vmatpush1.msra.mxu0 %v1287
    %2378 = vmatprep.subr.mxu0 %v1292
    %2379 = vmatpush1.msra.mxu0 %v1291
    %2380 = vmatprep.subr.mxu0 %v1296
    %2381 = vmatpush1.msra.mxu0 %v1295
    %2382 = vmatprep.subr.mxu0 %v1300
    %2383 = vmatpush1.msra.mxu0 %v1299
    %2384 = vmatprep.subr.mxu0 %v1304
    %2385 = vmatpush1.msra.mxu0 %v1303
    %2386 = vmatprep.subr.mxu0 %v1308
    %2387 = vmatpush1.msra.mxu0 %v1307
    %2388 = vmatprep.subr.mxu0 %v1312
    %2389 = vmatpush1.msra.mxu0 %v1311
    %2390 = vmatprep.subr.mxu0 0.0
    %2391 = vmatpush1.msra.mxu0 0.0
    %2392 = vmatprep.subr.mxu0 0.0
    %2393 = vmatpush1.msra.mxu0 0.0
    %2394 = vmatprep.subr.mxu0 0.0
    %2395 = vmatpush1.msra.mxu0 0.0
    %2396 = vmatprep.subr.mxu0 0.0
    %2397 = vmatpush1.msra.mxu0 0.0
    %2398 = vmatprep.subr.mxu0 0.0
    %2399 = vmatpush1.msra.mxu0 0.0
    %2400 = vmatprep.subr.mxu0 0.0
    %2401 = vmatpush1.msra.mxu0 0.0
    %2402 = vmatprep.subr.mxu0 0.0
    %2403 = vmatpush1.msra.mxu0 0.0
    %2404 = vmatprep.subr.mxu0 0.0
    %2405 = vmatpush1.msra.mxu0 0.0
    %2406 = vmatprep.subr.mxu0 0.0
    %2407 = vmatpush1.msra.mxu0 0.0
    %2408 = vmatprep.subr.mxu0 0.0
    %2409 = vmatpush1.msra.mxu0 0.0
    %2410 = vmatprep.subr.mxu0 0.0
    %2411 = vmatpush1.msra.mxu0 0.0
    %2412 = vmatprep.subr.mxu0 0.0
    %2413 = vmatpush1.msra.mxu0 0.0
    %2414 = vmatprep.subr.mxu0 0.0
    %2415 = vmatpush1.msra.mxu0 0.0
    %2416 = vmatprep.subr.mxu0 0.0
    %2417 = vmatpush1.msra.mxu0 0.0
    %2418 = vmatprep.subr.mxu0 0.0
    %2419 = vmatpush1.msra.mxu0 0.0
    %2420 = vmatprep.subr.mxu0 0.0
    %2421 = vmatpush1.msra.mxu0 0.0
    %2422 = vmatprep.mubr.f32.mxu0 0.0
    %2423 = vmatmul.mubr.f32.gmra.mrb[0].mxu0 %v2347
    %v2424 = vpop.f32.mrb[0].mxu0
    %v2425 = vadd.f32 0.0, %v2424
    %v2426 = vpop.f32.mrb[0].mxu0
    %v2427 = vadd.f32 0.0, %v2426
    %2428 = vmatprep.mubr.f32.mxu0 0.0
    %2429 = vmatmul.mubr.f32.gmra.mrb[0].mxu0 %v2348
    %v2430 = vpop.f32.mrb[0].mxu0
    %v2431 = vadd.f32 0.0, %v2430
    %v2432 = vpop.f32.mrb[0].mxu0
    %v2433 = vadd.f32 0.0, %v2432
    %2434 = vdwg.mxu0
    %2435 = vmatprep.subr.mxu0 %v1254
    %2436 = vmatpush1.msra.mxu0 %v1253
    %2437 = vmatprep.subr.mxu0 %v1258
    %2438 = vmatpush1.msra.mxu0 %v1257
    %2439 = vmatprep.subr.mxu0 %v1262
    %2440 = vmatpush1.msra.mxu0 %v1261
    %2441 = vmatprep.subr.mxu0 %v1266
    %2442 = vmatpush1.msra.mxu0 %v1265
    %2443 = vmatprep.subr.mxu0 %v1270
    %2444 = vmatpush1.msra.mxu0 %v1269
    %2445 = vmatprep.subr.mxu0 %v1274
    %2446 = vmatpush1.msra.mxu0 %v1273
    %2447 = vmatprep.subr.mxu0 %v1278
    %2448 = vmatpush1.msra.mxu0 %v1277
    %2449 = vmatprep.subr.mxu0 %v1282
    %2450 = vmatpush1.msra.mxu0 %v1281
    %2451 = vmatprep.subr.mxu0 %v1286
    %2452 = vmatpush1.msra.mxu0 %v1285
    %2453 = vmatprep.subr.mxu0 %v1290
    %2454 = vmatpush1.msra.mxu0 %v1289
    %2455 = vmatprep.subr.mxu0 %v1294
    %2456 = vmatpush1.msra.mxu0 %v1293
    %2457 = vmatprep.subr.mxu0 %v1298
    %2458 = vmatpush1.msra.mxu0 %v1297
    %2459 = vmatprep.subr.mxu0 %v1302
    %2460 = vmatpush1.msra.mxu0 %v1301
    %2461 = vmatprep.subr.mxu0 %v1306
    %2462 = vmatpush1.msra.mxu0 %v1305
    %2463 = vmatprep.subr.mxu0 %v1310
    %2464 = vmatpush1.msra.mxu0 %v1309
    %2465 = vmatprep.subr.mxu0 %v1314
    %2466 = vmatpush1.msra.mxu0 %v1313
    %2467 = vmatprep.subr.mxu0 0.0
    %2468 = vmatpush1.msra.mxu0 0.0
    %2469 = vmatprep.subr.mxu0 0.0
    %2470 = vmatpush1.msra.mxu0 0.0
    %2471 = vmatprep.subr.mxu0 0.0
    %2472 = vmatpush1.msra.mxu0 0.0
    %2473 = vmatprep.subr.mxu0 0.0
    %2474 = vmatpush1.msra.mxu0 0.0
    %2475 = vmatprep.subr.mxu0 0.0
    %2476 = vmatpush1.msra.mxu0 0.0
    %2477 = vmatprep.subr.mxu0 0.0
    %2478 = vmatpush1.msra.mxu0 0.0
    %2479 = vmatprep.subr.mxu0 0.0
    %2480 = vmatpush1.msra.mxu0 0.0
    %2481 = vmatprep.subr.mxu0 0.0
    %2482 = vmatpush1.msra.mxu0 0.0
    %2483 = vmatprep.subr.mxu0 0.0
    %2484 = vmatpush1.msra.mxu0 0.0
    %2485 = vmatprep.subr.mxu0 0.0
    %2486 = vmatpush1.msra.mxu0 0.0
    %2487 = vmatprep.subr.mxu0 0.0
    %2488 = vmatpush1.msra.mxu0 0.0
    %2489 = vmatprep.subr.mxu0 0.0
    %2490 = vmatpush1.msra.mxu0 0.0
    %2491 = vmatprep.subr.mxu0 0.0
    %2492 = vmatpush1.msra.mxu0 0.0
    %2493 = vmatprep.subr.mxu0 0.0
    %2494 = vmatpush1.msra.mxu0 0.0
    %2495 = vmatprep.subr.mxu0 0.0
    %2496 = vmatpush1.msra.mxu0 0.0
    %2497 = vmatprep.subr.mxu0 0.0
    %2498 = vmatpush1.msra.mxu0 0.0
    %2499 = vmatprep.mubr.f32.mxu0 0.0
    %2500 = vmatmul.mubr.f32.gmra.mrb[0].mxu0 %v2347
    %v2501 = vpop.f32.mrb[0].mxu0
    %v2502 = vadd.f32 0.0, %v2501
    %v2503 = vpop.f32.mrb[0].mxu0
    %v2504 = vadd.f32 0.0, %v2503
    %2505 = vmatprep.mubr.f32.mxu0 0.0
    %2506 = vmatmul.mubr.f32.gmra.mrb[0].mxu0 %v2348
    %v2507 = vpop.f32.mrb[0].mxu0
    %v2508 = vadd.f32 0.0, %v2507
    %v2509 = vpop.f32.mrb[0].mxu0
    %v2510 = vadd.f32 0.0, %v2509
    %2511 = vdwg.mxu0
    %v2512 = vadd.f32 %v2350, %v2425
    %v2513 = vadd.f32 %v2351, %v2427
    %v2514 = vadd.f32 %v2352, %v2502
    %v2515 = vadd.f32 %v2353, %v2504
    %v2516 = vadd.f32 %v2354, %v2431
    %v2517 = vadd.f32 %v2355, %v2433
    %v2518 = vadd.f32 %v2356, %v2508
    %v2519 = vadd.f32 %v2357, %v2510
    %v2520 = vmul.f32 %v2512, 0.5
    %v2521 = vmul.f32 %v2516, 0.5
    %v2522 = vtanh.pop %v2520
    %v2523 = vtanh.pop %v2521
    %v2524 = vmul.f32 %v2522, 0.5
    %v2525 = vmul.f32 %v2523, 0.5
    %v2526 = vadd.f32 %v2524, 0.5
    %v2527 = vadd.f32 %v2525, 0.5
    %v2528 = vmul.f32 %v2513, 0.5
    %v2529 = vmul.f32 %v2517, 0.5
    %v2530 = vtanh.pop %v2528
    %v2531 = vtanh.pop %v2529
    %v2532 = vmul.f32 %v2530, 0.5
    %v2533 = vmul.f32 %v2531, 0.5
    %v2534 = vadd.f32 %v2532, 0.5
    %v2535 = vadd.f32 %v2533, 0.5
    %v2536 = vtanh.pop %v2514
    %v2537 = vtanh.pop %v2518
    %v2538 = vmul.f32 %v2515, 0.5
    %v2539 = vmul.f32 %v2519, 0.5
    %v2540 = vtanh.pop %v2538
    %v2541 = vtanh.pop %v2539
    %v2542 = vmul.f32 %v2540, 0.5
    %v2543 = vmul.f32 %v2541, 0.5
    %v2544 = vadd.f32 %v2542, 0.5
    %v2545 = vadd.f32 %v2543, 0.5
    %v2546 = vmul.f32 %v2534, %v2343
    %v2547 = vmul.f32 %v2535, %v2344
    %v2548 = vmul.f32 %v2526, %v2536
    %v2549 = vmul.f32 %v2527, %v2537
    %v2550 = vadd.f32 %v2546, %v2548
    %v2551 = vadd.f32 %v2547, %v2549
    %v2552 = vtanh.pop %v2550
    %v2553 = vtanh.pop %v2551
    %v2554 = vmul.f32 %v2544, %v2552
    %v2555 = vmul.f32 %v2545, %v2553
    %s2556 = scalar_lea.vmem [#allocation2], 384
    %v2557 = vld [vmem:[%s2556] sm:$0xff]
    %v2558 = vld [vmem:[%s2556 + $0x8] sm:$0xff]
    %v2559 = vld [vmem:[%s2556 + $0x10] sm:$0xff]
    %v2560 = vld [vmem:[%s2556 + $0x18] sm:$0xff]
    %v2561 = vld [vmem:[%s2556 + $0x20] sm:$0xff]
    %v2562 = vld [vmem:[%s2556 + $0x28] sm:$0xff]
    %v2563 = vld [vmem:[%s2556 + $0x30] sm:$0xff]
    %v2564 = vld [vmem:[%s2556 + $0x38] sm:$0xff]
    %2565 = vmatprep.subr.mxu0 %v1252
    %2566 = vmatpush1.msra.mxu0 %v1251
    %2567 = vmatprep.subr.mxu0 %v1256
    %2568 = vmatpush1.msra.mxu0 %v1255
    %2569 = vmatprep.subr.mxu0 %v1260
    %2570 = vmatpush1.msra.mxu0 %v1259
    %2571 = vmatprep.subr.mxu0 %v1264
    %2572 = vmatpush1.msra.mxu0 %v1263
    %2573 = vmatprep.subr.mxu0 %v1268
    %2574 = vmatpush1.msra.mxu0 %v1267
    %2575 = vmatprep.subr.mxu0 %v1272
    %2576 = vmatpush1.msra.mxu0 %v1271
    %2577 = vmatprep.subr.mxu0 %v1276
    %2578 = vmatpush1.msra.mxu0 %v1275
    %2579 = vmatprep.subr.mxu0 %v1280
    %2580 = vmatpush1.msra.mxu0 %v1279
    %2581 = vmatprep.subr.mxu0 %v1284
    %2582 = vmatpush1.msra.mxu0 %v1283
    %2583 = vmatprep.subr.mxu0 %v1288
    %2584 = vmatpush1.msra.mxu0 %v1287
    %2585 = vmatprep.subr.mxu0 %v1292
    %2586 = vmatpush1.msra.mxu0 %v1291
    %2587 = vmatprep.subr.mxu0 %v1296
    %2588 = vmatpush1.msra.mxu0 %v1295
    %2589 = vmatprep.subr.mxu0 %v1300
    %2590 = vmatpush1.msra.mxu0 %v1299
    %2591 = vmatprep.subr.mxu0 %v1304
    %2592 = vmatpush1.msra.mxu0 %v1303
    %2593 = vmatprep.subr.mxu0 %v1308
    %2594 = vmatpush1.msra.mxu0 %v1307
    %2595 = vmatprep.subr.mxu0 %v1312
    %2596 = vmatpush1.msra.mxu0 %v1311
    %2597 = vmatprep.subr.mxu0 0.0
    %2598 = vmatpush1.msra.mxu0 0.0
    %2599 = vmatprep.subr.mxu0 0.0
    %2600 = vmatpush1.msra.mxu0 0.0
    %2601 = vmatprep.subr.mxu0 0.0
    %2602 = vmatpush1.msra.mxu0 0.0
    %2603 = vmatprep.subr.mxu0 0.0
    %2604 = vmatpush1.msra.mxu0 0.0
    %2605 = vmatprep.subr.mxu0 0.0
    %2606 = vmatpush1.msra.mxu0 0.0
    %2607 = vmatprep.subr.mxu0 0.0
    %2608 = vmatpush1.msra.mxu0 0.0
    %2609 = vmatprep.subr.mxu0 0.0
    %2610 = vmatpush1.msra.mxu0 0.0
    %2611 = vmatprep.subr.mxu0 0.0
    %2612 = vmatpush1.msra.mxu0 0.0
    %2613 = vmatprep.subr.mxu0 0.0
    %2614 = vmatpush1.msra.mxu0 0.0
    %2615 = vmatprep.subr.mxu0 0.0
    %2616 = vmatpush1.msra.mxu0 0.0
    %2617 = vmatprep.subr.mxu0 0.0
    %2618 = vmatpush1.msra.mxu0 0.0
    %2619 = vmatprep.subr.mxu0 0.0
    %2620 = vmatpush1.msra.mxu0 0.0
    %2621 = vmatprep.subr.mxu0 0.0
    %2622 = vmatpush1.msra.mxu0 0.0
    %2623 = vmatprep.subr.mxu0 0.0
    %2624 = vmatpush1.msra.mxu0 0.0
    %2625 = vmatprep.subr.mxu0 0.0
    %2626 = vmatpush1.msra.mxu0 0.0
    %2627 = vmatprep.subr.mxu0 0.0
    %2628 = vmatpush1.msra.mxu0 0.0
    %2629 = vmatprep.mubr.f32.mxu0 0.0
    %2630 = vmatmul.mubr.f32.gmra.mrb[0].mxu0 %v2554
    %v2631 = vpop.f32.mrb[0].mxu0
    %v2632 = vadd.f32 0.0, %v2631
    %v2633 = vpop.f32.mrb[0].mxu0
    %v2634 = vadd.f32 0.0, %v2633
    %2635 = vmatprep.mubr.f32.mxu0 0.0
    %2636 = vmatmul.mubr.f32.gmra.mrb[0].mxu0 %v2555
    %v2637 = vpop.f32.mrb[0].mxu0
    %v2638 = vadd.f32 0.0, %v2637
    %v2639 = vpop.f32.mrb[0].mxu0
    %v2640 = vadd.f32 0.0, %v2639
    %2641 = vdwg.mxu0
    %2642 = vmatprep.subr.mxu0 %v1254
    %2643 = vmatpush1.msra.mxu0 %v1253
    %2644 = vmatprep.subr.mxu0 %v1258
    %2645 = vmatpush1.msra.mxu0 %v1257
    %2646 = vmatprep.subr.mxu0 %v1262
    %2647 = vmatpush1.msra.mxu0 %v1261
    %2648 = vmatprep.subr.mxu0 %v1266
    %2649 = vmatpush1.msra.mxu0 %v1265
    %2650 = vmatprep.subr.mxu0 %v1270
    %2651 = vmatpush1.msra.mxu0 %v1269
    %2652 = vmatprep.subr.mxu0 %v1274
    %2653 = vmatpush1.msra.mxu0 %v1273
    %2654 = vmatprep.subr.mxu0 %v1278
    %2655 = vmatpush1.msra.mxu0 %v1277
    %2656 = vmatprep.subr.mxu0 %v1282
    %2657 = vmatpush1.msra.mxu0 %v1281
    %2658 = vmatprep.subr.mxu0 %v1286
    %2659 = vmatpush1.msra.mxu0 %v1285
    %2660 = vmatprep.subr.mxu0 %v1290
    %2661 = vmatpush1.msra.mxu0 %v1289
    %2662 = vmatprep.subr.mxu0 %v1294
    %2663 = vmatpush1.msra.mxu0 %v1293
    %2664 = vmatprep.subr.mxu0 %v1298
    %2665 = vmatpush1.msra.mxu0 %v1297
    %2666 = vmatprep.subr.mxu0 %v1302
    %2667 = vmatpush1.msra.mxu0 %v1301
    %2668 = vmatprep.subr.mxu0 %v1306
    %2669 = vmatpush1.msra.mxu0 %v1305
    %2670 = vmatprep.subr.mxu0 %v1310
    %2671 = vmatpush1.msra.mxu0 %v1309
    %2672 = vmatprep.subr.mxu0 %v1314
    %2673 = vmatpush1.msra.mxu0 %v1313
    %2674 = vmatprep.subr.mxu0 0.0
    %2675 = vmatpush1.msra.mxu0 0.0
    %2676 = vmatprep.subr.mxu0 0.0
    %2677 = vmatpush1.msra.mxu0 0.0
    %2678 = vmatprep.subr.mxu0 0.0
    %2679 = vmatpush1.msra.mxu0 0.0
    %2680 = vmatprep.subr.mxu0 0.0
    %2681 = vmatpush1.msra.mxu0 0.0
    %2682 = vmatprep.subr.mxu0 0.0
    %2683 = vmatpush1.msra.mxu0 0.0
    %2684 = vmatprep.subr.mxu0 0.0
    %2685 = vmatpush1.msra.mxu0 0.0
    %2686 = vmatprep.subr.mxu0 0.0
    %2687 = vmatpush1.msra.mxu0 0.0
    %2688 = vmatprep.subr.mxu0 0.0
    %2689 = vmatpush1.msra.mxu0 0.0
    %2690 = vmatprep.subr.mxu0 0.0
    %2691 = vmatpush1.msra.mxu0 0.0
    %2692 = vmatprep.subr.mxu0 0.0
    %2693 = vmatpush1.msra.mxu0 0.0
    %2694 = vmatprep.subr.mxu0 0.0
    %2695 = vmatpush1.msra.mxu0 0.0
    %2696 = vmatprep.subr.mxu0 0.0
    %2697 = vmatpush1.msra.mxu0 0.0
    %2698 = vmatprep.subr.mxu0 0.0
    %2699 = vmatpush1.msra.mxu0 0.0
    %2700 = vmatprep.subr.mxu0 0.0
    %2701 = vmatpush1.msra.mxu0 0.0
    %2702 = vmatprep.subr.mxu0 0.0
    %2703 = vmatpush1.msra.mxu0 0.0
    %2704 = vmatprep.subr.mxu0 0.0
    %2705 = vmatpush1.msra.mxu0 0.0
    %2706 = vmatprep.mubr.f32.mxu0 0.0
    %2707 = vmatmul.mubr.f32.gmra.mrb[0].mxu0 %v2554
    %v2708 = vpop.f32.mrb[0].mxu0
    %v2709 = vadd.f32 0.0, %v2708
    %v2710 = vpop.f32.mrb[0].mxu0
    %v2711 = vadd.f32 0.0, %v2710
    %2712 = vmatprep.mubr.f32.mxu0 0.0
    %2713 = vmatmul.mubr.f32.gmra.mrb[0].mxu0 %v2555
    %v2714 = vpop.f32.mrb[0].mxu0
    %v2715 = vadd.f32 0.0, %v2714
    %v2716 = vpop.f32.mrb[0].mxu0
    %v2717 = vadd.f32 0.0, %v2716
    %2718 = vdwg.mxu0
    %v2719 = vadd.f32 %v2557, %v2632
    %v2720 = vadd.f32 %v2558, %v2634
    %v2721 = vadd.f32 %v2559, %v2709
    %v2722 = vadd.f32 %v2560, %v2711
    %v2723 = vadd.f32 %v2561, %v2638
    %v2724 = vadd.f32 %v2562, %v2640
    %v2725 = vadd.f32 %v2563, %v2715
    %v2726 = vadd.f32 %v2564, %v2717
    %v2727 = vmul.f32 %v2719, 0.5
    %v2728 = vmul.f32 %v2723, 0.5
    %v2729 = vtanh.pop %v2727
    %v2730 = vtanh.pop %v2728
    %v2731 = vmul.f32 %v2729, 0.5
    %v2732 = vmul.f32 %v2730, 0.5
    %v2733 = vadd.f32 %v2731, 0.5
    %v2734 = vadd.f32 %v2732, 0.5
    %v2735 = vmul.f32 %v2720, 0.5
    %v2736 = vmul.f32 %v2724, 0.5
    %v2737 = vtanh.pop %v2735
    %v2738 = vtanh.pop %v2736
    %v2739 = vmul.f32 %v2737, 0.5
    %v2740 = vmul.f32 %v2738, 0.5
    %v2741 = vadd.f32 %v2739, 0.5
    %v2742 = vadd.f32 %v2740, 0.5
    %v2743 = vtanh.pop %v2721
    %v2744 = vtanh.pop %v2725
    %v2745 = vmul.f32 %v2722, 0.5
    %v2746 = vmul.f32 %v2726, 0.5
    %v2747 = vtanh.pop %v2745
    %v2748 = vtanh.pop %v2746
    %v2749 = vmul.f32 %v2747, 0.5
    %v2750 = vmul.f32 %v2748, 0.5
    %v2751 = vadd.f32 %v2749, 0.5
    %v2752 = vadd.f32 %v2750, 0.5
    %v2753 = vmul.f32 %v2741, %v2550
    %v2754 = vmul.f32 %v2742, %v2551
    %v2755 = vmul.f32 %v2733, %v2743
    %v2756 = vmul.f32 %v2734, %v2744
    %v2757 = vadd.f32 %v2753, %v2755
    %v2758 = vadd.f32 %v2754, %v2756
    %v2759 = vtanh.pop %v2757
    %v2760 = vtanh.pop %v2758
    %v2761 = vmul.f32 %v2751, %v2759
    %v2762 = vmul.f32 %v2752, %v2760
    %s2763 = scalar_lea.vmem [#allocation2], 448
    %v2764 = vld [vmem:[%s2763] sm:$0xff]
    %v2765 = vld [vmem:[%s2763 + $0x8] sm:$0xff]
    %v2766 = vld [vmem:[%s2763 + $0x10] sm:$0xff]
    %v2767 = vld [vmem:[%s2763 + $0x18] sm:$0xff]
    %v2768 = vld [vmem:[%s2763 + $0x20] sm:$0xff]
    %v2769 = vld [vmem:[%s2763 + $0x28] sm:$0xff]
    %v2770 = vld [vmem:[%s2763 + $0x30] sm:$0xff]
    %v2771 = vld [vmem:[%s2763 + $0x38] sm:$0xff]
    %2772 = vmatprep.subr.mxu0 %v1252
    %2773 = vmatpush1.msra.mxu0 %v1251
    %2774 = vmatprep.subr.mxu0 %v1256
    %2775 = vmatpush1.msra.mxu0 %v1255
    %2776 = vmatprep.subr.mxu0 %v1260
    %2777 = vmatpush1.msra.mxu0 %v1259
    %2778 = vmatprep.subr.mxu0 %v1264
    %2779 = vmatpush1.msra.mxu0 %v1263
    %2780 = vmatprep.subr.mxu0 %v1268
    %2781 = vmatpush1.msra.mxu0 %v1267
    %2782 = vmatprep.subr.mxu0 %v1272
    %2783 = vmatpush1.msra.mxu0 %v1271
    %2784 = vmatprep.subr.mxu0 %v1276
    %2785 = vmatpush1.msra.mxu0 %v1275
    %2786 = vmatprep.subr.mxu0 %v1280
    %2787 = vmatpush1.msra.mxu0 %v1279
    %2788 = vmatprep.subr.mxu0 %v1284
    %2789 = vmatpush1.msra.mxu0 %v1283
    %2790 = vmatprep.subr.mxu0 %v1288
    %2791 = vmatpush1.msra.mxu0 %v1287
    %2792 = vmatprep.subr.mxu0 %v1292
    %2793 = vmatpush1.msra.mxu0 %v1291
    %2794 = vmatprep.subr.mxu0 %v1296
    %2795 = vmatpush1.msra.mxu0 %v1295
    %2796 = vmatprep.subr.mxu0 %v1300
    %2797 = vmatpush1.msra.mxu0 %v1299
    %2798 = vmatprep.subr.mxu0 %v1304
    %2799 = vmatpush1.msra.mxu0 %v1303
    %2800 = vmatprep.subr.mxu0 %v1308
    %2801 = vmatpush1.msra.mxu0 %v1307
    %2802 = vmatprep.subr.mxu0 %v1312
    %2803 = vmatpush1.msra.mxu0 %v1311
    %2804 = vmatprep.subr.mxu0 0.0
    %2805 = vmatpush1.msra.mxu0 0.0
    %2806 = vmatprep.subr.mxu0 0.0
    %2807 = vmatpush1.msra.mxu0 0.0
    %2808 = vmatprep.subr.mxu0 0.0
    %2809 = vmatpush1.msra.mxu0 0.0
    %2810 = vmatprep.subr.mxu0 0.0
    %2811 = vmatpush1.msra.mxu0 0.0
    %2812 = vmatprep.subr.mxu0 0.0
    %2813 = vmatpush1.msra.mxu0 0.0
    %2814 = vmatprep.subr.mxu0 0.0
    %2815 = vmatpush1.msra.mxu0 0.0
    %2816 = vmatprep.subr.mxu0 0.0
    %2817 = vmatpush1.msra.mxu0 0.0
    %2818 = vmatprep.subr.mxu0 0.0
    %2819 = vmatpush1.msra.mxu0 0.0
    %2820 = vmatprep.subr.mxu0 0.0
    %2821 = vmatpush1.msra.mxu0 0.0
    %2822 = vmatprep.subr.mxu0 0.0
    %2823 = vmatpush1.msra.mxu0 0.0
    %2824 = vmatprep.subr.mxu0 0.0
    %2825 = vmatpush1.msra.mxu0 0.0
    %2826 = vmatprep.subr.mxu0 0.0
    %2827 = vmatpush1.msra.mxu0 0.0
    %2828 = vmatprep.subr.mxu0 0.0
    %2829 = vmatpush1.msra.mxu0 0.0
    %2830 = vmatprep.subr.mxu0 0.0
    %2831 = vmatpush1.msra.mxu0 0.0
    %2832 = vmatprep.subr.mxu0 0.0
    %2833 = vmatpush1.msra.mxu0 0.0
    %2834 = vmatprep.subr.mxu0 0.0
    %2835 = vmatpush1.msra.mxu0 0.0
    %2836 = vmatprep.mubr.f32.mxu0 0.0
    %2837 = vmatmul.mubr.f32.gmra.mrb[0].mxu0 %v2761
    %v2838 = vpop.f32.mrb[0].mxu0
    %v2839 = vadd.f32 0.0, %v2838
    %v2840 = vpop.f32.mrb[0].mxu0
    %v2841 = vadd.f32 0.0, %v2840
    %2842 = vmatprep.mubr.f32.mxu0 0.0
    %2843 = vmatmul.mubr.f32.gmra.mrb[0].mxu0 %v2762
    %v2844 = vpop.f32.mrb[0].mxu0
    %v2845 = vadd.f32 0.0, %v2844
    %v2846 = vpop.f32.mrb[0].mxu0
    %v2847 = vadd.f32 0.0, %v2846
    %2848 = vdwg.mxu0
    %2849 = vmatprep.subr.mxu0 %v1254
    %2850 = vmatpush1.msra.mxu0 %v1253
    %2851 = vmatprep.subr.mxu0 %v1258
    %2852 = vmatpush1.msra.mxu0 %v1257
    %2853 = vmatprep.subr.mxu0 %v1262
    %2854 = vmatpush1.msra.mxu0 %v1261
    %2855 = vmatprep.subr.mxu0 %v1266
    %2856 = vmatpush1.msra.mxu0 %v1265
    %2857 = vmatprep.subr.mxu0 %v1270
    %2858 = vmatpush1.msra.mxu0 %v1269
    %2859 = vmatprep.subr.mxu0 %v1274
    %2860 = vmatpush1.msra.mxu0 %v1273
    %2861 = vmatprep.subr.mxu0 %v1278
    %2862 = vmatpush1.msra.mxu0 %v1277
    %2863 = vmatprep.subr.mxu0 %v1282
    %2864 = vmatpush1.msra.mxu0 %v1281
    %2865 = vmatprep.subr.mxu0 %v1286
    %2866 = vmatpush1.msra.mxu0 %v1285
    %2867 = vmatprep.subr.mxu0 %v1290
    %2868 = vmatpush1.msra.mxu0 %v1289
    %2869 = vmatprep.subr.mxu0 %v1294
    %2870 = vmatpush1.msra.mxu0 %v1293
    %2871 = vmatprep.subr.mxu0 %v1298
    %2872 = vmatpush1.msra.mxu0 %v1297
    %2873 = vmatprep.subr.mxu0 %v1302
    %2874 = vmatpush1.msra.mxu0 %v1301
    %2875 = vmatprep.subr.mxu0 %v1306
    %2876 = vmatpush1.msra.mxu0 %v1305
    %2877 = vmatprep.subr.mxu0 %v1310
    %2878 = vmatpush1.msra.mxu0 %v1309
    %2879 = vmatprep.subr.mxu0 %v1314
    %2880 = vmatpush1.msra.mxu0 %v1313
    %2881 = vmatprep.subr.mxu0 0.0
    %2882 = vmatpush1.msra.mxu0 0.0
    %2883 = vmatprep.subr.mxu0 0.0
    %2884 = vmatpush1.msra.mxu0 0.0
    %2885 = vmatprep.subr.mxu0 0.0
    %2886 = vmatpush1.msra.mxu0 0.0
    %2887 = vmatprep.subr.mxu0 0.0
    %2888 = vmatpush1.msra.mxu0 0.0
    %2889 = vmatprep.subr.mxu0 0.0
    %2890 = vmatpush1.msra.mxu0 0.0
    %2891 = vmatprep.subr.mxu0 0.0
    %2892 = vmatpush1.msra.mxu0 0.0
    %2893 = vmatprep.subr.mxu0 0.0
    %2894 = vmatpush1.msra.mxu0 0.0
    %2895 = vmatprep.subr.mxu0 0.0
    %2896 = vmatpush1.msra.mxu0 0.0
    %2897 = vmatprep.subr.mxu0 0.0
    %2898 = vmatpush1.msra.mxu0 0.0
    %2899 = vmatprep.subr.mxu0 0.0
    %2900 = vmatpush1.msra.mxu0 0.0
    %2901 = vmatprep.subr.mxu0 0.0
    %2902 = vmatpush1.msra.mxu0 0.0
    %2903 = vmatprep.subr.mxu0 0.0
    %2904 = vmatpush1.msra.mxu0 0.0
    %2905 = vmatprep.subr.mxu0 0.0
    %2906 = vmatpush1.msra.mxu0 0.0
    %2907 = vmatprep.subr.mxu0 0.0
    %2908 = vmatpush1.msra.mxu0 0.0
    %2909 = vmatprep.subr.mxu0 0.0
    %2910 = vmatpush1.msra.mxu0 0.0
    %2911 = vmatprep.subr.mxu0 0.0
    %2912 = vmatpush1.msra.mxu0 0.0
    %2913 = vmatprep.mubr.f32.mxu0 0.0
    %2914 = vmatmul.mubr.f32.gmra.mrb[0].mxu0 %v2761
    %v2915 = vpop.f32.mrb[0].mxu0
    %v2916 = vadd.f32 0.0, %v2915
    %v2917 = vpop.f32.mrb[0].mxu0
    %v2918 = vadd.f32 0.0, %v2917
    %2919 = vmatprep.mubr.f32.mxu0 0.0
    %2920 = vmatmul.mubr.f32.gmra.mrb[0].mxu0 %v2762
    %v2921 = vpop.f32.mrb[0].mxu0
    %v2922 = vadd.f32 0.0, %v2921
    %v2923 = vpop.f32.mrb[0].mxu0
    %v2924 = vadd.f32 0.0, %v2923
    %2925 = vdwg.mxu0
    %v2926 = vadd.f32 %v2764, %v2839
    %v2927 = vadd.f32 %v2765, %v2841
    %v2928 = vadd.f32 %v2766, %v2916
    %v2929 = vadd.f32 %v2767, %v2918
    %v2930 = vadd.f32 %v2768, %v2845
    %v2931 = vadd.f32 %v2769, %v2847
    %v2932 = vadd.f32 %v2770, %v2922
    %v2933 = vadd.f32 %v2771, %v2924
    %v2934 = vmul.f32 %v2926, 0.5
    %v2935 = vmul.f32 %v2930, 0.5
    %v2936 = vtanh.pop %v2934
    %v2937 = vtanh.pop %v2935
    %v2938 = vmul.f32 %v2936, 0.5
    %v2939 = vmul.f32 %v2937, 0.5
    %v2940 = vadd.f32 %v2938, 0.5
    %v2941 = vadd.f32 %v2939, 0.5
    %v2942 = vmul.f32 %v2927, 0.5
    %v2943 = vmul.f32 %v2931, 0.5
    %v2944 = vtanh.pop %v2942
    %v2945 = vtanh.pop %v2943
    %v2946 = vmul.f32 %v2944, 0.5
    %v2947 = vmul.f32 %v2945, 0.5
    %v2948 = vadd.f32 %v2946, 0.5
    %v2949 = vadd.f32 %v2947, 0.5
    %v2950 = vtanh.pop %v2928
    %v2951 = vtanh.pop %v2932
    %v2952 = vmul.f32 %v2929, 0.5
    %v2953 = vmul.f32 %v2933, 0.5
    %v2954 = vtanh.pop %v2952
    %v2955 = vtanh.pop %v2953
    %v2956 = vmul.f32 %v2954, 0.5
    %v2957 = vmul.f32 %v2955, 0.5
    %v2958 = vadd.f32 %v2956, 0.5
    %v2959 = vadd.f32 %v2957, 0.5
    %v2960 = vmul.f32 %v2948, %v2757
    %v2961 = vmul.f32 %v2949, %v2758
    %v2962 = vmul.f32 %v2940, %v2950
    %v2963 = vmul.f32 %v2941, %v2951
    %v2964 = vadd.f32 %v2960, %v2962
    %v2965 = vadd.f32 %v2961, %v2963
    %v2966 = vtanh.pop %v2964
    %v2967 = vtanh.pop %v2965
    %v2968 = vmul.f32 %v2958, %v2966
    %v2969 = vmul.f32 %v2959, %v2967
    %s2970 = scalar_lea.vmem [#allocation2], 512
    %v2971 = vld [vmem:[%s2970] sm:$0xff]
    %v2972 = vld [vmem:[%s2970 + $0x8] sm:$0xff]
    %v2973 = vld [vmem:[%s2970 + $0x10] sm:$0xff]
    %v2974 = vld [vmem:[%s2970 + $0x18] sm:$0xff]
    %v2975 = vld [vmem:[%s2970 + $0x20] sm:$0xff]
    %v2976 = vld [vmem:[%s2970 + $0x28] sm:$0xff]
    %v2977 = vld [vmem:[%s2970 + $0x30] sm:$0xff]
    %v2978 = vld [vmem:[%s2970 + $0x38] sm:$0xff]
    %2979 = vmatprep.subr.mxu0 %v1252
    %2980 = vmatpush1.msra.mxu0 %v1251
    %2981 = vmatprep.subr.mxu0 %v1256
    %2982 = vmatpush1.msra.mxu0 %v1255
    %2983 = vmatprep.subr.mxu0 %v1260
    %2984 = vmatpush1.msra.mxu0 %v1259
    %2985 = vmatprep.subr.mxu0 %v1264
    %2986 = vmatpush1.msra.mxu0 %v1263
    %2987 = vmatprep.subr.mxu0 %v1268
    %2988 = vmatpush1.msra.mxu0 %v1267
    %2989 = vmatprep.subr.mxu0 %v1272
    %2990 = vmatpush1.msra.mxu0 %v1271
    %2991 = vmatprep.subr.mxu0 %v1276
    %2992 = vmatpush1.msra.mxu0 %v1275
    %2993 = vmatprep.subr.mxu0 %v1280
    %2994 = vmatpush1.msra.mxu0 %v1279
    %2995 = vmatprep.subr.mxu0 %v1284
    %2996 = vmatpush1.msra.mxu0 %v1283
    %2997 = vmatprep.subr.mxu0 %v1288
    %2998 = vmatpush1.msra.mxu0 %v1287
    %2999 = vmatprep.subr.mxu0 %v1292
    %3000 = vmatpush1.msra.mxu0 %v1291
    %3001 = vmatprep.subr.mxu0 %v1296
    %3002 = vmatpush1.msra.mxu0 %v1295
    %3003 = vmatprep.subr.mxu0 %v1300
    %3004 = vmatpush1.msra.mxu0 %v1299
    %3005 = vmatprep.subr.mxu0 %v1304
    %3006 = vmatpush1.msra.mxu0 %v1303
    %3007 = vmatprep.subr.mxu0 %v1308
    %3008 = vmatpush1.msra.mxu0 %v1307
    %3009 = vmatprep.subr.mxu0 %v1312
    %3010 = vmatpush1.msra.mxu0 %v1311
    %3011 = vmatprep.subr.mxu0 0.0
    %3012 = vmatpush1.msra.mxu0 0.0
    %3013 = vmatprep.subr.mxu0 0.0
    %3014 = vmatpush1.msra.mxu0 0.0
    %3015 = vmatprep.subr.mxu0 0.0
    %3016 = vmatpush1.msra.mxu0 0.0
    %3017 = vmatprep.subr.mxu0 0.0
    %3018 = vmatpush1.msra.mxu0 0.0
    %3019 = vmatprep.subr.mxu0 0.0
    %3020 = vmatpush1.msra.mxu0 0.0
    %3021 = vmatprep.subr.mxu0 0.0
    %3022 = vmatpush1.msra.mxu0 0.0
    %3023 = vmatprep.subr.mxu0 0.0
    %3024 = vmatpush1.msra.mxu0 0.0
    %3025 = vmatprep.subr.mxu0 0.0
    %3026 = vmatpush1.msra.mxu0 0.0
    %3027 = vmatprep.subr.mxu0 0.0
    %3028 = vmatpush1.msra.mxu0 0.0
    %3029 = vmatprep.subr.mxu0 0.0
    %3030 = vmatpush1.msra.mxu0 0.0
    %3031 = vmatprep.subr.mxu0 0.0
    %3032 = vmatpush1.msra.mxu0 0.0
    %3033 = vmatprep.subr.mxu0 0.0
    %3034 = vmatpush1.msra.mxu0 0.0
    %3035 = vmatprep.subr.mxu0 0.0
    %3036 = vmatpush1.msra.mxu0 0.0
    %3037 = vmatprep.subr.mxu0 0.0
    %3038 = vmatpush1.msra.mxu0 0.0
    %3039 = vmatprep.subr.mxu0 0.0
    %3040 = vmatpush1.msra.mxu0 0.0
    %3041 = vmatprep.subr.mxu0 0.0
    %3042 = vmatpush1.msra.mxu0 0.0
    %3043 = vmatprep.mubr.f32.mxu0 0.0
    %3044 = vmatmul.mubr.f32.gmra.mrb[0].mxu0 %v2968
    %v3045 = vpop.f32.mrb[0].mxu0
    %v3046 = vadd.f32 0.0, %v3045
    %v3047 = vpop.f32.mrb[0].mxu0
    %v3048 = vadd.f32 0.0, %v3047
    %3049 = vmatprep.mubr.f32.mxu0 0.0
    %3050 = vmatmul.mubr.f32.gmra.mrb[0].mxu0 %v2969
    %v3051 = vpop.f32.mrb[0].mxu0
    %v3052 = vadd.f32 0.0, %v3051
    %v3053 = vpop.f32.mrb[0].mxu0
    %v3054 = vadd.f32 0.0, %v3053
    %3055 = vdwg.mxu0
    %3056 = vmatprep.subr.mxu0 %v1254
    %3057 = vmatpush1.msra.mxu0 %v1253
    %3058 = vmatprep.subr.mxu0 %v1258
    %3059 = vmatpush1.msra.mxu0 %v1257
    %3060 = vmatprep.subr.mxu0 %v1262
    %3061 = vmatpush1.msra.mxu0 %v1261
    %3062 = vmatprep.subr.mxu0 %v1266
    %3063 = vmatpush1.msra.mxu0 %v1265
    %3064 = vmatprep.subr.mxu0 %v1270
    %3065 = vmatpush1.msra.mxu0 %v1269
    %3066 = vmatprep.subr.mxu0 %v1274
    %3067 = vmatpush1.msra.mxu0 %v1273
    %3068 = vmatprep.subr.mxu0 %v1278
    %3069 = vmatpush1.msra.mxu0 %v1277
    %3070 = vmatprep.subr.mxu0 %v1282
    %3071 = vmatpush1.msra.mxu0 %v1281
    %3072 = vmatprep.subr.mxu0 %v1286
    %3073 = vmatpush1.msra.mxu0 %v1285
    %3074 = vmatprep.subr.mxu0 %v1290
    %3075 = vmatpush1.msra.mxu0 %v1289
    %3076 = vmatprep.subr.mxu0 %v1294
    %3077 = vmatpush1.msra.mxu0 %v1293
    %3078 = vmatprep.subr.mxu0 %v1298
    %3079 = vmatpush1.msra.mxu0 %v1297
    %3080 = vmatprep.subr.mxu0 %v1302
    %3081 = vmatpush1.msra.mxu0 %v1301
    %3082 = vmatprep.subr.mxu0 %v1306
    %3083 = vmatpush1.msra.mxu0 %v1305
    %3084 = vmatprep.subr.mxu0 %v1310
    %3085 = vmatpush1.msra.mxu0 %v1309
    %3086 = vmatprep.subr.mxu0 %v1314
    %3087 = vmatpush1.msra.mxu0 %v1313
    %3088 = vmatprep.subr.mxu0 0.0
    %3089 = vmatpush1.msra.mxu0 0.0
    %3090 = vmatprep.subr.mxu0 0.0
    %3091 = vmatpush1.msra.mxu0 0.0
    %3092 = vmatprep.subr.mxu0 0.0
    %3093 = vmatpush1.msra.mxu0 0.0
    %3094 = vmatprep.subr.mxu0 0.0
    %3095 = vmatpush1.msra.mxu0 0.0
    %3096 = vmatprep.subr.mxu0 0.0
    %3097 = vmatpush1.msra.mxu0 0.0
    %3098 = vmatprep.subr.mxu0 0.0
    %3099 = vmatpush1.msra.mxu0 0.0
    %3100 = vmatprep.subr.mxu0 0.0
    %3101 = vmatpush1.msra.mxu0 0.0
    %3102 = vmatprep.subr.mxu0 0.0
    %3103 = vmatpush1.msra.mxu0 0.0
    %3104 = vmatprep.subr.mxu0 0.0
    %3105 = vmatpush1.msra.mxu0 0.0
    %3106 = vmatprep.subr.mxu0 0.0
    %3107 = vmatpush1.msra.mxu0 0.0
    %3108 = vmatprep.subr.mxu0 0.0
    %3109 = vmatpush1.msra.mxu0 0.0
    %3110 = vmatprep.subr.mxu0 0.0
    %3111 = vmatpush1.msra.mxu0 0.0
    %3112 = vmatprep.subr.mxu0 0.0
    %3113 = vmatpush1.msra.mxu0 0.0
    %3114 = vmatprep.subr.mxu0 0.0
    %3115 = vmatpush1.msra.mxu0 0.0
    %3116 = vmatprep.subr.mxu0 0.0
    %3117 = vmatpush1.msra.mxu0 0.0
    %3118 = vmatprep.subr.mxu0 0.0
    %3119 = vmatpush1.msra.mxu0 0.0
    %3120 = vmatprep.mubr.f32.mxu0 0.0
    %3121 = vmatmul.mubr.f32.gmra.mrb[0].mxu0 %v2968
    %v3122 = vpop.f32.mrb[0].mxu0
    %v3123 = vadd.f32 0.0, %v3122
    %v3124 = vpop.f32.mrb[0].mxu0
    %v3125 = vadd.f32 0.0, %v3124
    %3126 = vmatprep.mubr.f32.mxu0 0.0
    %3127 = vmatmul.mubr.f32.gmra.mrb[0].mxu0 %v2969
    %v3128 = vpop.f32.mrb[0].mxu0
    %v3129 = vadd.f32 0.0, %v3128
    %v3130 = vpop.f32.mrb[0].mxu0
    %v3131 = vadd.f32 0.0, %v3130
    %3132 = vdwg.mxu0
    %v3133 = vadd.f32 %v2971, %v3046
    %v3134 = vadd.f32 %v2972, %v3048
    %v3135 = vadd.f32 %v2973, %v3123
    %v3136 = vadd.f32 %v2974, %v3125
    %v3137 = vadd.f32 %v2975, %v3052
    %v3138 = vadd.f32 %v2976, %v3054
    %v3139 = vadd.f32 %v2977, %v3129
    %v3140 = vadd.f32 %v2978, %v3131
    %v3141 = vmul.f32 %v3133, 0.5
    %v3142 = vmul.f32 %v3137, 0.5
    %v3143 = vtanh.pop %v3141
    %v3144 = vtanh.pop %v3142
    %v3145 = vmul.f32 %v3143, 0.5
    %v3146 = vmul.f32 %v3144, 0.5
    %v3147 = vadd.f32 %v3145, 0.5
    %v3148 = vadd.f32 %v3146, 0.5
    %v3149 = vmul.f32 %v3134, 0.5
    %v3150 = vmul.f32 %v3138, 0.5
    %v3151 = vtanh.pop %v3149
    %v3152 = vtanh.pop %v3150
    %v3153 = vmul.f32 %v3151, 0.5
    %v3154 = vmul.f32 %v3152, 0.5
    %v3155 = vadd.f32 %v3153, 0.5
    %v3156 = vadd.f32 %v3154, 0.5
    %v3157 = vtanh.pop %v3135
    %v3158 = vtanh.pop %v3139
    %v3159 = vmul.f32 %v3136, 0.5
    %v3160 = vmul.f32 %v3140, 0.5
    %v3161 = vtanh.pop %v3159
    %v3162 = vtanh.pop %v3160
    %v3163 = vmul.f32 %v3161, 0.5
    %v3164 = vmul.f32 %v3162, 0.5
    %v3165 = vadd.f32 %v3163, 0.5
    %v3166 = vadd.f32 %v3164, 0.5
    %v3167 = vmul.f32 %v3155, %v2964
    %v3168 = vmul.f32 %v3156, %v2965
    %v3169 = vmul.f32 %v3147, %v3157
    %v3170 = vmul.f32 %v3148, %v3158
    %v3171 = vadd.f32 %v3167, %v3169
    %v3172 = vadd.f32 %v3168, %v3170
    %v3173 = vtanh.pop %v3171
    %v3174 = vtanh.pop %v3172
    %v3175 = vmul.f32 %v3165, %v3173
    %v3176 = vmul.f32 %v3166, %v3174
    %s3177 = scalar_lea.vmem [#allocation2], 576
    %v3178 = vld [vmem:[%s3177] sm:$0xff]
    %v3179 = vld [vmem:[%s3177 + $0x8] sm:$0xff]
    %v3180 = vld [vmem:[%s3177 + $0x10] sm:$0xff]
    %v3181 = vld [vmem:[%s3177 + $0x18] sm:$0xff]
    %v3182 = vld [vmem:[%s3177 + $0x20] sm:$0xff]
    %v3183 = vld [vmem:[%s3177 + $0x28] sm:$0xff]
    %v3184 = vld [vmem:[%s3177 + $0x30] sm:$0xff]
    %v3185 = vld [vmem:[%s3177 + $0x38] sm:$0xff]
    %3186 = vmatprep.subr.mxu0 %v1252
    %3187 = vmatpush1.msra.mxu0 %v1251
    %3188 = vmatprep.subr.mxu0 %v1256
    %3189 = vmatpush1.msra.mxu0 %v1255
    %3190 = vmatprep.subr.mxu0 %v1260
    %3191 = vmatpush1.msra.mxu0 %v1259
    %3192 = vmatprep.subr.mxu0 %v1264
    %3193 = vmatpush1.msra.mxu0 %v1263
    %3194 = vmatprep.subr.mxu0 %v1268
    %3195 = vmatpush1.msra.mxu0 %v1267
    %3196 = vmatprep.subr.mxu0 %v1272
    %3197 = vmatpush1.msra.mxu0 %v1271
    %3198 = vmatprep.subr.mxu0 %v1276
    %3199 = vmatpush1.msra.mxu0 %v1275
    %3200 = vmatprep.subr.mxu0 %v1280
    %3201 = vmatpush1.msra.mxu0 %v1279
    %3202 = vmatprep.subr.mxu0 %v1284
    %3203 = vmatpush1.msra.mxu0 %v1283
    %3204 = vmatprep.subr.mxu0 %v1288
    %3205 = vmatpush1.msra.mxu0 %v1287
    %3206 = vmatprep.subr.mxu0 %v1292
    %3207 = vmatpush1.msra.mxu0 %v1291
    %3208 = vmatprep.subr.mxu0 %v1296
    %3209 = vmatpush1.msra.mxu0 %v1295
    %3210 = vmatprep.subr.mxu0 %v1300
    %3211 = vmatpush1.msra.mxu0 %v1299
    %3212 = vmatprep.subr.mxu0 %v1304
    %3213 = vmatpush1.msra.mxu0 %v1303
    %3214 = vmatprep.subr.mxu0 %v1308
    %3215 = vmatpush1.msra.mxu0 %v1307
    %3216 = vmatprep.subr.mxu0 %v1312
    %3217 = vmatpush1.msra.mxu0 %v1311
    %3218 = vmatprep.subr.mxu0 0.0
    %3219 = vmatpush1.msra.mxu0 0.0
    %3220 = vmatprep.subr.mxu0 0.0
    %3221 = vmatpush1.msra.mxu0 0.0
    %3222 = vmatprep.subr.mxu0 0.0
    %3223 = vmatpush1.msra.mxu0 0.0
    %3224 = vmatprep.subr.mxu0 0.0
    %3225 = vmatpush1.msra.mxu0 0.0
    %3226 = vmatprep.subr.mxu0 0.0
    %3227 = vmatpush1.msra.mxu0 0.0
    %3228 = vmatprep.subr.mxu0 0.0
    %3229 = vmatpush1.msra.mxu0 0.0
    %3230 = vmatprep.subr.mxu0 0.0
    %3231 = vmatpush1.msra.mxu0 0.0
    %3232 = vmatprep.subr.mxu0 0.0
    %3233 = vmatpush1.msra.mxu0 0.0
    %3234 = vmatprep.subr.mxu0 0.0
    %3235 = vmatpush1.msra.mxu0 0.0
    %3236 = vmatprep.subr.mxu0 0.0
    %3237 = vmatpush1.msra.mxu0 0.0
    %3238 = vmatprep.subr.mxu0 0.0
    %3239 = vmatpush1.msra.mxu0 0.0
    %3240 = vmatprep.subr.mxu0 0.0
    %3241 = vmatpush1.msra.mxu0 0.0
    %3242 = vmatprep.subr.mxu0 0.0
    %3243 = vmatpush1.msra.mxu0 0.0
    %3244 = vmatprep.subr.mxu0 0.0
    %3245 = vmatpush1.msra.mxu0 0.0
    %3246 = vmatprep.subr.mxu0 0.0
    %3247 = vmatpush1.msra.mxu0 0.0
    %3248 = vmatprep.subr.mxu0 0.0
    %3249 = vmatpush1.msra.mxu0 0.0
    %3250 = vmatprep.mubr.f32.mxu0 0.0
    %3251 = vmatmul.mubr.f32.gmra.mrb[0].mxu0 %v3175
    %v3252 = vpop.f32.mrb[0].mxu0
    %v3253 = vadd.f32 0.0, %v3252
    %v3254 = vpop.f32.mrb[0].mxu0
    %v3255 = vadd.f32 0.0, %v3254
    %3256 = vmatprep.mubr.f32.mxu0 0.0
    %3257 = vmatmul.mubr.f32.gmra.mrb[0].mxu0 %v3176
    %v3258 = vpop.f32.mrb[0].mxu0
    %v3259 = vadd.f32 0.0, %v3258
    %v3260 = vpop.f32.mrb[0].mxu0
    %v3261 = vadd.f32 0.0, %v3260
    %3262 = vdwg.mxu0
    %3263 = vmatprep.subr.mxu0 %v1254
    %3264 = vmatpush1.msra.mxu0 %v1253
    %3265 = vmatprep.subr.mxu0 %v1258
    %3266 = vmatpush1.msra.mxu0 %v1257
    %3267 = vmatprep.subr.mxu0 %v1262
    %3268 = vmatpush1.msra.mxu0 %v1261
    %3269 = vmatprep.subr.mxu0 %v1266
    %3270 = vmatpush1.msra.mxu0 %v1265
    %3271 = vmatprep.subr.mxu0 %v1270
    %3272 = vmatpush1.msra.mxu0 %v1269
    %3273 = vmatprep.subr.mxu0 %v1274
    %3274 = vmatpush1.msra.mxu0 %v1273
    %3275 = vmatprep.subr.mxu0 %v1278
    %3276 = vmatpush1.msra.mxu0 %v1277
    %3277 = vmatprep.subr.mxu0 %v1282
    %3278 = vmatpush1.msra.mxu0 %v1281
    %3279 = vmatprep.subr.mxu0 %v1286
    %3280 = vmatpush1.msra.mxu0 %v1285
    %3281 = vmatprep.subr.mxu0 %v1290
    %3282 = vmatpush1.msra.mxu0 %v1289
    %3283 = vmatprep.subr.mxu0 %v1294
    %3284 = vmatpush1.msra.mxu0 %v1293
    %3285 = vmatprep.subr.mxu0 %v1298
    %3286 = vmatpush1.msra.mxu0 %v1297
    %3287 = vmatprep.subr.mxu0 %v1302
    %3288 = vmatpush1.msra.mxu0 %v1301
    %3289 = vmatprep.subr.mxu0 %v1306
    %3290 = vmatpush1.msra.mxu0 %v1305
    %3291 = vmatprep.subr.mxu0 %v1310
    %3292 = vmatpush1.msra.mxu0 %v1309
    %3293 = vmatprep.subr.mxu0 %v1314
    %3294 = vmatpush1.msra.mxu0 %v1313
    %3295 = vmatprep.subr.mxu0 0.0
    %3296 = vmatpush1.msra.mxu0 0.0
    %3297 = vmatprep.subr.mxu0 0.0
    %3298 = vmatpush1.msra.mxu0 0.0
    %3299 = vmatprep.subr.mxu0 0.0
    %3300 = vmatpush1.msra.mxu0 0.0
    %3301 = vmatprep.subr.mxu0 0.0
    %3302 = vmatpush1.msra.mxu0 0.0
    %3303 = vmatprep.subr.mxu0 0.0
    %3304 = vmatpush1.msra.mxu0 0.0
    %3305 = vmatprep.subr.mxu0 0.0
    %3306 = vmatpush1.msra.mxu0 0.0
    %3307 = vmatprep.subr.mxu0 0.0
    %3308 = vmatpush1.msra.mxu0 0.0
    %3309 = vmatprep.subr.mxu0 0.0
    %3310 = vmatpush1.msra.mxu0 0.0
    %3311 = vmatprep.subr.mxu0 0.0
    %3312 = vmatpush1.msra.mxu0 0.0
    %3313 = vmatprep.subr.mxu0 0.0
    %3314 = vmatpush1.msra.mxu0 0.0
    %3315 = vmatprep.subr.mxu0 0.0
    %3316 = vmatpush1.msra.mxu0 0.0
    %3317 = vmatprep.subr.mxu0 0.0
    %3318 = vmatpush1.msra.mxu0 0.0
    %3319 = vmatprep.subr.mxu0 0.0
    %3320 = vmatpush1.msra.mxu0 0.0
    %3321 = vmatprep.subr.mxu0 0.0
    %3322 = vmatpush1.msra.mxu0 0.0
    %3323 = vmatprep.subr.mxu0 0.0
    %3324 = vmatpush1.msra.mxu0 0.0
    %3325 = vmatprep.subr.mxu0 0.0
    %3326 = vmatpush1.msra.mxu0 0.0
    %3327 = vmatprep.mubr.f32.mxu0 0.0
    %3328 = vmatmul.mubr.f32.gmra.mrb[0].mxu0 %v3175
    %v3329 = vpop.f32.mrb[0].mxu0
    %v3330 = vadd.f32 0.0, %v3329
    %v3331 = vpop.f32.mrb[0].mxu0
    %v3332 = vadd.f32 0.0, %v3331
    %3333 = vmatprep.mubr.f32.mxu0 0.0
    %3334 = vmatmul.mubr.f32.gmra.mrb[0].mxu0 %v3176
    %v3335 = vpop.f32.mrb[0].mxu0
    %v3336 = vadd.f32 0.0, %v3335
    %v3337 = vpop.f32.mrb[0].mxu0
    %v3338 = vadd.f32 0.0, %v3337
    %3339 = vdwg.mxu0
    %v3340 = vadd.f32 %v3178, %v3253
    %v3341 = vadd.f32 %v3179, %v3255
    %v3342 = vadd.f32 %v3180, %v3330
    %v3343 = vadd.f32 %v3181, %v3332
    %v3344 = vadd.f32 %v3182, %v3259
    %v3345 = vadd.f32 %v3183, %v3261
    %v3346 = vadd.f32 %v3184, %v3336
    %v3347 = vadd.f32 %v3185, %v3338
    %v3348 = vmul.f32 %v3340, 0.5
    %v3349 = vmul.f32 %v3344, 0.5
    %v3350 = vtanh.pop %v3348
    %v3351 = vtanh.pop %v3349
    %v3352 = vmul.f32 %v3350, 0.5
    %v3353 = vmul.f32 %v3351, 0.5
    %v3354 = vadd.f32 %v3352, 0.5
    %v3355 = vadd.f32 %v3353, 0.5
    %v3356 = vmul.f32 %v3341, 0.5
    %v3357 = vmul.f32 %v3345, 0.5
    %v3358 = vtanh.pop %v3356
    %v3359 = vtanh.pop %v3357
    %v3360 = vmul.f32 %v3358, 0.5
    %v3361 = vmul.f32 %v3359, 0.5
    %v3362 = vadd.f32 %v3360, 0.5
    %v3363 = vadd.f32 %v3361, 0.5
    %v3364 = vtanh.pop %v3342
    %v3365 = vtanh.pop %v3346
    %v3366 = vmul.f32 %v3343, 0.5
    %v3367 = vmul.f32 %v3347, 0.5
    %v3368 = vtanh.pop %v3366
    %v3369 = vtanh.pop %v3367
    %v3370 = vmul.f32 %v3368, 0.5
    %v3371 = vmul.f32 %v3369, 0.5
    %v3372 = vadd.f32 %v3370, 0.5
    %v3373 = vadd.f32 %v3371, 0.5
    %v3374 = vmul.f32 %v3362, %v3171
    %v3375 = vmul.f32 %v3363, %v3172
    %v3376 = vmul.f32 %v3354, %v3364
    %v3377 = vmul.f32 %v3355, %v3365
    %v3378 = vadd.f32 %v3374, %v3376
    %v3379 = vadd.f32 %v3375, %v3377
    %v3380 = vtanh.pop %v3378
    %v3381 = vtanh.pop %v3379
    %v3382 = vmul.f32 %v3372, %v3380
    %v3383 = vmul.f32 %v3373, %v3381
    %s3384 = scalar_lea.vmem [#allocation2], 640
    %v3385 = vld [vmem:[%s3384] sm:$0xff]
    %v3386 = vld [vmem:[%s3384 + $0x8] sm:$0xff]
    %v3387 = vld [vmem:[%s3384 + $0x10] sm:$0xff]
    %v3388 = vld [vmem:[%s3384 + $0x18] sm:$0xff]
    %v3389 = vld [vmem:[%s3384 + $0x20] sm:$0xff]
    %v3390 = vld [vmem:[%s3384 + $0x28] sm:$0xff]
    %v3391 = vld [vmem:[%s3384 + $0x30] sm:$0xff]
    %v3392 = vld [vmem:[%s3384 + $0x38] sm:$0xff]
    %3393 = vmatprep.subr.mxu0 %v1252
    %3394 = vmatpush1.msra.mxu0 %v1251
    %3395 = vmatprep.subr.mxu0 %v1256
    %3396 = vmatpush1.msra.mxu0 %v1255
    %3397 = vmatprep.subr.mxu0 %v1260
    %3398 = vmatpush1.msra.mxu0 %v1259
    %3399 = vmatprep.subr.mxu0 %v1264
    %3400 = vmatpush1.msra.mxu0 %v1263
    %3401 = vmatprep.subr.mxu0 %v1268
    %3402 = vmatpush1.msra.mxu0 %v1267
    %3403 = vmatprep.subr.mxu0 %v1272
    %3404 = vmatpush1.msra.mxu0 %v1271
    %3405 = vmatprep.subr.mxu0 %v1276
    %3406 = vmatpush1.msra.mxu0 %v1275
    %3407 = vmatprep.subr.mxu0 %v1280
    %3408 = vmatpush1.msra.mxu0 %v1279
    %3409 = vmatprep.subr.mxu0 %v1284
    %3410 = vmatpush1.msra.mxu0 %v1283
    %3411 = vmatprep.subr.mxu0 %v1288
    %3412 = vmatpush1.msra.mxu0 %v1287
    %3413 = vmatprep.subr.mxu0 %v1292
    %3414 = vmatpush1.msra.mxu0 %v1291
    %3415 = vmatprep.subr.mxu0 %v1296
    %3416 = vmatpush1.msra.mxu0 %v1295
    %3417 = vmatprep.subr.mxu0 %v1300
    %3418 = vmatpush1.msra.mxu0 %v1299
    %3419 = vmatprep.subr.mxu0 %v1304
    %3420 = vmatpush1.msra.mxu0 %v1303
    %3421 = vmatprep.subr.mxu0 %v1308
    %3422 = vmatpush1.msra.mxu0 %v1307
    %3423 = vmatprep.subr.mxu0 %v1312
    %3424 = vmatpush1.msra.mxu0 %v1311
    %3425 = vmatprep.subr.mxu0 0.0
    %3426 = vmatpush1.msra.mxu0 0.0
    %3427 = vmatprep.subr.mxu0 0.0
    %3428 = vmatpush1.msra.mxu0 0.0
    %3429 = vmatprep.subr.mxu0 0.0
    %3430 = vmatpush1.msra.mxu0 0.0
    %3431 = vmatprep.subr.mxu0 0.0
    %3432 = vmatpush1.msra.mxu0 0.0
    %3433 = vmatprep.subr.mxu0 0.0
    %3434 = vmatpush1.msra.mxu0 0.0
    %3435 = vmatprep.subr.mxu0 0.0
    %3436 = vmatpush1.msra.mxu0 0.0
    %3437 = vmatprep.subr.mxu0 0.0
    %3438 = vmatpush1.msra.mxu0 0.0
    %3439 = vmatprep.subr.mxu0 0.0
    %3440 = vmatpush1.msra.mxu0 0.0
    %3441 = vmatprep.subr.mxu0 0.0
    %3442 = vmatpush1.msra.mxu0 0.0
    %3443 = vmatprep.subr.mxu0 0.0
    %3444 = vmatpush1.msra.mxu0 0.0
    %3445 = vmatprep.subr.mxu0 0.0
    %3446 = vmatpush1.msra.mxu0 0.0
    %3447 = vmatprep.subr.mxu0 0.0
    %3448 = vmatpush1.msra.mxu0 0.0
    %3449 = vmatprep.subr.mxu0 0.0
    %3450 = vmatpush1.msra.mxu0 0.0
    %3451 = vmatprep.subr.mxu0 0.0
    %3452 = vmatpush1.msra.mxu0 0.0
    %3453 = vmatprep.subr.mxu0 0.0
    %3454 = vmatpush1.msra.mxu0 0.0
    %3455 = vmatprep.subr.mxu0 0.0
    %3456 = vmatpush1.msra.mxu0 0.0
    %3457 = vmatprep.mubr.f32.mxu0 0.0
    %3458 = vmatmul.mubr.f32.gmra.mrb[0].mxu0 %v3382
    %v3459 = vpop.f32.mrb[0].mxu0
    %v3460 = vadd.f32 0.0, %v3459
    %v3461 = vpop.f32.mrb[0].mxu0
    %v3462 = vadd.f32 0.0, %v3461
    %3463 = vmatprep.mubr.f32.mxu0 0.0
    %3464 = vmatmul.mubr.f32.gmra.mrb[0].mxu0 %v3383
    %v3465 = vpop.f32.mrb[0].mxu0
    %v3466 = vadd.f32 0.0, %v3465
    %v3467 = vpop.f32.mrb[0].mxu0
    %v3468 = vadd.f32 0.0, %v3467
    %3469 = vdwg.mxu0
    %3470 = vmatprep.subr.mxu0 %v1254
    %3471 = vmatpush1.msra.mxu0 %v1253
    %3472 = vmatprep.subr.mxu0 %v1258
    %3473 = vmatpush1.msra.mxu0 %v1257
    %3474 = vmatprep.subr.mxu0 %v1262
    %3475 = vmatpush1.msra.mxu0 %v1261
    %3476 = vmatprep.subr.mxu0 %v1266
    %3477 = vmatpush1.msra.mxu0 %v1265
    %3478 = vmatprep.subr.mxu0 %v1270
    %3479 = vmatpush1.msra.mxu0 %v1269
    %3480 = vmatprep.subr.mxu0 %v1274
    %3481 = vmatpush1.msra.mxu0 %v1273
    %3482 = vmatprep.subr.mxu0 %v1278
    %3483 = vmatpush1.msra.mxu0 %v1277
    %3484 = vmatprep.subr.mxu0 %v1282
    %3485 = vmatpush1.msra.mxu0 %v1281
    %3486 = vmatprep.subr.mxu0 %v1286
    %3487 = vmatpush1.msra.mxu0 %v1285
    %3488 = vmatprep.subr.mxu0 %v1290
    %3489 = vmatpush1.msra.mxu0 %v1289
    %3490 = vmatprep.subr.mxu0 %v1294
    %3491 = vmatpush1.msra.mxu0 %v1293
    %3492 = vmatprep.subr.mxu0 %v1298
    %3493 = vmatpush1.msra.mxu0 %v1297
    %3494 = vmatprep.subr.mxu0 %v1302
    %3495 = vmatpush1.msra.mxu0 %v1301
    %3496 = vmatprep.subr.mxu0 %v1306
    %3497 = vmatpush1.msra.mxu0 %v1305
    %3498 = vmatprep.subr.mxu0 %v1310
    %3499 = vmatpush1.msra.mxu0 %v1309
    %3500 = vmatprep.subr.mxu0 %v1314
    %3501 = vmatpush1.msra.mxu0 %v1313
    %3502 = vmatprep.subr.mxu0 0.0
    %3503 = vmatpush1.msra.mxu0 0.0
    %3504 = vmatprep.subr.mxu0 0.0
    %3505 = vmatpush1.msra.mxu0 0.0
    %3506 = vmatprep.subr.mxu0 0.0
    %3507 = vmatpush1.msra.mxu0 0.0
    %3508 = vmatprep.subr.mxu0 0.0
    %3509 = vmatpush1.msra.mxu0 0.0
    %3510 = vmatprep.subr.mxu0 0.0
    %3511 = vmatpush1.msra.mxu0 0.0
    %3512 = vmatprep.subr.mxu0 0.0
    %3513 = vmatpush1.msra.mxu0 0.0
    %3514 = vmatprep.subr.mxu0 0.0
    %3515 = vmatpush1.msra.mxu0 0.0
    %3516 = vmatprep.subr.mxu0 0.0
    %3517 = vmatpush1.msra.mxu0 0.0
    %3518 = vmatprep.subr.mxu0 0.0
    %3519 = vmatpush1.msra.mxu0 0.0
    %3520 = vmatprep.subr.mxu0 0.0
    %3521 = vmatpush1.msra.mxu0 0.0
    %3522 = vmatprep.subr.mxu0 0.0
    %3523 = vmatpush1.msra.mxu0 0.0
    %3524 = vmatprep.subr.mxu0 0.0
    %3525 = vmatpush1.msra.mxu0 0.0
    %3526 = vmatprep.subr.mxu0 0.0
    %3527 = vmatpush1.msra.mxu0 0.0
    %3528 = vmatprep.subr.mxu0 0.0
    %3529 = vmatpush1.msra.mxu0 0.0
    %3530 = vmatprep.subr.mxu0 0.0
    %3531 = vmatpush1.msra.mxu0 0.0
    %3532 = vmatprep.subr.mxu0 0.0
    %3533 = vmatpush1.msra.mxu0 0.0
    %3534 = vmatprep.mubr.f32.mxu0 0.0
    %3535 = vmatmul.mubr.f32.gmra.mrb[0].mxu0 %v3382
    %v3536 = vpop.f32.mrb[0].mxu0
    %v3537 = vadd.f32 0.0, %v3536
    %v3538 = vpop.f32.mrb[0].mxu0
    %v3539 = vadd.f32 0.0, %v3538
    %3540 = vmatprep.mubr.f32.mxu0 0.0
    %3541 = vmatmul.mubr.f32.gmra.mrb[0].mxu0 %v3383
    %v3542 = vpop.f32.mrb[0].mxu0
    %v3543 = vadd.f32 0.0, %v3542
    %v3544 = vpop.f32.mrb[0].mxu0
    %v3545 = vadd.f32 0.0, %v3544
    %3546 = vdwg.mxu0
    %v3547 = vadd.f32 %v3385, %v3460
    %v3548 = vadd.f32 %v3386, %v3462
    %v3549 = vadd.f32 %v3387, %v3537
    %v3550 = vadd.f32 %v3388, %v3539
    %v3551 = vadd.f32 %v3389, %v3466
    %v3552 = vadd.f32 %v3390, %v3468
    %v3553 = vadd.f32 %v3391, %v3543
    %v3554 = vadd.f32 %v3392, %v3545
    %v3555 = vmul.f32 %v3547, 0.5
    %v3556 = vmul.f32 %v3551, 0.5
    %v3557 = vtanh.pop %v3555
    %v3558 = vtanh.pop %v3556
    %v3559 = vmul.f32 %v3557, 0.5
    %v3560 = vmul.f32 %v3558, 0.5
    %v3561 = vadd.f32 %v3559, 0.5
    %v3562 = vadd.f32 %v3560, 0.5
    %v3563 = vmul.f32 %v3548, 0.5
    %v3564 = vmul.f32 %v3552, 0.5
    %v3565 = vtanh.pop %v3563
    %v3566 = vtanh.pop %v3564
    %v3567 = vmul.f32 %v3565, 0.5
    %v3568 = vmul.f32 %v3566, 0.5
    %v3569 = vadd.f32 %v3567, 0.5
    %v3570 = vadd.f32 %v3568, 0.5
    %v3571 = vtanh.pop %v3549
    %v3572 = vtanh.pop %v3553
    %v3573 = vmul.f32 %v3550, 0.5
    %v3574 = vmul.f32 %v3554, 0.5
    %v3575 = vtanh.pop %v3573
    %v3576 = vtanh.pop %v3574
    %v3577 = vmul.f32 %v3575, 0.5
    %v3578 = vmul.f32 %v3576, 0.5
    %v3579 = vadd.f32 %v3577, 0.5
    %v3580 = vadd.f32 %v3578, 0.5
    %v3581 = vmul.f32 %v3569, %v3378
    %v3582 = vmul.f32 %v3570, %v3379
    %v3583 = vmul.f32 %v3561, %v3571
    %v3584 = vmul.f32 %v3562, %v3572
    %v3585 = vadd.f32 %v3581, %v3583
    %v3586 = vadd.f32 %v3582, %v3584
    %v3587 = vtanh.pop %v3585
    %v3588 = vtanh.pop %v3586
    %v3589 = vmul.f32 %v3579, %v3587
    %v3590 = vmul.f32 %v3580, %v3588
    %s3591 = scalar_lea.vmem [#allocation2], 704
    %v3592 = vld [vmem:[%s3591] sm:$0xff]
    %v3593 = vld [vmem:[%s3591 + $0x8] sm:$0xff]
    %v3594 = vld [vmem:[%s3591 + $0x10] sm:$0xff]
    %v3595 = vld [vmem:[%s3591 + $0x18] sm:$0xff]
    %v3596 = vld [vmem:[%s3591 + $0x20] sm:$0xff]
    %v3597 = vld [vmem:[%s3591 + $0x28] sm:$0xff]
    %v3598 = vld [vmem:[%s3591 + $0x30] sm:$0xff]
    %v3599 = vld [vmem:[%s3591 + $0x38] sm:$0xff]
    %3600 = vmatprep.subr.mxu0 %v1252
    %3601 = vmatpush1.msra.mxu0 %v1251
    %3602 = vmatprep.subr.mxu0 %v1256
    %3603 = vmatpush1.msra.mxu0 %v1255
    %3604 = vmatprep.subr.mxu0 %v1260
    %3605 = vmatpush1.msra.mxu0 %v1259
    %3606 = vmatprep.subr.mxu0 %v1264
    %3607 = vmatpush1.msra.mxu0 %v1263
    %3608 = vmatprep.subr.mxu0 %v1268
    %3609 = vmatpush1.msra.mxu0 %v1267
    %3610 = vmatprep.subr.mxu0 %v1272
    %3611 = vmatpush1.msra.mxu0 %v1271
    %3612 = vmatprep.subr.mxu0 %v1276
    %3613 = vmatpush1.msra.mxu0 %v1275
    %3614 = vmatprep.subr.mxu0 %v1280
    %3615 = vmatpush1.msra.mxu0 %v1279
    %3616 = vmatprep.subr.mxu0 %v1284
    %3617 = vmatpush1.msra.mxu0 %v1283
    %3618 = vmatprep.subr.mxu0 %v1288
    %3619 = vmatpush1.msra.mxu0 %v1287
    %3620 = vmatprep.subr.mxu0 %v1292
    %3621 = vmatpush1.msra.mxu0 %v1291
    %3622 = vmatprep.subr.mxu0 %v1296
    %3623 = vmatpush1.msra.mxu0 %v1295
    %3624 = vmatprep.subr.mxu0 %v1300
    %3625 = vmatpush1.msra.mxu0 %v1299
    %3626 = vmatprep.subr.mxu0 %v1304
    %3627 = vmatpush1.msra.mxu0 %v1303
    %3628 = vmatprep.subr.mxu0 %v1308
    %3629 = vmatpush1.msra.mxu0 %v1307
    %3630 = vmatprep.subr.mxu0 %v1312
    %3631 = vmatpush1.msra.mxu0 %v1311
    %3632 = vmatprep.subr.mxu0 0.0
    %3633 = vmatpush1.msra.mxu0 0.0
    %3634 = vmatprep.subr.mxu0 0.0
    %3635 = vmatpush1.msra.mxu0 0.0
    %3636 = vmatprep.subr.mxu0 0.0
    %3637 = vmatpush1.msra.mxu0 0.0
    %3638 = vmatprep.subr.mxu0 0.0
    %3639 = vmatpush1.msra.mxu0 0.0
    %3640 = vmatprep.subr.mxu0 0.0
    %3641 = vmatpush1.msra.mxu0 0.0
    %3642 = vmatprep.subr.mxu0 0.0
    %3643 = vmatpush1.msra.mxu0 0.0
    %3644 = vmatprep.subr.mxu0 0.0
    %3645 = vmatpush1.msra.mxu0 0.0
    %3646 = vmatprep.subr.mxu0 0.0
    %3647 = vmatpush1.msra.mxu0 0.0
    %3648 = vmatprep.subr.mxu0 0.0
    %3649 = vmatpush1.msra.mxu0 0.0
    %3650 = vmatprep.subr.mxu0 0.0
    %3651 = vmatpush1.msra.mxu0 0.0
    %3652 = vmatprep.subr.mxu0 0.0
    %3653 = vmatpush1.msra.mxu0 0.0
    %3654 = vmatprep.subr.mxu0 0.0
    %3655 = vmatpush1.msra.mxu0 0.0
    %3656 = vmatprep.subr.mxu0 0.0
    %3657 = vmatpush1.msra.mxu0 0.0
    %3658 = vmatprep.subr.mxu0 0.0
    %3659 = vmatpush1.msra.mxu0 0.0
    %3660 = vmatprep.subr.mxu0 0.0
    %3661 = vmatpush1.msra.mxu0 0.0
    %3662 = vmatprep.subr.mxu0 0.0
    %3663 = vmatpush1.msra.mxu0 0.0
    %3664 = vmatprep.mubr.f32.mxu0 0.0
    %3665 = vmatmul.mubr.f32.gmra.mrb[0].mxu0 %v3589
    %v3666 = vpop.f32.mrb[0].mxu0
    %v3667 = vadd.f32 0.0, %v3666
    %v3668 = vpop.f32.mrb[0].mxu0
    %v3669 = vadd.f32 0.0, %v3668
    %3670 = vmatprep.mubr.f32.mxu0 0.0
    %3671 = vmatmul.mubr.f32.gmra.mrb[0].mxu0 %v3590
    %v3672 = vpop.f32.mrb[0].mxu0
    %v3673 = vadd.f32 0.0, %v3672
    %v3674 = vpop.f32.mrb[0].mxu0
    %v3675 = vadd.f32 0.0, %v3674
    %3676 = vdwg.mxu0
    %3677 = vmatprep.subr.mxu0 %v1254
    %3678 = vmatpush1.msra.mxu0 %v1253
    %3679 = vmatprep.subr.mxu0 %v1258
    %3680 = vmatpush1.msra.mxu0 %v1257
    %3681 = vmatprep.subr.mxu0 %v1262
    %3682 = vmatpush1.msra.mxu0 %v1261
    %3683 = vmatprep.subr.mxu0 %v1266
    %3684 = vmatpush1.msra.mxu0 %v1265
    %3685 = vmatprep.subr.mxu0 %v1270
    %3686 = vmatpush1.msra.mxu0 %v1269
    %3687 = vmatprep.subr.mxu0 %v1274
    %3688 = vmatpush1.msra.mxu0 %v1273
    %3689 = vmatprep.subr.mxu0 %v1278
    %3690 = vmatpush1.msra.mxu0 %v1277
    %3691 = vmatprep.subr.mxu0 %v1282
    %3692 = vmatpush1.msra.mxu0 %v1281
    %3693 = vmatprep.subr.mxu0 %v1286
    %3694 = vmatpush1.msra.mxu0 %v1285
    %3695 = vmatprep.subr.mxu0 %v1290
    %3696 = vmatpush1.msra.mxu0 %v1289
    %3697 = vmatprep.subr.mxu0 %v1294
    %3698 = vmatpush1.msra.mxu0 %v1293
    %3699 = vmatprep.subr.mxu0 %v1298
    %3700 = vmatpush1.msra.mxu0 %v1297
    %3701 = vmatprep.subr.mxu0 %v1302
    %3702 = vmatpush1.msra.mxu0 %v1301
    %3703 = vmatprep.subr.mxu0 %v1306
    %3704 = vmatpush1.msra.mxu0 %v1305
    %3705 = vmatprep.subr.mxu0 %v1310
    %3706 = vmatpush1.msra.mxu0 %v1309
    %3707 = vmatprep.subr.mxu0 %v1314
    %3708 = vmatpush1.msra.mxu0 %v1313
    %3709 = vmatprep.subr.mxu0 0.0
    %3710 = vmatpush1.msra.mxu0 0.0
    %3711 = vmatprep.subr.mxu0 0.0
    %3712 = vmatpush1.msra.mxu0 0.0
    %3713 = vmatprep.subr.mxu0 0.0
    %3714 = vmatpush1.msra.mxu0 0.0
    %3715 = vmatprep.subr.mxu0 0.0
    %3716 = vmatpush1.msra.mxu0 0.0
    %3717 = vmatprep.subr.mxu0 0.0
    %3718 = vmatpush1.msra.mxu0 0.0
    %3719 = vmatprep.subr.mxu0 0.0
    %3720 = vmatpush1.msra.mxu0 0.0
    %3721 = vmatprep.subr.mxu0 0.0
    %3722 = vmatpush1.msra.mxu0 0.0
    %3723 = vmatprep.subr.mxu0 0.0
    %3724 = vmatpush1.msra.mxu0 0.0
    %3725 = vmatprep.subr.mxu0 0.0
    %3726 = vmatpush1.msra.mxu0 0.0
    %3727 = vmatprep.subr.mxu0 0.0
    %3728 = vmatpush1.msra.mxu0 0.0
    %3729 = vmatprep.subr.mxu0 0.0
    %3730 = vmatpush1.msra.mxu0 0.0
    %3731 = vmatprep.subr.mxu0 0.0
    %3732 = vmatpush1.msra.mxu0 0.0
    %3733 = vmatprep.subr.mxu0 0.0
    %3734 = vmatpush1.msra.mxu0 0.0
    %3735 = vmatprep.subr.mxu0 0.0
    %3736 = vmatpush1.msra.mxu0 0.0
    %3737 = vmatprep.subr.mxu0 0.0
    %3738 = vmatpush1.msra.mxu0 0.0
    %3739 = vmatprep.subr.mxu0 0.0
    %3740 = vmatpush1.msra.mxu0 0.0
    %3741 = vmatprep.mubr.f32.mxu0 0.0
    %3742 = vmatmul.mubr.f32.gmra.mrb[0].mxu0 %v3589
    %v3743 = vpop.f32.mrb[0].mxu0
    %v3744 = vadd.f32 0.0, %v3743
    %v3745 = vpop.f32.mrb[0].mxu0
    %v3746 = vadd.f32 0.0, %v3745
    %3747 = vmatprep.mubr.f32.mxu0 0.0
    %3748 = vmatmul.mubr.f32.gmra.mrb[0].mxu0 %v3590
    %v3749 = vpop.f32.mrb[0].mxu0
    %v3750 = vadd.f32 0.0, %v3749
    %v3751 = vpop.f32.mrb[0].mxu0
    %v3752 = vadd.f32 0.0, %v3751
    %3753 = vdwg.mxu0
    %v3754 = vadd.f32 %v3592, %v3667
    %v3755 = vadd.f32 %v3593, %v3669
    %v3756 = vadd.f32 %v3594, %v3744
    %v3757 = vadd.f32 %v3595, %v3746
    %v3758 = vadd.f32 %v3596, %v3673
    %v3759 = vadd.f32 %v3597, %v3675
    %v3760 = vadd.f32 %v3598, %v3750
    %v3761 = vadd.f32 %v3599, %v3752
    %v3762 = vmul.f32 %v3754, 0.5
    %v3763 = vmul.f32 %v3758, 0.5
    %v3764 = vtanh.pop %v3762
    %v3765 = vtanh.pop %v3763
    %v3766 = vmul.f32 %v3764, 0.5
    %v3767 = vmul.f32 %v3765, 0.5
    %v3768 = vadd.f32 %v3766, 0.5
    %v3769 = vadd.f32 %v3767, 0.5
    %v3770 = vmul.f32 %v3755, 0.5
    %v3771 = vmul.f32 %v3759, 0.5
    %v3772 = vtanh.pop %v3770
    %v3773 = vtanh.pop %v3771
    %v3774 = vmul.f32 %v3772, 0.5
    %v3775 = vmul.f32 %v3773, 0.5
    %v3776 = vadd.f32 %v3774, 0.5
    %v3777 = vadd.f32 %v3775, 0.5
    %v3778 = vtanh.pop %v3756
    %v3779 = vtanh.pop %v3760
    %v3780 = vmul.f32 %v3757, 0.5
    %v3781 = vmul.f32 %v3761, 0.5
    %v3782 = vtanh.pop %v3780
    %v3783 = vtanh.pop %v3781
    %v3784 = vmul.f32 %v3782, 0.5
    %v3785 = vmul.f32 %v3783, 0.5
    %v3786 = vadd.f32 %v3784, 0.5
    %v3787 = vadd.f32 %v3785, 0.5
    %v3788 = vmul.f32 %v3776, %v3585
    %v3789 = vmul.f32 %v3777, %v3586
    %v3790 = vmul.f32 %v3768, %v3778
    %v3791 = vmul.f32 %v3769, %v3779
    %v3792 = vadd.f32 %v3788, %v3790
    %v3793 = vadd.f32 %v3789, %v3791
    %v3794 = vtanh.pop %v3792
    %v3795 = vtanh.pop %v3793
    %v3796 = vmul.f32 %v3786, %v3794
    %v3797 = vmul.f32 %v3787, %v3795
    %s3798 = scalar_lea.vmem [#allocation2], 768
    %v3799 = vld [vmem:[%s3798] sm:$0xff]
    %v3800 = vld [vmem:[%s3798 + $0x8] sm:$0xff]
    %v3801 = vld [vmem:[%s3798 + $0x10] sm:$0xff]
    %v3802 = vld [vmem:[%s3798 + $0x18] sm:$0xff]
    %v3803 = vld [vmem:[%s3798 + $0x20] sm:$0xff]
    %v3804 = vld [vmem:[%s3798 + $0x28] sm:$0xff]
    %v3805 = vld [vmem:[%s3798 + $0x30] sm:$0xff]
    %v3806 = vld [vmem:[%s3798 + $0x38] sm:$0xff]
    %3807 = vmatprep.subr.mxu0 %v1252
    %3808 = vmatpush1.msra.mxu0 %v1251
    %3809 = vmatprep.subr.mxu0 %v1256
    %3810 = vmatpush1.msra.mxu0 %v1255
    %3811 = vmatprep.subr.mxu0 %v1260
    %3812 = vmatpush1.msra.mxu0 %v1259
    %3813 = vmatprep.subr.mxu0 %v1264
    %3814 = vmatpush1.msra.mxu0 %v1263
    %3815 = vmatprep.subr.mxu0 %v1268
    %3816 = vmatpush1.msra.mxu0 %v1267
    %3817 = vmatprep.subr.mxu0 %v1272
    %3818 = vmatpush1.msra.mxu0 %v1271
    %3819 = vmatprep.subr.mxu0 %v1276
    %3820 = vmatpush1.msra.mxu0 %v1275
    %3821 = vmatprep.subr.mxu0 %v1280
    %3822 = vmatpush1.msra.mxu0 %v1279
    %3823 = vmatprep.subr.mxu0 %v1284
    %3824 = vmatpush1.msra.mxu0 %v1283
    %3825 = vmatprep.subr.mxu0 %v1288
    %3826 = vmatpush1.msra.mxu0 %v1287
    %3827 = vmatprep.subr.mxu0 %v1292
    %3828 = vmatpush1.msra.mxu0 %v1291
    %3829 = vmatprep.subr.mxu0 %v1296
    %3830 = vmatpush1.msra.mxu0 %v1295
    %3831 = vmatprep.subr.mxu0 %v1300
    %3832 = vmatpush1.msra.mxu0 %v1299
    %3833 = vmatprep.subr.mxu0 %v1304
    %3834 = vmatpush1.msra.mxu0 %v1303
    %3835 = vmatprep.subr.mxu0 %v1308
    %3836 = vmatpush1.msra.mxu0 %v1307
    %3837 = vmatprep.subr.mxu0 %v1312
    %3838 = vmatpush1.msra.mxu0 %v1311
    %3839 = vmatprep.subr.mxu0 0.0
    %3840 = vmatpush1.msra.mxu0 0.0
    %3841 = vmatprep.subr.mxu0 0.0
    %3842 = vmatpush1.msra.mxu0 0.0
    %3843 = vmatprep.subr.mxu0 0.0
    %3844 = vmatpush1.msra.mxu0 0.0
    %3845 = vmatprep.subr.mxu0 0.0
    %3846 = vmatpush1.msra.mxu0 0.0
    %3847 = vmatprep.subr.mxu0 0.0
    %3848 = vmatpush1.msra.mxu0 0.0
    %3849 = vmatprep.subr.mxu0 0.0
    %3850 = vmatpush1.msra.mxu0 0.0
    %3851 = vmatprep.subr.mxu0 0.0
    %3852 = vmatpush1.msra.mxu0 0.0
    %3853 = vmatprep.subr.mxu0 0.0
    %3854 = vmatpush1.msra.mxu0 0.0
    %3855 = vmatprep.subr.mxu0 0.0
    %3856 = vmatpush1.msra.mxu0 0.0
    %3857 = vmatprep.subr.mxu0 0.0
    %3858 = vmatpush1.msra.mxu0 0.0
    %3859 = vmatprep.subr.mxu0 0.0
    %3860 = vmatpush1.msra.mxu0 0.0
    %3861 = vmatprep.subr.mxu0 0.0
    %3862 = vmatpush1.msra.mxu0 0.0
    %3863 = vmatprep.subr.mxu0 0.0
    %3864 = vmatpush1.msra.mxu0 0.0
    %3865 = vmatprep.subr.mxu0 0.0
    %3866 = vmatpush1.msra.mxu0 0.0
    %3867 = vmatprep.subr.mxu0 0.0
    %3868 = vmatpush1.msra.mxu0 0.0
    %3869 = vmatprep.subr.mxu0 0.0
    %3870 = vmatpush1.msra.mxu0 0.0
    %3871 = vmatprep.mubr.f32.mxu0 0.0
    %3872 = vmatmul.mubr.f32.gmra.mrb[0].mxu0 %v3796
    %v3873 = vpop.f32.mrb[0].mxu0
    %v3874 = vadd.f32 0.0, %v3873
    %v3875 = vpop.f32.mrb[0].mxu0
    %v3876 = vadd.f32 0.0, %v3875
    %3877 = vmatprep.mubr.f32.mxu0 0.0
    %3878 = vmatmul.mubr.f32.gmra.mrb[0].mxu0 %v3797
    %v3879 = vpop.f32.mrb[0].mxu0
    %v3880 = vadd.f32 0.0, %v3879
    %v3881 = vpop.f32.mrb[0].mxu0
    %v3882 = vadd.f32 0.0, %v3881
    %3883 = vdwg.mxu0
    %3884 = vmatprep.subr.mxu0 %v1254
    %3885 = vmatpush1.msra.mxu0 %v1253
    %3886 = vmatprep.subr.mxu0 %v1258
    %3887 = vmatpush1.msra.mxu0 %v1257
    %3888 = vmatprep.subr.mxu0 %v1262
    %3889 = vmatpush1.msra.mxu0 %v1261
    %3890 = vmatprep.subr.mxu0 %v1266
    %3891 = vmatpush1.msra.mxu0 %v1265
    %3892 = vmatprep.subr.mxu0 %v1270
    %3893 = vmatpush1.msra.mxu0 %v1269
    %3894 = vmatprep.subr.mxu0 %v1274
    %3895 = vmatpush1.msra.mxu0 %v1273
    %3896 = vmatprep.subr.mxu0 %v1278
    %3897 = vmatpush1.msra.mxu0 %v1277
    %3898 = vmatprep.subr.mxu0 %v1282
    %3899 = vmatpush1.msra.mxu0 %v1281
    %3900 = vmatprep.subr.mxu0 %v1286
    %3901 = vmatpush1.msra.mxu0 %v1285
    %3902 = vmatprep.subr.mxu0 %v1290
    %3903 = vmatpush1.msra.mxu0 %v1289
    %3904 = vmatprep.subr.mxu0 %v1294
    %3905 = vmatpush1.msra.mxu0 %v1293
    %3906 = vmatprep.subr.mxu0 %v1298
    %3907 = vmatpush1.msra.mxu0 %v1297
    %3908 = vmatprep.subr.mxu0 %v1302
    %3909 = vmatpush1.msra.mxu0 %v1301
    %3910 = vmatprep.subr.mxu0 %v1306
    %3911 = vmatpush1.msra.mxu0 %v1305
    %3912 = vmatprep.subr.mxu0 %v1310
    %3913 = vmatpush1.msra.mxu0 %v1309
    %3914 = vmatprep.subr.mxu0 %v1314
    %3915 = vmatpush1.msra.mxu0 %v1313
    %3916 = vmatprep.subr.mxu0 0.0
    %3917 = vmatpush1.msra.mxu0 0.0
    %3918 = vmatprep.subr.mxu0 0.0
    %3919 = vmatpush1.msra.mxu0 0.0
    %3920 = vmatprep.subr.mxu0 0.0
    %3921 = vmatpush1.msra.mxu0 0.0
    %3922 = vmatprep.subr.mxu0 0.0
    %3923 = vmatpush1.msra.mxu0 0.0
    %3924 = vmatprep.subr.mxu0 0.0
    %3925 = vmatpush1.msra.mxu0 0.0
    %3926 = vmatprep.subr.mxu0 0.0
    %3927 = vmatpush1.msra.mxu0 0.0
    %3928 = vmatprep.subr.mxu0 0.0
    %3929 = vmatpush1.msra.mxu0 0.0
    %3930 = vmatprep.subr.mxu0 0.0
    %3931 = vmatpush1.msra.mxu0 0.0
    %3932 = vmatprep.subr.mxu0 0.0
    %3933 = vmatpush1.msra.mxu0 0.0
    %3934 = vmatprep.subr.mxu0 0.0
    %3935 = vmatpush1.msra.mxu0 0.0
    %3936 = vmatprep.subr.mxu0 0.0
    %3937 = vmatpush1.msra.mxu0 0.0
    %3938 = vmatprep.subr.mxu0 0.0
    %3939 = vmatpush1.msra.mxu0 0.0
    %3940 = vmatprep.subr.mxu0 0.0
    %3941 = vmatpush1.msra.mxu0 0.0
    %3942 = vmatprep.subr.mxu0 0.0
    %3943 = vmatpush1.msra.mxu0 0.0
    %3944 = vmatprep.subr.mxu0 0.0
    %3945 = vmatpush1.msra.mxu0 0.0
    %3946 = vmatprep.subr.mxu0 0.0
    %3947 = vmatpush1.msra.mxu0 0.0
    %3948 = vmatprep.mubr.f32.mxu0 0.0
    %3949 = vmatmul.mubr.f32.gmra.mrb[0].mxu0 %v3796
    %v3950 = vpop.f32.mrb[0].mxu0
    %v3951 = vadd.f32 0.0, %v3950
    %v3952 = vpop.f32.mrb[0].mxu0
    %v3953 = vadd.f32 0.0, %v3952
    %3954 = vmatprep.mubr.f32.mxu0 0.0
    %3955 = vmatmul.mubr.f32.gmra.mrb[0].mxu0 %v3797
    %v3956 = vpop.f32.mrb[0].mxu0
    %v3957 = vadd.f32 0.0, %v3956
    %v3958 = vpop.f32.mrb[0].mxu0
    %v3959 = vadd.f32 0.0, %v3958
    %3960 = vdwg.mxu0
    %v3961 = vadd.f32 %v3799, %v3874
    %v3962 = vadd.f32 %v3800, %v3876
    %v3963 = vadd.f32 %v3801, %v3951
    %v3964 = vadd.f32 %v3802, %v3953
    %v3965 = vadd.f32 %v3803, %v3880
    %v3966 = vadd.f32 %v3804, %v3882
    %v3967 = vadd.f32 %v3805, %v3957
    %v3968 = vadd.f32 %v3806, %v3959
    %v3969 = vmul.f32 %v3961, 0.5
    %v3970 = vmul.f32 %v3965, 0.5
    %v3971 = vtanh.pop %v3969
    %v3972 = vtanh.pop %v3970
    %v3973 = vmul.f32 %v3971, 0.5
    %v3974 = vmul.f32 %v3972, 0.5
    %v3975 = vadd.f32 %v3973, 0.5
    %v3976 = vadd.f32 %v3974, 0.5
    %v3977 = vmul.f32 %v3962, 0.5
    %v3978 = vmul.f32 %v3966, 0.5
    %v3979 = vtanh.pop %v3977
    %v3980 = vtanh.pop %v3978
    %v3981 = vmul.f32 %v3979, 0.5
    %v3982 = vmul.f32 %v3980, 0.5
    %v3983 = vadd.f32 %v3981, 0.5
    %v3984 = vadd.f32 %v3982, 0.5
    %v3985 = vtanh.pop %v3963
    %v3986 = vtanh.pop %v3967
    %v3987 = vmul.f32 %v3964, 0.5
    %v3988 = vmul.f32 %v3968, 0.5
    %v3989 = vtanh.pop %v3987
    %v3990 = vtanh.pop %v3988
    %v3991 = vmul.f32 %v3989, 0.5
    %v3992 = vmul.f32 %v3990, 0.5
    %v3993 = vadd.f32 %v3991, 0.5
    %v3994 = vadd.f32 %v3992, 0.5
    %v3995 = vmul.f32 %v3983, %v3792
    %v3996 = vmul.f32 %v3984, %v3793
    %v3997 = vmul.f32 %v3975, %v3985
    %v3998 = vmul.f32 %v3976, %v3986
    %v3999 = vadd.f32 %v3995, %v3997
    %v4000 = vadd.f32 %v3996, %v3998
    %v4001 = vtanh.pop %v3999
    %v4002 = vtanh.pop %v4000
    %v4003 = vmul.f32 %v3993, %v4001
    %v4004 = vmul.f32 %v3994, %v4002
    %s4005 = scalar_lea.vmem [#allocation2], 832
    %v4006 = vld [vmem:[%s4005] sm:$0xff]
    %v4007 = vld [vmem:[%s4005 + $0x8] sm:$0xff]
    %v4008 = vld [vmem:[%s4005 + $0x10] sm:$0xff]
    %v4009 = vld [vmem:[%s4005 + $0x18] sm:$0xff]
    %v4010 = vld [vmem:[%s4005 + $0x20] sm:$0xff]
    %v4011 = vld [vmem:[%s4005 + $0x28] sm:$0xff]
    %v4012 = vld [vmem:[%s4005 + $0x30] sm:$0xff]
    %v4013 = vld [vmem:[%s4005 + $0x38] sm:$0xff]
    %4014 = vmatprep.subr.mxu0 %v1252
    %4015 = vmatpush1.msra.mxu0 %v1251
    %4016 = vmatprep.subr.mxu0 %v1256
    %4017 = vmatpush1.msra.mxu0 %v1255
    %4018 = vmatprep.subr.mxu0 %v1260
    %4019 = vmatpush1.msra.mxu0 %v1259
    %4020 = vmatprep.subr.mxu0 %v1264
    %4021 = vmatpush1.msra.mxu0 %v1263
    %4022 = vmatprep.subr.mxu0 %v1268
    %4023 = vmatpush1.msra.mxu0 %v1267
    %4024 = vmatprep.subr.mxu0 %v1272
    %4025 = vmatpush1.msra.mxu0 %v1271
    %4026 = vmatprep.subr.mxu0 %v1276
    %4027 = vmatpush1.msra.mxu0 %v1275
    %4028 = vmatprep.subr.mxu0 %v1280
    %4029 = vmatpush1.msra.mxu0 %v1279
    %4030 = vmatprep.subr.mxu0 %v1284
    %4031 = vmatpush1.msra.mxu0 %v1283
    %4032 = vmatprep.subr.mxu0 %v1288
    %4033 = vmatpush1.msra.mxu0 %v1287
    %4034 = vmatprep.subr.mxu0 %v1292
    %4035 = vmatpush1.msra.mxu0 %v1291
    %4036 = vmatprep.subr.mxu0 %v1296
    %4037 = vmatpush1.msra.mxu0 %v1295
    %4038 = vmatprep.subr.mxu0 %v1300
    %4039 = vmatpush1.msra.mxu0 %v1299
    %4040 = vmatprep.subr.mxu0 %v1304
    %4041 = vmatpush1.msra.mxu0 %v1303
    %4042 = vmatprep.subr.mxu0 %v1308
    %4043 = vmatpush1.msra.mxu0 %v1307
    %4044 = vmatprep.subr.mxu0 %v1312
    %4045 = vmatpush1.msra.mxu0 %v1311
    %4046 = vmatprep.subr.mxu0 0.0
    %4047 = vmatpush1.msra.mxu0 0.0
    %4048 = vmatprep.subr.mxu0 0.0
    %4049 = vmatpush1.msra.mxu0 0.0
    %4050 = vmatprep.subr.mxu0 0.0
    %4051 = vmatpush1.msra.mxu0 0.0
    %4052 = vmatprep.subr.mxu0 0.0
    %4053 = vmatpush1.msra.mxu0 0.0
    %4054 = vmatprep.subr.mxu0 0.0
    %4055 = vmatpush1.msra.mxu0 0.0
    %4056 = vmatprep.subr.mxu0 0.0
    %4057 = vmatpush1.msra.mxu0 0.0
    %4058 = vmatprep.subr.mxu0 0.0
    %4059 = vmatpush1.msra.mxu0 0.0
    %4060 = vmatprep.subr.mxu0 0.0
    %4061 = vmatpush1.msra.mxu0 0.0
    %4062 = vmatprep.subr.mxu0 0.0
    %4063 = vmatpush1.msra.mxu0 0.0
    %4064 = vmatprep.subr.mxu0 0.0
    %4065 = vmatpush1.msra.mxu0 0.0
    %4066 = vmatprep.subr.mxu0 0.0
    %4067 = vmatpush1.msra.mxu0 0.0
    %4068 = vmatprep.subr.mxu0 0.0
    %4069 = vmatpush1.msra.mxu0 0.0
    %4070 = vmatprep.subr.mxu0 0.0
    %4071 = vmatpush1.msra.mxu0 0.0
    %4072 = vmatprep.subr.mxu0 0.0
    %4073 = vmatpush1.msra.mxu0 0.0
    %4074 = vmatprep.subr.mxu0 0.0
    %4075 = vmatpush1.msra.mxu0 0.0
    %4076 = vmatprep.subr.mxu0 0.0
    %4077 = vmatpush1.msra.mxu0 0.0
    %4078 = vmatprep.mubr.f32.mxu0 0.0
    %4079 = vmatmul.mubr.f32.gmra.mrb[0].mxu0 %v4003
    %v4080 = vpop.f32.mrb[0].mxu0
    %v4081 = vadd.f32 0.0, %v4080
    %v4082 = vpop.f32.mrb[0].mxu0
    %v4083 = vadd.f32 0.0, %v4082
    %4084 = vmatprep.mubr.f32.mxu0 0.0
    %4085 = vmatmul.mubr.f32.gmra.mrb[0].mxu0 %v4004
    %v4086 = vpop.f32.mrb[0].mxu0
    %v4087 = vadd.f32 0.0, %v4086
    %v4088 = vpop.f32.mrb[0].mxu0
    %v4089 = vadd.f32 0.0, %v4088
    %4090 = vdwg.mxu0
    %4091 = vmatprep.subr.mxu0 %v1254
    %4092 = vmatpush1.msra.mxu0 %v1253
    %4093 = vmatprep.subr.mxu0 %v1258
    %4094 = vmatpush1.msra.mxu0 %v1257
    %4095 = vmatprep.subr.mxu0 %v1262
    %4096 = vmatpush1.msra.mxu0 %v1261
    %4097 = vmatprep.subr.mxu0 %v1266
    %4098 = vmatpush1.msra.mxu0 %v1265
    %4099 = vmatprep.subr.mxu0 %v1270
    %4100 = vmatpush1.msra.mxu0 %v1269
    %4101 = vmatprep.subr.mxu0 %v1274
    %4102 = vmatpush1.msra.mxu0 %v1273
    %4103 = vmatprep.subr.mxu0 %v1278
    %4104 = vmatpush1.msra.mxu0 %v1277
    %4105 = vmatprep.subr.mxu0 %v1282
    %4106 = vmatpush1.msra.mxu0 %v1281
    %4107 = vmatprep.subr.mxu0 %v1286
    %4108 = vmatpush1.msra.mxu0 %v1285
    %4109 = vmatprep.subr.mxu0 %v1290
    %4110 = vmatpush1.msra.mxu0 %v1289
    %4111 = vmatprep.subr.mxu0 %v1294
    %4112 = vmatpush1.msra.mxu0 %v1293
    %4113 = vmatprep.subr.mxu0 %v1298
    %4114 = vmatpush1.msra.mxu0 %v1297
    %4115 = vmatprep.subr.mxu0 %v1302
    %4116 = vmatpush1.msra.mxu0 %v1301
    %4117 = vmatprep.subr.mxu0 %v1306
    %4118 = vmatpush1.msra.mxu0 %v1305
    %4119 = vmatprep.subr.mxu0 %v1310
    %4120 = vmatpush1.msra.mxu0 %v1309
    %4121 = vmatprep.subr.mxu0 %v1314
    %4122 = vmatpush1.msra.mxu0 %v1313
    %4123 = vmatprep.subr.mxu0 0.0
    %4124 = vmatpush1.msra.mxu0 0.0
    %4125 = vmatprep.subr.mxu0 0.0
    %4126 = vmatpush1.msra.mxu0 0.0
    %4127 = vmatprep.subr.mxu0 0.0
    %4128 = vmatpush1.msra.mxu0 0.0
    %4129 = vmatprep.subr.mxu0 0.0
    %4130 = vmatpush1.msra.mxu0 0.0
    %4131 = vmatprep.subr.mxu0 0.0
    %4132 = vmatpush1.msra.mxu0 0.0
    %4133 = vmatprep.subr.mxu0 0.0
    %4134 = vmatpush1.msra.mxu0 0.0
    %4135 = vmatprep.subr.mxu0 0.0
    %4136 = vmatpush1.msra.mxu0 0.0
    %4137 = vmatprep.subr.mxu0 0.0
    %4138 = vmatpush1.msra.mxu0 0.0
    %4139 = vmatprep.subr.mxu0 0.0
    %4140 = vmatpush1.msra.mxu0 0.0
    %4141 = vmatprep.subr.mxu0 0.0
    %4142 = vmatpush1.msra.mxu0 0.0
    %4143 = vmatprep.subr.mxu0 0.0
    %4144 = vmatpush1.msra.mxu0 0.0
    %4145 = vmatprep.subr.mxu0 0.0
    %4146 = vmatpush1.msra.mxu0 0.0
    %4147 = vmatprep.subr.mxu0 0.0
    %4148 = vmatpush1.msra.mxu0 0.0
    %4149 = vmatprep.subr.mxu0 0.0
    %4150 = vmatpush1.msra.mxu0 0.0
    %4151 = vmatprep.subr.mxu0 0.0
    %4152 = vmatpush1.msra.mxu0 0.0
    %4153 = vmatprep.subr.mxu0 0.0
    %4154 = vmatpush1.msra.mxu0 0.0
    %4155 = vmatprep.mubr.f32.mxu0 0.0
    %4156 = vmatmul.mubr.f32.gmra.mrb[0].mxu0 %v4003
    %v4157 = vpop.f32.mrb[0].mxu0
    %v4158 = vadd.f32 0.0, %v4157
    %v4159 = vpop.f32.mrb[0].mxu0
    %v4160 = vadd.f32 0.0, %v4159
    %4161 = vmatprep.mubr.f32.mxu0 0.0
    %4162 = vmatmul.mubr.f32.gmra.mrb[0].mxu0 %v4004
    %v4163 = vpop.f32.mrb[0].mxu0
    %v4164 = vadd.f32 0.0, %v4163
    %v4165 = vpop.f32.mrb[0].mxu0
    %v4166 = vadd.f32 0.0, %v4165
    %4167 = vdwg.mxu0
    %v4168 = vadd.f32 %v4006, %v4081
    %v4169 = vadd.f32 %v4007, %v4083
    %v4170 = vadd.f32 %v4008, %v4158
    %v4171 = vadd.f32 %v4009, %v4160
    %v4172 = vadd.f32 %v4010, %v4087
    %v4173 = vadd.f32 %v4011, %v4089
    %v4174 = vadd.f32 %v4012, %v4164
    %v4175 = vadd.f32 %v4013, %v4166
    %v4176 = vmul.f32 %v4168, 0.5
    %v4177 = vmul.f32 %v4172, 0.5
    %v4178 = vtanh.pop %v4176
    %v4179 = vtanh.pop %v4177
    %v4180 = vmul.f32 %v4178, 0.5
    %v4181 = vmul.f32 %v4179, 0.5
    %v4182 = vadd.f32 %v4180, 0.5
    %v4183 = vadd.f32 %v4181, 0.5
    %v4184 = vmul.f32 %v4169, 0.5
    %v4185 = vmul.f32 %v4173, 0.5
    %v4186 = vtanh.pop %v4184
    %v4187 = vtanh.pop %v4185
    %v4188 = vmul.f32 %v4186, 0.5
    %v4189 = vmul.f32 %v4187, 0.5
    %v4190 = vadd.f32 %v4188, 0.5
    %v4191 = vadd.f32 %v4189, 0.5
    %v4192 = vtanh.pop %v4170
    %v4193 = vtanh.pop %v4174
    %v4194 = vmul.f32 %v4171, 0.5
    %v4195 = vmul.f32 %v4175, 0.5
    %v4196 = vtanh.pop %v4194
    %v4197 = vtanh.pop %v4195
    %v4198 = vmul.f32 %v4196, 0.5
    %v4199 = vmul.f32 %v4197, 0.5
    %v4200 = vadd.f32 %v4198, 0.5
    %v4201 = vadd.f32 %v4199, 0.5
    %v4202 = vmul.f32 %v4190, %v3999
    %v4203 = vmul.f32 %v4191, %v4000
    %v4204 = vmul.f32 %v4182, %v4192
    %v4205 = vmul.f32 %v4183, %v4193
    %v4206 = vadd.f32 %v4202, %v4204
    %v4207 = vadd.f32 %v4203, %v4205
    %v4208 = vtanh.pop %v4206
    %v4209 = vtanh.pop %v4207
    %v4210 = vmul.f32 %v4200, %v4208
    %v4211 = vmul.f32 %v4201, %v4209
    %s4212 = scalar_lea.vmem [#allocation2], 896
    %v4213 = vld [vmem:[%s4212] sm:$0xff]
    %v4214 = vld [vmem:[%s4212 + $0x8] sm:$0xff]
    %v4215 = vld [vmem:[%s4212 + $0x10] sm:$0xff]
    %v4216 = vld [vmem:[%s4212 + $0x18] sm:$0xff]
    %v4217 = vld [vmem:[%s4212 + $0x20] sm:$0xff]
    %v4218 = vld [vmem:[%s4212 + $0x28] sm:$0xff]
    %v4219 = vld [vmem:[%s4212 + $0x30] sm:$0xff]
    %v4220 = vld [vmem:[%s4212 + $0x38] sm:$0xff]
    %4221 = vmatprep.subr.mxu0 %v1252
    %4222 = vmatpush1.msra.mxu0 %v1251
    %4223 = vmatprep.subr.mxu0 %v1256
    %4224 = vmatpush1.msra.mxu0 %v1255
    %4225 = vmatprep.subr.mxu0 %v1260
    %4226 = vmatpush1.msra.mxu0 %v1259
    %4227 = vmatprep.subr.mxu0 %v1264
    %4228 = vmatpush1.msra.mxu0 %v1263
    %4229 = vmatprep.subr.mxu0 %v1268
    %4230 = vmatpush1.msra.mxu0 %v1267
    %4231 = vmatprep.subr.mxu0 %v1272
    %4232 = vmatpush1.msra.mxu0 %v1271
    %4233 = vmatprep.subr.mxu0 %v1276
    %4234 = vmatpush1.msra.mxu0 %v1275
    %4235 = vmatprep.subr.mxu0 %v1280
    %4236 = vmatpush1.msra.mxu0 %v1279
    %4237 = vmatprep.subr.mxu0 %v1284
    %4238 = vmatpush1.msra.mxu0 %v1283
    %4239 = vmatprep.subr.mxu0 %v1288
    %4240 = vmatpush1.msra.mxu0 %v1287
    %4241 = vmatprep.subr.mxu0 %v1292
    %4242 = vmatpush1.msra.mxu0 %v1291
    %4243 = vmatprep.subr.mxu0 %v1296
    %4244 = vmatpush1.msra.mxu0 %v1295
    %4245 = vmatprep.subr.mxu0 %v1300
    %4246 = vmatpush1.msra.mxu0 %v1299
    %4247 = vmatprep.subr.mxu0 %v1304
    %4248 = vmatpush1.msra.mxu0 %v1303
    %4249 = vmatprep.subr.mxu0 %v1308
    %4250 = vmatpush1.msra.mxu0 %v1307
    %4251 = vmatprep.subr.mxu0 %v1312
    %4252 = vmatpush1.msra.mxu0 %v1311
    %4253 = vmatprep.subr.mxu0 0.0
    %4254 = vmatpush1.msra.mxu0 0.0
    %4255 = vmatprep.subr.mxu0 0.0
    %4256 = vmatpush1.msra.mxu0 0.0
    %4257 = vmatprep.subr.mxu0 0.0
    %4258 = vmatpush1.msra.mxu0 0.0
    %4259 = vmatprep.subr.mxu0 0.0
    %4260 = vmatpush1.msra.mxu0 0.0
    %4261 = vmatprep.subr.mxu0 0.0
    %4262 = vmatpush1.msra.mxu0 0.0
    %4263 = vmatprep.subr.mxu0 0.0
    %4264 = vmatpush1.msra.mxu0 0.0
    %4265 = vmatprep.subr.mxu0 0.0
    %4266 = vmatpush1.msra.mxu0 0.0
    %4267 = vmatprep.subr.mxu0 0.0
    %4268 = vmatpush1.msra.mxu0 0.0
    %4269 = vmatprep.subr.mxu0 0.0
    %4270 = vmatpush1.msra.mxu0 0.0
    %4271 = vmatprep.subr.mxu0 0.0
    %4272 = vmatpush1.msra.mxu0 0.0
    %4273 = vmatprep.subr.mxu0 0.0
    %4274 = vmatpush1.msra.mxu0 0.0
    %4275 = vmatprep.subr.mxu0 0.0
    %4276 = vmatpush1.msra.mxu0 0.0
    %4277 = vmatprep.subr.mxu0 0.0
    %4278 = vmatpush1.msra.mxu0 0.0
    %4279 = vmatprep.subr.mxu0 0.0
    %4280 = vmatpush1.msra.mxu0 0.0
    %4281 = vmatprep.subr.mxu0 0.0
    %4282 = vmatpush1.msra.mxu0 0.0
    %4283 = vmatprep.subr.mxu0 0.0
    %4284 = vmatpush1.msra.mxu0 0.0
    %4285 = vmatprep.mubr.f32.mxu0 0.0
    %4286 = vmatmul.mubr.f32.gmra.mrb[0].mxu0 %v4210
    %v4287 = vpop.f32.mrb[0].mxu0
    %v4288 = vadd.f32 0.0, %v4287
    %v4289 = vpop.f32.mrb[0].mxu0
    %v4290 = vadd.f32 0.0, %v4289
    %4291 = vmatprep.mubr.f32.mxu0 0.0
    %4292 = vmatmul.mubr.f32.gmra.mrb[0].mxu0 %v4211
    %v4293 = vpop.f32.mrb[0].mxu0
    %v4294 = vadd.f32 0.0, %v4293
    %v4295 = vpop.f32.mrb[0].mxu0
    %v4296 = vadd.f32 0.0, %v4295
    %4297 = vdwg.mxu0
    %4298 = vmatprep.subr.mxu0 %v1254
    %4299 = vmatpush1.msra.mxu0 %v1253
    %4300 = vmatprep.subr.mxu0 %v1258
    %4301 = vmatpush1.msra.mxu0 %v1257
    %4302 = vmatprep.subr.mxu0 %v1262
    %4303 = vmatpush1.msra.mxu0 %v1261
    %4304 = vmatprep.subr.mxu0 %v1266
    %4305 = vmatpush1.msra.mxu0 %v1265
    %4306 = vmatprep.subr.mxu0 %v1270
    %4307 = vmatpush1.msra.mxu0 %v1269
    %4308 = vmatprep.subr.mxu0 %v1274
    %4309 = vmatpush1.msra.mxu0 %v1273
    %4310 = vmatprep.subr.mxu0 %v1278
    %4311 = vmatpush1.msra.mxu0 %v1277
    %4312 = vmatprep.subr.mxu0 %v1282
    %4313 = vmatpush1.msra.mxu0 %v1281
    %4314 = vmatprep.subr.mxu0 %v1286
    %4315 = vmatpush1.msra.mxu0 %v1285
    %4316 = vmatprep.subr.mxu0 %v1290
    %4317 = vmatpush1.msra.mxu0 %v1289
    %4318 = vmatprep.subr.mxu0 %v1294
    %4319 = vmatpush1.msra.mxu0 %v1293
    %4320 = vmatprep.subr.mxu0 %v1298
    %4321 = vmatpush1.msra.mxu0 %v1297
    %4322 = vmatprep.subr.mxu0 %v1302
    %4323 = vmatpush1.msra.mxu0 %v1301
    %4324 = vmatprep.subr.mxu0 %v1306
    %4325 = vmatpush1.msra.mxu0 %v1305
    %4326 = vmatprep.subr.mxu0 %v1310
    %4327 = vmatpush1.msra.mxu0 %v1309
    %4328 = vmatprep.subr.mxu0 %v1314
    %4329 = vmatpush1.msra.mxu0 %v1313
    %4330 = vmatprep.subr.mxu0 0.0
    %4331 = vmatpush1.msra.mxu0 0.0
    %4332 = vmatprep.subr.mxu0 0.0
    %4333 = vmatpush1.msra.mxu0 0.0
    %4334 = vmatprep.subr.mxu0 0.0
    %4335 = vmatpush1.msra.mxu0 0.0
    %4336 = vmatprep.subr.mxu0 0.0
    %4337 = vmatpush1.msra.mxu0 0.0
    %4338 = vmatprep.subr.mxu0 0.0
    %4339 = vmatpush1.msra.mxu0 0.0
    %4340 = vmatprep.subr.mxu0 0.0
    %4341 = vmatpush1.msra.mxu0 0.0
    %4342 = vmatprep.subr.mxu0 0.0
    %4343 = vmatpush1.msra.mxu0 0.0
    %4344 = vmatprep.subr.mxu0 0.0
    %4345 = vmatpush1.msra.mxu0 0.0
    %4346 = vmatprep.subr.mxu0 0.0
    %4347 = vmatpush1.msra.mxu0 0.0
    %4348 = vmatprep.subr.mxu0 0.0
    %4349 = vmatpush1.msra.mxu0 0.0
    %4350 = vmatprep.subr.mxu0 0.0
    %4351 = vmatpush1.msra.mxu0 0.0
    %4352 = vmatprep.subr.mxu0 0.0
    %4353 = vmatpush1.msra.mxu0 0.0
    %4354 = vmatprep.subr.mxu0 0.0
    %4355 = vmatpush1.msra.mxu0 0.0
    %4356 = vmatprep.subr.mxu0 0.0
    %4357 = vmatpush1.msra.mxu0 0.0
    %4358 = vmatprep.subr.mxu0 0.0
    %4359 = vmatpush1.msra.mxu0 0.0
    %4360 = vmatprep.subr.mxu0 0.0
    %4361 = vmatpush1.msra.mxu0 0.0
    %4362 = vmatprep.mubr.f32.mxu0 0.0
    %4363 = vmatmul.mubr.f32.gmra.mrb[0].mxu0 %v4210
    %v4364 = vpop.f32.mrb[0].mxu0
    %v4365 = vadd.f32 0.0, %v4364
    %v4366 = vpop.f32.mrb[0].mxu0
    %v4367 = vadd.f32 0.0, %v4366
    %4368 = vmatprep.mubr.f32.mxu0 0.0
    %4369 = vmatmul.mubr.f32.gmra.mrb[0].mxu0 %v4211
    %v4370 = vpop.f32.mrb[0].mxu0
    %v4371 = vadd.f32 0.0, %v4370
    %v4372 = vpop.f32.mrb[0].mxu0
    %v4373 = vadd.f32 0.0, %v4372
    %4374 = vdwg.mxu0
    %v4375 = vadd.f32 %v4213, %v4288
    %v4376 = vadd.f32 %v4214, %v4290
    %v4377 = vadd.f32 %v4215, %v4365
    %v4378 = vadd.f32 %v4216, %v4367
    %v4379 = vadd.f32 %v4217, %v4294
    %v4380 = vadd.f32 %v4218, %v4296
    %v4381 = vadd.f32 %v4219, %v4371
    %v4382 = vadd.f32 %v4220, %v4373
    %v4383 = vmul.f32 %v4375, 0.5
    %v4384 = vmul.f32 %v4379, 0.5
    %v4385 = vtanh.pop %v4383
    %v4386 = vtanh.pop %v4384
    %v4387 = vmul.f32 %v4385, 0.5
    %v4388 = vmul.f32 %v4386, 0.5
    %v4389 = vadd.f32 %v4387, 0.5
    %v4390 = vadd.f32 %v4388, 0.5
    %v4391 = vmul.f32 %v4376, 0.5
    %v4392 = vmul.f32 %v4380, 0.5
    %v4393 = vtanh.pop %v4391
    %v4394 = vtanh.pop %v4392
    %v4395 = vmul.f32 %v4393, 0.5
    %v4396 = vmul.f32 %v4394, 0.5
    %v4397 = vadd.f32 %v4395, 0.5
    %v4398 = vadd.f32 %v4396, 0.5
    %v4399 = vtanh.pop %v4377
    %v4400 = vtanh.pop %v4381
    %v4401 = vmul.f32 %v4378, 0.5
    %v4402 = vmul.f32 %v4382, 0.5
    %v4403 = vtanh.pop %v4401
    %v4404 = vtanh.pop %v4402
    %v4405 = vmul.f32 %v4403, 0.5
    %v4406 = vmul.f32 %v4404, 0.5
    %v4407 = vadd.f32 %v4405, 0.5
    %v4408 = vadd.f32 %v4406, 0.5
    %v4409 = vmul.f32 %v4397, %v4206
    %v4410 = vmul.f32 %v4398, %v4207
    %v4411 = vmul.f32 %v4389, %v4399
    %v4412 = vmul.f32 %v4390, %v4400
    %v4413 = vadd.f32 %v4409, %v4411
    %v4414 = vadd.f32 %v4410, %v4412
    %v4415 = vtanh.pop %v4413
    %v4416 = vtanh.pop %v4414
    %v4417 = vmul.f32 %v4407, %v4415
    %v4418 = vmul.f32 %v4408, %v4416
    %s4419 = scalar_lea.vmem [#allocation2], 960
    %v4420 = vld [vmem:[%s4419] sm:$0xff]
    %v4421 = vld [vmem:[%s4419 + $0x8] sm:$0xff]
    %v4422 = vld [vmem:[%s4419 + $0x10] sm:$0xff]
    %v4423 = vld [vmem:[%s4419 + $0x18] sm:$0xff]
    %v4424 = vld [vmem:[%s4419 + $0x20] sm:$0xff]
    %v4425 = vld [vmem:[%s4419 + $0x28] sm:$0xff]
    %v4426 = vld [vmem:[%s4419 + $0x30] sm:$0xff]
    %v4427 = vld [vmem:[%s4419 + $0x38] sm:$0xff]
    %4428 = vmatprep.subr.mxu0 %v1252
    %4429 = vmatpush1.msra.mxu0 %v1251
    %4430 = vmatprep.subr.mxu0 %v1256
    %4431 = vmatpush1.msra.mxu0 %v1255
    %4432 = vmatprep.subr.mxu0 %v1260
    %4433 = vmatpush1.msra.mxu0 %v1259
    %4434 = vmatprep.subr.mxu0 %v1264
    %4435 = vmatpush1.msra.mxu0 %v1263
    %4436 = vmatprep.subr.mxu0 %v1268
    %4437 = vmatpush1.msra.mxu0 %v1267
    %4438 = vmatprep.subr.mxu0 %v1272
    %4439 = vmatpush1.msra.mxu0 %v1271
    %4440 = vmatprep.subr.mxu0 %v1276
    %4441 = vmatpush1.msra.mxu0 %v1275
    %4442 = vmatprep.subr.mxu0 %v1280
    %4443 = vmatpush1.msra.mxu0 %v1279
    %4444 = vmatprep.subr.mxu0 %v1284
    %4445 = vmatpush1.msra.mxu0 %v1283
    %4446 = vmatprep.subr.mxu0 %v1288
    %4447 = vmatpush1.msra.mxu0 %v1287
    %4448 = vmatprep.subr.mxu0 %v1292
    %4449 = vmatpush1.msra.mxu0 %v1291
    %4450 = vmatprep.subr.mxu0 %v1296
    %4451 = vmatpush1.msra.mxu0 %v1295
    %4452 = vmatprep.subr.mxu0 %v1300
    %4453 = vmatpush1.msra.mxu0 %v1299
    %4454 = vmatprep.subr.mxu0 %v1304
    %4455 = vmatpush1.msra.mxu0 %v1303
    %4456 = vmatprep.subr.mxu0 %v1308
    %4457 = vmatpush1.msra.mxu0 %v1307
    %4458 = vmatprep.subr.mxu0 %v1312
    %4459 = vmatpush1.msra.mxu0 %v1311
    %4460 = vmatprep.subr.mxu0 0.0
    %4461 = vmatpush1.msra.mxu0 0.0
    %4462 = vmatprep.subr.mxu0 0.0
    %4463 = vmatpush1.msra.mxu0 0.0
    %4464 = vmatprep.subr.mxu0 0.0
    %4465 = vmatpush1.msra.mxu0 0.0
    %4466 = vmatprep.subr.mxu0 0.0
    %4467 = vmatpush1.msra.mxu0 0.0
    %4468 = vmatprep.subr.mxu0 0.0
    %4469 = vmatpush1.msra.mxu0 0.0
    %4470 = vmatprep.subr.mxu0 0.0
    %4471 = vmatpush1.msra.mxu0 0.0
    %4472 = vmatprep.subr.mxu0 0.0
    %4473 = vmatpush1.msra.mxu0 0.0
    %4474 = vmatprep.subr.mxu0 0.0
    %4475 = vmatpush1.msra.mxu0 0.0
    %4476 = vmatprep.subr.mxu0 0.0
    %4477 = vmatpush1.msra.mxu0 0.0
    %4478 = vmatprep.subr.mxu0 0.0
    %4479 = vmatpush1.msra.mxu0 0.0
    %4480 = vmatprep.subr.mxu0 0.0
    %4481 = vmatpush1.msra.mxu0 0.0
    %4482 = vmatprep.subr.mxu0 0.0
    %4483 = vmatpush1.msra.mxu0 0.0
    %4484 = vmatprep.subr.mxu0 0.0
    %4485 = vmatpush1.msra.mxu0 0.0
    %4486 = vmatprep.subr.mxu0 0.0
    %4487 = vmatpush1.msra.mxu0 0.0
    %4488 = vmatprep.subr.mxu0 0.0
    %4489 = vmatpush1.msra.mxu0 0.0
    %4490 = vmatprep.subr.mxu0 0.0
    %4491 = vmatpush1.msra.mxu0 0.0
    %4492 = vmatprep.mubr.f32.mxu0 0.0
    %4493 = vmatmul.mubr.f32.gmra.mrb[0].mxu0 %v4417
    %v4494 = vpop.f32.mrb[0].mxu0
    %v4495 = vadd.f32 0.0, %v4494
    %v4496 = vpop.f32.mrb[0].mxu0
    %v4497 = vadd.f32 0.0, %v4496
    %4498 = vmatprep.mubr.f32.mxu0 0.0
    %4499 = vmatmul.mubr.f32.gmra.mrb[0].mxu0 %v4418
    %v4500 = vpop.f32.mrb[0].mxu0
    %v4501 = vadd.f32 0.0, %v4500
    %v4502 = vpop.f32.mrb[0].mxu0
    %v4503 = vadd.f32 0.0, %v4502
    %4504 = vdwg.mxu0
    %4505 = vmatprep.subr.mxu0 %v1254
    %4506 = vmatpush1.msra.mxu0 %v1253
    %4507 = vmatprep.subr.mxu0 %v1258
    %4508 = vmatpush1.msra.mxu0 %v1257
    %4509 = vmatprep.subr.mxu0 %v1262
    %4510 = vmatpush1.msra.mxu0 %v1261
    %4511 = vmatprep.subr.mxu0 %v1266
    %4512 = vmatpush1.msra.mxu0 %v1265
    %4513 = vmatprep.subr.mxu0 %v1270
    %4514 = vmatpush1.msra.mxu0 %v1269
    %4515 = vmatprep.subr.mxu0 %v1274
    %4516 = vmatpush1.msra.mxu0 %v1273
    %4517 = vmatprep.subr.mxu0 %v1278
    %4518 = vmatpush1.msra.mxu0 %v1277
    %4519 = vmatprep.subr.mxu0 %v1282
    %4520 = vmatpush1.msra.mxu0 %v1281
    %4521 = vmatprep.subr.mxu0 %v1286
    %4522 = vmatpush1.msra.mxu0 %v1285
    %4523 = vmatprep.subr.mxu0 %v1290
    %4524 = vmatpush1.msra.mxu0 %v1289
    %4525 = vmatprep.subr.mxu0 %v1294
    %4526 = vmatpush1.msra.mxu0 %v1293
    %4527 = vmatprep.subr.mxu0 %v1298
    %4528 = vmatpush1.msra.mxu0 %v1297
    %4529 = vmatprep.subr.mxu0 %v1302
    %4530 = vmatpush1.msra.mxu0 %v1301
    %4531 = vmatprep.subr.mxu0 %v1306
    %4532 = vmatpush1.msra.mxu0 %v1305
    %4533 = vmatprep.subr.mxu0 %v1310
    %4534 = vmatpush1.msra.mxu0 %v1309
    %4535 = vmatprep.subr.mxu0 %v1314
    %4536 = vmatpush1.msra.mxu0 %v1313
    %4537 = vmatprep.subr.mxu0 0.0
    %4538 = vmatpush1.msra.mxu0 0.0
    %4539 = vmatprep.subr.mxu0 0.0
    %4540 = vmatpush1.msra.mxu0 0.0
    %4541 = vmatprep.subr.mxu0 0.0
    %4542 = vmatpush1.msra.mxu0 0.0
    %4543 = vmatprep.subr.mxu0 0.0
    %4544 = vmatpush1.msra.mxu0 0.0
    %4545 = vmatprep.subr.mxu0 0.0
    %4546 = vmatpush1.msra.mxu0 0.0
    %4547 = vmatprep.subr.mxu0 0.0
    %4548 = vmatpush1.msra.mxu0 0.0
    %4549 = vmatprep.subr.mxu0 0.0
    %4550 = vmatpush1.msra.mxu0 0.0
    %4551 = vmatprep.subr.mxu0 0.0
    %4552 = vmatpush1.msra.mxu0 0.0
    %4553 = vmatprep.subr.mxu0 0.0
    %4554 = vmatpush1.msra.mxu0 0.0
    %4555 = vmatprep.subr.mxu0 0.0
    %4556 = vmatpush1.msra.mxu0 0.0
    %4557 = vmatprep.subr.mxu0 0.0
    %4558 = vmatpush1.msra.mxu0 0.0
    %4559 = vmatprep.subr.mxu0 0.0
    %4560 = vmatpush1.msra.mxu0 0.0
    %4561 = vmatprep.subr.mxu0 0.0
    %4562 = vmatpush1.msra.mxu0 0.0
    %4563 = vmatprep.subr.mxu0 0.0
    %4564 = vmatpush1.msra.mxu0 0.0
    %4565 = vmatprep.subr.mxu0 0.0
    %4566 = vmatpush1.msra.mxu0 0.0
    %4567 = vmatprep.subr.mxu0 0.0
    %4568 = vmatpush1.msra.mxu0 0.0
    %4569 = vmatprep.mubr.f32.mxu0 0.0
    %4570 = vmatmul.mubr.f32.gmra.mrb[0].mxu0 %v4417
    %v4571 = vpop.f32.mrb[0].mxu0
    %v4572 = vadd.f32 0.0, %v4571
    %v4573 = vpop.f32.mrb[0].mxu0
    %v4574 = vadd.f32 0.0, %v4573
    %4575 = vmatprep.mubr.f32.mxu0 0.0
    %4576 = vmatmul.mubr.f32.gmra.mrb[0].mxu0 %v4418
    %v4577 = vpop.f32.mrb[0].mxu0
    %v4578 = vadd.f32 0.0, %v4577
    %v4579 = vpop.f32.mrb[0].mxu0
    %v4580 = vadd.f32 0.0, %v4579
    %4581 = vdwg.mxu0
    %v4582 = vadd.f32 %v4420, %v4495
    %v4583 = vadd.f32 %v4421, %v4497
    %v4584 = vadd.f32 %v4422, %v4572
    %v4585 = vadd.f32 %v4423, %v4574
    %v4586 = vadd.f32 %v4424, %v4501
    %v4587 = vadd.f32 %v4425, %v4503
    %v4588 = vadd.f32 %v4426, %v4578
    %v4589 = vadd.f32 %v4427, %v4580
    %v4590 = vmul.f32 %v4582, 0.5
    %v4591 = vmul.f32 %v4586, 0.5
    %v4592 = vtanh.pop %v4590
    %v4593 = vtanh.pop %v4591
    %v4594 = vmul.f32 %v4592, 0.5
    %v4595 = vmul.f32 %v4593, 0.5
    %v4596 = vadd.f32 %v4594, 0.5
    %v4597 = vadd.f32 %v4595, 0.5
    %v4598 = vmul.f32 %v4583, 0.5
    %v4599 = vmul.f32 %v4587, 0.5
    %v4600 = vtanh.pop %v4598
    %v4601 = vtanh.pop %v4599
    %v4602 = vmul.f32 %v4600, 0.5
    %v4603 = vmul.f32 %v4601, 0.5
    %v4604 = vadd.f32 %v4602, 0.5
    %v4605 = vadd.f32 %v4603, 0.5
    %v4606 = vtanh.pop %v4584
    %v4607 = vtanh.pop %v4588
    %v4608 = vmul.f32 %v4585, 0.5
    %v4609 = vmul.f32 %v4589, 0.5
    %v4610 = vtanh.pop %v4608
    %v4611 = vtanh.pop %v4609
    %v4612 = vmul.f32 %v4610, 0.5
    %v4613 = vmul.f32 %v4611, 0.5
    %v4614 = vadd.f32 %v4612, 0.5
    %v4615 = vadd.f32 %v4613, 0.5
    %v4616 = vmul.f32 %v4604, %v4413
    %v4617 = vmul.f32 %v4605, %v4414
    %v4618 = vmul.f32 %v4596, %v4606
    %v4619 = vmul.f32 %v4597, %v4607
    %v4620 = vadd.f32 %v4616, %v4618
    %v4621 = vadd.f32 %v4617, %v4619
    %v4622 = vtanh.pop %v4620
    %v4623 = vtanh.pop %v4621
    %v4624 = vmul.f32 %v4614, %v4622
    %v4625 = vmul.f32 %v4615, %v4623
    %v4626 = vld [vmem:[%s5] sm:$0x1]
    %v4628 = vlaneseq
    %v4629 = vshrl.u32 %v4628, 7
    %v4630 = vsub.s32 0, %v4629
    %v4631 = vrot.slane %v4626, %v4630
    %v4633 = vmul.f32 %v4624, %v4631
    %v4634 = vmul.f32 %v4625, %v4631
    %4635 = vadd.xlane.f32.xlu0 %v4633
    %v4636 = vpop.xlane.xlu0 %4635
    %4637 = vadd.xlane.f32.xlu0 %v4634
    %v4638 = vpop.xlane.xlu0 %4637
    %v4639 = vld [vmem:[#allocation3] sm:$0x1]
    %v4641 = vlaneseq
    %v4642 = vshrl.u32 %v4641, 7
    %v4643 = vsub.s32 0, %v4642
    %v4644 = vrot.slane %v4639, %v4643
    %v4646 = vadd.f32 %v4636, %v4644
    %v4647 = vadd.f32 %v4638, %v4644
    %vm4648 = vcmask 7168
    %4649 = vst.msk [vmem:[%s7] sm:$0xff] %vm4648, %v4646
    %4650 = vst.msk [vmem:[%s7 + $0x8] sm:$0xff] %vm4648, %v4647
    // Predicated region
    $region38: #{tpu_custom_call.1} parent=1 // pred_check
      _
    $region39: #{tpu_custom_call.1} parent=1 // pred_check_branch
      %4652 = sbr.rel (0) target = $region41
    $region40: #{tpu_custom_call.1} parent=1 // pred_region
      _
    $region41: #{tpu_custom_call.1} parent=1 // pred_fallthru
      _
    // Predicated region
    $region42: #{tpu_custom_call.1} parent=1 // pred_check
      _
    $region43: #{tpu_custom_call.1} parent=1 // pred_check_branch
      %4654 = sbr.rel (0) target = $region45
    $region44: #{tpu_custom_call.1} parent=1 // pred_region
      _
    $region45: #{tpu_custom_call.1} parent=1 // pred_fallthru
      _
    %4655 = vsyncpa [#allocation5], 1
    %4656 = vsyncpa [#allocation7], 1

</llo_original>
